<compile_context>
chip_gen: v7x
topology: tpu7x:2x2x1
jax: 0.10.0
libtpu: 0.0.40
codegen_flags: <defaults>
</compile_context>

<pallas_src>
import functools

import jax
import jax.numpy as jnp
from jax import lax
from jax.experimental import pallas as pl
from jax.experimental.pallas import tpu as pltpu


def cross_modal_attention_kernel(num_heads, head_dim, eps, need_weights,
                                 compute_dtype, *refs):
    (vis_ref, txt_ref, wq_ref, wkv_ref, bq_ref, bkv_ref,
     wo_ref, bo_ref, gamma_ref, beta_ref) = refs[:10]
    if need_weights:
        out_ref, attn_ref, kv_ref, ctx_ref = refs[10:]
    else:
        out_ref, kv_ref, ctx_ref = refs[10:]
        attn_ref = None

    D = num_heads * head_dim
    scale = 1.0 / (head_dim ** 0.5)
    inv_h = 1.0 / float(num_heads)

    # ---- K/V projection: hoisted, computed once per batch (first q-tile only). ----
    # kv scratch persists across the qi axis; qi is "arbitrary" so no core ever starts
    # a batch mid-way with a stale scratch.
    @pl.when(pl.program_id(1) == 0)
    def _():
        txt = txt_ref[0]                                       # [Lk, D] compute_dtype
        kv = jnp.dot(txt, wkv_ref[...],
                     preferred_element_type=jnp.float32) + bkv_ref[...]
        kv_ref[...] = kv.astype(kv_ref.dtype)                  # [Lk, 2D]

    # ---- Q projection (bias + folded 1/sqrt(hd) scale), bf16 operands, f32 acc. ----
    vis = vis_ref[0]                                           # [tq, D] input dtype
    q = jnp.dot(vis.astype(compute_dtype), wq_ref[...],
                preferred_element_type=jnp.float32) + bq_ref[...]
    q = (q * scale).astype(compute_dtype)                      # [tq, D]

    # ---- Per-head attention (static unrolled loop; per-head ctx -> f32 scratch). ----
    for h in range(num_heads):
        sl = slice(h * head_dim, (h + 1) * head_dim)
        qh = q[:, sl]                                          # [tq, hd]
        kh = kv_ref[:, sl]                                     # [Lk, hd]
        vh = kv_ref[:, D + h * head_dim: D + (h + 1) * head_dim]  # [Lk, hd]

        s = lax.dot_general(qh, kh, (((1,), (1,)), ((), ())),
                            preferred_element_type=jnp.float32)   # [tq, Lk]
        s = s - jnp.max(s, axis=-1, keepdims=True)
        p = jnp.exp(s)
        denom = jnp.sum(p, axis=-1, keepdims=True)             # [tq, 1]

        if need_weights:
            # Exact normalization: the returned (head-averaged) weights must match
            # torch's exactly-normalized softmax, so no approx reciprocal here.
            pn = p / denom                                     # [tq, Lk] f32
            if h == 0:
                attn_ref[0] = pn
            else:
                attn_ref[0] += pn
            ctx_ref[:, sl] = jnp.dot(pn.astype(compute_dtype), vh,
                                     preferred_element_type=jnp.float32)
        else:
            # Deferred normalization: scale the [tq, hd] context, not the [tq, Lk]
            # probabilities; approx reciprocal runs on the EUP slot.
            ctx_h = jnp.dot(p.astype(compute_dtype), vh,
                            preferred_element_type=jnp.float32)
            ctx_ref[:, sl] = ctx_h * pl.reciprocal(denom, approx=True)

    # ---- Single full-D output projection (K = D) + bias. ----
    out = jnp.dot(ctx_ref[...].astype(compute_dtype), wo_ref[...],
                  preferred_element_type=jnp.float32) + bo_ref[...]

    # ---- Residual + LayerNorm (biased variance, torch semantics), f32 math. ----
    resid = vis.astype(jnp.float32) + out
    mean = jnp.mean(resid, axis=-1, keepdims=True)
    cent = resid - mean
    var = jnp.mean(cent * cent, axis=-1, keepdims=True)
    normed = cent * lax.rsqrt(var + eps)
    out_ref[0] = (normed * gamma_ref[...] + beta_ref[...]).astype(out_ref.dtype)

    if need_weights:
        # Head average (torch average_attn_weights=True).
        attn_ref[0] = attn_ref[0] * inv_h


def _default_vmem_limit(tq, Lk, D, vbytes, cbytes, need_weights):
    """Double-buffered block bytes + persistent scratch + temp headroom."""
    buf = 0
    buf += 2 * tq * D * vbytes                 # vision block
    buf += 2 * Lk * D * cbytes                 # text block
    buf += 2 * (2 * D * D * cbytes)            # Wq.T + Wo.T
    buf += 2 * (D * 2 * D * cbytes)            # Wkv.T (fused)
    buf += 2 * (6 * D * 4)                     # bq + bkv + bo + gamma + beta (f32)
    buf += 2 * tq * D * vbytes                 # y output block
    if need_weights:
        buf += 2 * tq * Lk * 4                 # attention-weights output block
    buf += Lk * 2 * D * cbytes                 # kv scratch (persistent)
    buf += tq * D * 4                          # ctx scratch (f32)
    buf += 6 * tq * max(Lk, D) * 4             # s/p/q/resid temporaries headroom
    limit = int(buf * 1.25) + (1 << 20)
    return min(max(limit, 32 << 20), 128 << 20)


def cross_modal_attention(vision, text, params, num_heads, *,
                          need_weights=True, q_tile=256,
                          compute_dtype=jnp.bfloat16, vmem_limit_bytes=None):
    B, Lq, D = vision.shape
    Bt, Lk, Dt = text.shape
    assert Bt == B and Dt == D and D % num_heads == 0
    head_dim = D // num_heads
    cdt = jnp.dtype(compute_dtype)

    # Host-side weight prep (free): pass W.T so every kernel matmul contracts (1,0);
    # fuse K & V weights / biases; MXU operands cast to compute_dtype (bf16 by default).
    wq_t = params["wq"].T.astype(compute_dtype)                            # [D, D]
    wkv_t = jnp.concatenate([params["wk"], params["wv"]],
                            axis=0).T.astype(compute_dtype)                # [D, 2D]
    wo_t = params["wo"].T.astype(compute_dtype)                            # [D, D]
    bq = params["bq"].astype(jnp.float32)                                  # [1, D]
    bkv = jnp.concatenate([params["bk"], params["bv"]],
                          axis=1).astype(jnp.float32)                      # [1, 2D]
    bo = params["bo"].astype(jnp.float32)
    gamma = params["gamma"].astype(jnp.float32)
    beta = params["beta"].astype(jnp.float32)
    text_c = text.astype(compute_dtype)        # halves text DMA for bf16

    # q-tile: explicit multiple-of-8 enforcement (or full Lq) for the (8,128) rule.
    q_tile = max(8, (int(q_tile) // 8) * 8)
    tq = Lq if Lq <= q_tile else q_tile
    nq = pl.cdiv(Lq, tq)
    grid = (B, nq)

    kernel = functools.partial(cross_modal_attention_kernel,
                               num_heads, head_dim, 1e-5, need_weights,
                               compute_dtype)

    def fixed(shape):
        # Constant-index blocks (weights/biases): fetched once.
        # TODO: pipeline_mode=pl.Buffered(1) would also drop their double-buffer copy.
        return pl.BlockSpec(shape, lambda b, qi: (0,) * len(shape))

    in_specs = [
        pl.BlockSpec((1, tq, D), lambda b, qi: (b, qi, 0)),   # vision (query)
        pl.BlockSpec((1, Lk, D), lambda b, qi: (b, 0, 0)),    # text (key/value)
        fixed((D, D)),       # Wq.T
        fixed((D, 2 * D)),   # Wkv.T (fused)
        fixed((1, D)),       # bq
        fixed((1, 2 * D)),   # bkv (fused)
        fixed((D, D)),       # Wo.T
        fixed((1, D)),       # bo
        fixed((1, D)),       # gamma
        fixed((1, D)),       # beta
    ]

    out_spec_y = pl.BlockSpec((1, tq, D), lambda b, qi: (b, qi, 0))
    if need_weights:
        out_specs = [out_spec_y,
                     pl.BlockSpec((1, tq, Lk), lambda b, qi: (b, qi, 0))]
        out_shape = (jax.ShapeDtypeStruct((B, Lq, D), vision.dtype),
                     jax.ShapeDtypeStruct((B, Lq, Lk), jnp.float32))
    else:
        out_specs = [out_spec_y]
        out_shape = (jax.ShapeDtypeStruct((B, Lq, D), vision.dtype),)

    grid_spec = pltpu.PrefetchScalarGridSpec(
        num_scalar_prefetch=0,
        grid=grid,
        in_specs=in_specs,
        out_specs=out_specs,
        scratch_shapes=[
            pltpu.VMEM((Lk, 2 * D), compute_dtype),   # per-batch fused K/V (hoisted)
            pltpu.VMEM((tq, D), jnp.float32),         # per-tile context accumulator
        ],
    )

    if vmem_limit_bytes is None:
        vmem_limit_bytes = _default_vmem_limit(
            tq, Lk, D, vision.dtype.itemsize, cdt.itemsize, need_weights)

    # Advisory cost for XLA's scheduler around the custom call.
    flops = B * (2 * Lq * D * D            # Q projection
                 + 2 * Lk * D * (2 * D)    # fused K/V projection (once per batch)
                 + 4 * Lq * Lk * D         # QK^T + P@V
                 + 2 * Lq * D * D)         # output projection
    transcendentals = B * num_heads * Lq * Lk
    bytes_accessed = (vision.size * vision.dtype.itemsize
                      + B * Lk * D * cdt.itemsize
                      + (4 * D * D) * cdt.itemsize
                      + B * Lq * D * vision.dtype.itemsize
                      + (B * Lq * Lk * 4 if need_weights else 0))
    cost = pl.CostEstimate(flops=int(flops),
                           transcendentals=int(transcendentals),
                           bytes_accessed=int(bytes_accessed))

    results = pl.pallas_call(
        kernel,
        out_shape=out_shape,
        grid_spec=grid_spec,
        compiler_params=pltpu.CompilerParams(
            # b: parallel (v7x megacore splits batches); qi: arbitrary (sequential per
            # core) so the K/V hoist at qi==0 is always valid.
            dimension_semantics=("parallel", "arbitrary"),
            vmem_limit_bytes=int(vmem_limit_bytes),
        ),
        cost_estimate=cost,
    )(vision, text_c, wq_t, wkv_t, bq, bkv, wo_t, bo, gamma, beta)

    if need_weights:
        out, attn = results
        return out, attn
    (out,) = results
    return out, None


def reference_cross_modal_attention(vision, text, params, num_heads):
    """Pure-JAX reference matching torch nn.MultiheadAttention + LayerNorm."""
    B, Lq, D = vision.shape
    Lk = text.shape[1]
    hd = D // num_heads

    q = vision @ params["wq"].T + params["bq"][0]
    k = text @ params["wk"].T + params["bk"][0]
    v = text @ params["wv"].T + params["bv"][0]

    q = q.reshape(B, Lq, num_heads, hd).transpose(0, 2, 1, 3)
    k = k.reshape(B, Lk, num_heads, hd).transpose(0, 2, 1, 3)
    v = v.reshape(B, Lk, num_heads, hd).transpose(0, 2, 1, 3)

    s = jnp.einsum("bhqd,bhkd->bhqk", q, k) / jnp.sqrt(hd)
    p = jax.nn.softmax(s, axis=-1)
    ctx = jnp.einsum("bhqk,bhkd->bhqd", p, v)
    ctx = ctx.transpose(0, 2, 1, 3).reshape(B, Lq, D)
    attn_out = ctx @ params["wo"].T + params["bo"][0]

    resid = vision + attn_out
    mean = resid.mean(-1, keepdims=True)
    var = ((resid - mean) ** 2).mean(-1, keepdims=True)
    out = (resid - mean) / jnp.sqrt(var + 1e-5)
    out = out * params["gamma"][0] + params["beta"][0]
    return out, p.mean(axis=1)


if __name__ == "__main__":
    B, Lq, Lk, D, H = 2, 16, 8, 32, 8

    key = jax.random.PRNGKey(0)
    keys = jax.random.split(key, 12)
    scale = 0.05
    params = {
        "wq": scale * jax.random.normal(keys[0], (D, D), jnp.float32),
        "wk": scale * jax.random.normal(keys[1], (D, D), jnp.float32),
        "wv": scale * jax.random.normal(keys[2], (D, D), jnp.float32),
        "bq": scale * jax.random.normal(keys[3], (1, D), jnp.float32),
        "bk": scale * jax.random.normal(keys[4], (1, D), jnp.float32),
        "bv": scale * jax.random.normal(keys[5], (1, D), jnp.float32),
        "wo": scale * jax.random.normal(keys[6], (D, D), jnp.float32),
        "bo": scale * jax.random.normal(keys[7], (1, D), jnp.float32),
        "gamma": jnp.ones((1, D), jnp.float32),   # LayerNorm default init
        "beta": jnp.zeros((1, D), jnp.float32),
    }

    vision = jax.random.normal(keys[8], (B, Lq, D), jnp.float32)
    text = jax.random.normal(keys[9], (B, Lk, D), jnp.float32)

    ref_out, ref_attn = reference_cross_modal_attention(vision, text, params, H)

    # 1) f32 compute path: tight tolerance (proves the kernel math / layout).
    out32, attn32 = cross_modal_attention(vision, text, params, H,
                                          need_weights=True,
                                          compute_dtype=jnp.float32)
    out32 = jax.block_until_ready(out32)
    attn32 = jax.block_until_ready(attn32)
    assert out32.shape == (B, Lq, D) and attn32.shape == (B, Lq, Lk)
    assert jnp.allclose(out32, ref_out, atol=2e-3, rtol=2e-3)
    assert jnp.allclose(attn32, ref_attn, atol=2e-3, rtol=2e-3)

    # 2) Default bf16-MXU path (f32 accumulation / softmax / LayerNorm).
    out, attn = cross_modal_attention(vision, text, params, H, need_weights=True)
    out = jax.block_until_ready(out)
    attn = jax.block_until_ready(attn)
    assert out.shape == (B, Lq, D) and attn.shape == (B, Lq, Lk)
    assert jnp.allclose(out, ref_out, atol=2e-2, rtol=2e-2)
    assert jnp.allclose(attn, ref_attn, atol=1e-2, rtol=1e-2)

    # 3) Fast path: no attention-weights writeback, deferred softmax normalization.
    out_nw, attn_nw = cross_modal_attention(vision, text, params, H,
                                            need_weights=False)
    out_nw = jax.block_until_ready(out_nw)
    assert attn_nw is None
    assert jnp.allclose(out_nw, ref_out, atol=2e-2, rtol=2e-2)

    print("KERNEL_OK")
</pallas_src>

<mosaic_0001>
module attributes {stable_mosaic.version = 11 : i64} {
  func.func @cross_modal_attention_kernel(%arg0: i32, %arg1: i32, %arg2: memref<1x16x32xf32, #tpu.memory_space<vmem>>, %arg3: memref<1x8x32xf32, #tpu.memory_space<vmem>>, %arg4: memref<32x32xf32, #tpu.memory_space<vmem>>, %arg5: memref<32x64xf32, #tpu.memory_space<vmem>>, %arg6: memref<1x32xf32, #tpu.memory_space<vmem>>, %arg7: memref<1x64xf32, #tpu.memory_space<vmem>>, %arg8: memref<32x32xf32, #tpu.memory_space<vmem>>, %arg9: memref<1x32xf32, #tpu.memory_space<vmem>>, %arg10: memref<1x32xf32, #tpu.memory_space<vmem>>, %arg11: memref<1x32xf32, #tpu.memory_space<vmem>>, %arg12: memref<1x16x32xf32, #tpu.memory_space<vmem>>, %arg13: memref<1x16x8xf32, #tpu.memory_space<vmem>>, %arg14: memref<8x64xf32, #tpu.memory_space<vmem>>, %arg15: memref<16x32xf32, #tpu.memory_space<vmem>>) attributes {dimension_semantics = [#tpu.dimension_semantics<parallel>, #tpu.dimension_semantics<arbitrary>], iteration_bounds = array<i64: 2, 1>, scalar_prefetch = 0 : i64, scratch_operands = 2 : i64, tpu.core_type = #tpu.core_type<tc>, window_params = [{transform_indices = @transform_0, window_bounds = array<i64: 1, 16, 32>}, {transform_indices = @transform_1, window_bounds = array<i64: 1, 8, 32>}, {pipeline_mode = #tpu.pipeline_mode<synchronous>, transform_indices = @transform_2, window_bounds = array<i64: 32, 32>}, {pipeline_mode = #tpu.pipeline_mode<synchronous>, transform_indices = @transform_3, window_bounds = array<i64: 32, 64>}, {pipeline_mode = #tpu.pipeline_mode<synchronous>, transform_indices = @transform_4, window_bounds = array<i64: 1, 32>}, {pipeline_mode = #tpu.pipeline_mode<synchronous>, transform_indices = @transform_5, window_bounds = array<i64: 1, 64>}, {pipeline_mode = #tpu.pipeline_mode<synchronous>, transform_indices = @transform_6, window_bounds = array<i64: 32, 32>}, {pipeline_mode = #tpu.pipeline_mode<synchronous>, transform_indices = @transform_7, window_bounds = array<i64: 1, 32>}, {pipeline_mode = #tpu.pipeline_mode<synchronous>, transform_indices = @transform_8, window_bounds = array<i64: 1, 32>}, {pipeline_mode = #tpu.pipeline_mode<synchronous>, transform_indices = @transform_9, window_bounds = array<i64: 1, 32>}, {transform_indices = @transform_10, window_bounds = array<i64: 1, 16, 32>}, {transform_indices = @transform_11, window_bounds = array<i64: 1, 16, 8>}]} {
    %c0_i32 = arith.constant 0 : i32
    %0 = arith.cmpi eq, %arg1, %c0_i32 : i32
    %1 = arith.extui %0 : i1 to i32
    %c0_i32_0 = arith.constant 0 : i32
    %2 = arith.cmpi ne, %1, %c0_i32_0 : i32
    scf.if %2 {
      %c0_144 = arith.constant 0 : index
      %c0_145 = arith.constant 0 : index
      %c0_146 = arith.constant 0 : index
      %216 = vector.load %arg3[%c0_144, %c0_145, %c0_146] : memref<1x8x32xf32, #tpu.memory_space<vmem>>, vector<1x8x32xf32>
      %217 = vector.shape_cast %216 : vector<1x8x32xf32> to vector<8x32xf32>
      %c0_147 = arith.constant 0 : index
      %c0_148 = arith.constant 0 : index
      %218 = vector.load %arg5[%c0_147, %c0_148] : memref<32x64xf32, #tpu.memory_space<vmem>>, vector<32x64xf32>
      %cst_149 = arith.constant dense<0.000000e+00> : vector<8x64xf32>
      %219 = tpu.matmul %217, %218, %cst_149 {dimension_numbers = #tpu.dot_dimension_numbers<[1], [0], [0], [1], [0, 0, 1, 1], [], []>} : vector<8x32xf32>, vector<32x64xf32>, vector<8x64xf32> -> vector<8x64xf32>
      %c0_150 = arith.constant 0 : index
      %c0_151 = arith.constant 0 : index
      %220 = vector.load %arg7[%c0_150, %c0_151] : memref<1x64xf32, #tpu.memory_space<vmem>>, vector<1x64xf32>
      %221 = vector.broadcast %220 : vector<1x64xf32> to vector<8x64xf32>
      %222 = arith.addf %219, %221 : vector<8x64xf32>
      %c0_152 = arith.constant 0 : index
      %c0_153 = arith.constant 0 : index
      %223 = vector.load %arg14[%c0_152, %c0_153] : memref<8x64xf32, #tpu.memory_space<vmem>>, vector<8x64xf32>
      tpu.vector_store %arg14[%c0_152, %c0_153], %222 {strides = array<i32>} : memref<8x64xf32, #tpu.memory_space<vmem>>, vector<8x64xf32>,
    } else {
    }
    %c0 = arith.constant 0 : index
    %c0_1 = arith.constant 0 : index
    %c0_2 = arith.constant 0 : index
    %3 = vector.load %arg2[%c0, %c0_1, %c0_2] : memref<1x16x32xf32, #tpu.memory_space<vmem>>, vector<1x16x32xf32>
    %4 = vector.shape_cast %3 : vector<1x16x32xf32> to vector<16x32xf32>
    %c0_3 = arith.constant 0 : index
    %c0_4 = arith.constant 0 : index
    %5 = vector.load %arg4[%c0_3, %c0_4] : memref<32x32xf32, #tpu.memory_space<vmem>>, vector<32x32xf32>
    %cst = arith.constant dense<0.000000e+00> : vector<16x32xf32>
    %6 = tpu.matmul %4, %5, %cst {dimension_numbers = #tpu.dot_dimension_numbers<[1], [0], [0], [1], [0, 0, 1, 1], [], []>} : vector<16x32xf32>, vector<32x32xf32>, vector<16x32xf32> -> vector<16x32xf32>
    %c0_5 = arith.constant 0 : index
    %c0_6 = arith.constant 0 : index
    %7 = vector.load %arg6[%c0_5, %c0_6] : memref<1x32xf32, #tpu.memory_space<vmem>>, vector<1x32xf32>
    %8 = vector.broadcast %7 : vector<1x32xf32> to vector<16x32xf32>
    %9 = arith.addf %6, %8 : vector<16x32xf32>
    %cst_7 = arith.constant 5.000000e-01 : f32
    %10 = vector.broadcast %cst_7 : f32 to vector<16x32xf32>
    %11 = arith.mulf %9, %10 : vector<16x32xf32>
    %12 = vector.extract_strided_slice %11 {offsets = [0, 0], sizes = [16, 4], strides = [1, 1]} : vector<16x32xf32> to vector<16x4xf32>
    %c0_8 = arith.constant 0 : index
    %c0_9 = arith.constant 0 : index
    %13 = vector.load %arg14[%c0_8, %c0_9] : memref<8x64xf32, #tpu.memory_space<vmem>>, vector<8x4xf32>
    %c0_10 = arith.constant 0 : index
    %c32 = arith.constant 32 : index
    %14 = vector.load %arg14[%c0_10, %c32] : memref<8x64xf32, #tpu.memory_space<vmem>>, vector<8x4xf32>
    %cst_11 = arith.constant dense<0.000000e+00> : vector<16x8xf32>
    %15 = tpu.matmul %12, %13, %cst_11 {dimension_numbers = #tpu.dot_dimension_numbers<[1], [1], [0], [0], [0, 0, 1, 0], [], []>} : vector<16x4xf32>, vector<8x4xf32>, vector<16x8xf32> -> vector<16x8xf32>
    %cst_12 = arith.constant dense<0xFF800000> : vector<16xf32>
    %16 = vector.multi_reduction <maximumf>, %15, %cst_12 [1] : vector<16x8xf32> to vector<16xf32>
    %17 = vector.shape_cast %16 : vector<16xf32> to vector<16x1xf32>
    %18 = vector.broadcast %17 : vector<16x1xf32> to vector<16x8xf32>
    %19 = arith.subf %15, %18 : vector<16x8xf32>
    %20 = math.exp %19 : vector<16x8xf32>
    %cst_13 = arith.constant dense<0.000000e+00> : vector<16xf32>
    %21 = vector.multi_reduction <add>, %20, %cst_13 [1] : vector<16x8xf32> to vector<16xf32>
    %22 = vector.shape_cast %21 : vector<16xf32> to vector<16x1xf32>
    %23 = vector.broadcast %22 : vector<16x1xf32> to vector<16x8xf32>
    %24 = arith.divf %20, %23 : vector<16x8xf32>
    %c0_14 = arith.constant 0 : index
    %c0_15 = arith.constant 0 : index
    %c0_16 = arith.constant 0 : index
    %25 = vector.load %arg13[%c0_14, %c0_15, %c0_16] : memref<1x16x8xf32, #tpu.memory_space<vmem>>, vector<1x16x8xf32>
    %26 = vector.shape_cast %25 : vector<1x16x8xf32> to vector<16x8xf32>
    %27 = vector.shape_cast %24 : vector<16x8xf32> to vector<1x16x8xf32>
    tpu.vector_store %arg13[%c0_14, %c0_15, %c0_16], %27 {strides = array<i32>} : memref<1x16x8xf32, #tpu.memory_space<vmem>>, vector<1x16x8xf32>,
    %cst_17 = arith.constant dense<0.000000e+00> : vector<16x4xf32>
    %28 = tpu.matmul %24, %14, %cst_17 {dimension_numbers = #tpu.dot_dimension_numbers<[1], [0], [0], [1], [0, 0, 1, 1], [], []>} : vector<16x8xf32>, vector<8x4xf32>, vector<16x4xf32> -> vector<16x4xf32>
    %c0_18 = arith.constant 0 : index
    %c0_19 = arith.constant 0 : index
    %29 = vector.load %arg15[%c0_18, %c0_19] : memref<16x32xf32, #tpu.memory_space<vmem>>, vector<16x4xf32>
    tpu.vector_store %arg15[%c0_18, %c0_19], %28 {strides = array<i32>} : memref<16x32xf32, #tpu.memory_space<vmem>>, vector<16x4xf32>,
    %30 = vector.extract_strided_slice %11 {offsets = [0, 4], sizes = [16, 4], strides = [1, 1]} : vector<16x32xf32> to vector<16x4xf32>
    %c0_20 = arith.constant 0 : index
    %c4 = arith.constant 4 : index
    %31 = vector.load %arg14[%c0_20, %c4] : memref<8x64xf32, #tpu.memory_space<vmem>>, vector<8x4xf32>
    %c0_21 = arith.constant 0 : index
    %c36 = arith.constant 36 : index
    %32 = vector.load %arg14[%c0_21, %c36] : memref<8x64xf32, #tpu.memory_space<vmem>>, vector<8x4xf32>
    %cst_22 = arith.constant dense<0.000000e+00> : vector<16x8xf32>
    %33 = tpu.matmul %30, %31, %cst_22 {dimension_numbers = #tpu.dot_dimension_numbers<[1], [1], [0], [0], [0, 0, 1, 0], [], []>} : vector<16x4xf32>, vector<8x4xf32>, vector<16x8xf32> -> vector<16x8xf32>
    %cst_23 = arith.constant dense<0xFF800000> : vector<16xf32>
    %34 = vector.multi_reduction <maximumf>, %33, %cst_23 [1] : vector<16x8xf32> to vector<16xf32>
    %35 = vector.shape_cast %34 : vector<16xf32> to vector<16x1xf32>
    %36 = vector.broadcast %35 : vector<16x1xf32> to vector<16x8xf32>
    %37 = arith.subf %33, %36 : vector<16x8xf32>
    %38 = math.exp %37 : vector<16x8xf32>
    %cst_24 = arith.constant dense<0.000000e+00> : vector<16xf32>
    %39 = vector.multi_reduction <add>, %38, %cst_24 [1] : vector<16x8xf32> to vector<16xf32>
    %40 = vector.shape_cast %39 : vector<16xf32> to vector<16x1xf32>
    %41 = vector.broadcast %40 : vector<16x1xf32> to vector<16x8xf32>
    %42 = arith.divf %38, %41 : vector<16x8xf32>
    %c0_25 = arith.constant 0 : index
    %c0_26 = arith.constant 0 : index
    %c0_27 = arith.constant 0 : index
    %43 = vector.load %arg13[%c0_25, %c0_26, %c0_27] : memref<1x16x8xf32, #tpu.memory_space<vmem>>, vector<1x16x8xf32>
    %44 = vector.shape_cast %43 : vector<1x16x8xf32> to vector<16x8xf32>
    %45 = arith.addf %44, %42 : vector<16x8xf32>
    %c0_28 = arith.constant 0 : index
    %c0_29 = arith.constant 0 : index
    %c0_30 = arith.constant 0 : index
    %46 = vector.load %arg13[%c0_28, %c0_29, %c0_30] : memref<1x16x8xf32, #tpu.memory_space<vmem>>, vector<1x16x8xf32>
    %47 = vector.shape_cast %46 : vector<1x16x8xf32> to vector<16x8xf32>
    %48 = vector.shape_cast %45 : vector<16x8xf32> to vector<1x16x8xf32>
    tpu.vector_store %arg13[%c0_28, %c0_29, %c0_30], %48 {strides = array<i32>} : memref<1x16x8xf32, #tpu.memory_space<vmem>>, vector<1x16x8xf32>,
    %cst_31 = arith.constant dense<0.000000e+00> : vector<16x4xf32>
    %49 = tpu.matmul %42, %32, %cst_31 {dimension_numbers = #tpu.dot_dimension_numbers<[1], [0], [0], [1], [0, 0, 1, 1], [], []>} : vector<16x8xf32>, vector<8x4xf32>, vector<16x4xf32> -> vector<16x4xf32>
    %c0_32 = arith.constant 0 : index
    %c4_33 = arith.constant 4 : index
    %50 = vector.load %arg15[%c0_32, %c4_33] : memref<16x32xf32, #tpu.memory_space<vmem>>, vector<16x4xf32>
    tpu.vector_store %arg15[%c0_32, %c4_33], %49 {strides = array<i32>} : memref<16x32xf32, #tpu.memory_space<vmem>>, vector<16x4xf32>,
    %51 = vector.extract_strided_slice %11 {offsets = [0, 8], sizes = [16, 4], strides = [1, 1]} : vector<16x32xf32> to vector<16x4xf32>
    %c0_34 = arith.constant 0 : index
    %c8 = arith.constant 8 : index
    %52 = vector.load %arg14[%c0_34, %c8] : memref<8x64xf32, #tpu.memory_space<vmem>>, vector<8x4xf32>
    %c0_35 = arith.constant 0 : index
    %c40 = arith.constant 40 : index
    %53 = vector.load %arg14[%c0_35, %c40] : memref<8x64xf32, #tpu.memory_space<vmem>>, vector<8x4xf32>
    %cst_36 = arith.constant dense<0.000000e+00> : vector<16x8xf32>
    %54 = tpu.matmul %51, %52, %cst_36 {dimension_numbers = #tpu.dot_dimension_numbers<[1], [1], [0], [0], [0, 0, 1, 0], [], []>} : vector<16x4xf32>, vector<8x4xf32>, vector<16x8xf32> -> vector<16x8xf32>
    %cst_37 = arith.constant dense<0xFF800000> : vector<16xf32>
    %55 = vector.multi_reduction <maximumf>, %54, %cst_37 [1] : vector<16x8xf32> to vector<16xf32>
    %56 = vector.shape_cast %55 : vector<16xf32> to vector<16x1xf32>
    %57 = vector.broadcast %56 : vector<16x1xf32> to vector<16x8xf32>
    %58 = arith.subf %54, %57 : vector<16x8xf32>
    %59 = math.exp %58 : vector<16x8xf32>
    %cst_38 = arith.constant dense<0.000000e+00> : vector<16xf32>
    %60 = vector.multi_reduction <add>, %59, %cst_38 [1] : vector<16x8xf32> to vector<16xf32>
    %61 = vector.shape_cast %60 : vector<16xf32> to vector<16x1xf32>
    %62 = vector.broadcast %61 : vector<16x1xf32> to vector<16x8xf32>
    %63 = arith.divf %59, %62 : vector<16x8xf32>
    %c0_39 = arith.constant 0 : index
    %c0_40 = arith.constant 0 : index
    %c0_41 = arith.constant 0 : index
    %64 = vector.load %arg13[%c0_39, %c0_40, %c0_41] : memref<1x16x8xf32, #tpu.memory_space<vmem>>, vector<1x16x8xf32>
    %65 = vector.shape_cast %64 : vector<1x16x8xf32> to vector<16x8xf32>
    %66 = arith.addf %65, %63 : vector<16x8xf32>
    %c0_42 = arith.constant 0 : index
    %c0_43 = arith.constant 0 : index
    %c0_44 = arith.constant 0 : index
    %67 = vector.load %arg13[%c0_42, %c0_43, %c0_44] : memref<1x16x8xf32, #tpu.memory_space<vmem>>, vector<1x16x8xf32>
    %68 = vector.shape_cast %67 : vector<1x16x8xf32> to vector<16x8xf32>
    %69 = vector.shape_cast %66 : vector<16x8xf32> to vector<1x16x8xf32>
    tpu.vector_store %arg13[%c0_42, %c0_43, %c0_44], %69 {strides = array<i32>} : memref<1x16x8xf32, #tpu.memory_space<vmem>>, vector<1x16x8xf32>,
    %cst_45 = arith.constant dense<0.000000e+00> : vector<16x4xf32>
    %70 = tpu.matmul %63, %53, %cst_45 {dimension_numbers = #tpu.dot_dimension_numbers<[1], [0], [0], [1], [0, 0, 1, 1], [], []>} : vector<16x8xf32>, vector<8x4xf32>, vector<16x4xf32> -> vector<16x4xf32>
    %c0_46 = arith.constant 0 : index
    %c8_47 = arith.constant 8 : index
    %71 = vector.load %arg15[%c0_46, %c8_47] : memref<16x32xf32, #tpu.memory_space<vmem>>, vector<16x4xf32>
    tpu.vector_store %arg15[%c0_46, %c8_47], %70 {strides = array<i32>} : memref<16x32xf32, #tpu.memory_space<vmem>>, vector<16x4xf32>,
    %72 = vector.extract_strided_slice %11 {offsets = [0, 12], sizes = [16, 4], strides = [1, 1]} : vector<16x32xf32> to vector<16x4xf32>
    %c0_48 = arith.constant 0 : index
    %c12 = arith.constant 12 : index
    %73 = vector.load %arg14[%c0_48, %c12] : memref<8x64xf32, #tpu.memory_space<vmem>>, vector<8x4xf32>
    %c0_49 = arith.constant 0 : index
    %c44 = arith.constant 44 : index
    %74 = vector.load %arg14[%c0_49, %c44] : memref<8x64xf32, #tpu.memory_space<vmem>>, vector<8x4xf32>
    %cst_50 = arith.constant dense<0.000000e+00> : vector<16x8xf32>
    %75 = tpu.matmul %72, %73, %cst_50 {dimension_numbers = #tpu.dot_dimension_numbers<[1], [1], [0], [0], [0, 0, 1, 0], [], []>} : vector<16x4xf32>, vector<8x4xf32>, vector<16x8xf32> -> vector<16x8xf32>
    %cst_51 = arith.constant dense<0xFF800000> : vector<16xf32>
    %76 = vector.multi_reduction <maximumf>, %75, %cst_51 [1] : vector<16x8xf32> to vector<16xf32>
    %77 = vector.shape_cast %76 : vector<16xf32> to vector<16x1xf32>
    %78 = vector.broadcast %77 : vector<16x1xf32> to vector<16x8xf32>
    %79 = arith.subf %75, %78 : vector<16x8xf32>
    %80 = math.exp %79 : vector<16x8xf32>
    %cst_52 = arith.constant dense<0.000000e+00> : vector<16xf32>
    %81 = vector.multi_reduction <add>, %80, %cst_52 [1] : vector<16x8xf32> to vector<16xf32>
    %82 = vector.shape_cast %81 : vector<16xf32> to vector<16x1xf32>
    %83 = vector.broadcast %82 : vector<16x1xf32> to vector<16x8xf32>
    %84 = arith.divf %80, %83 : vector<16x8xf32>
    %c0_53 = arith.constant 0 : index
    %c0_54 = arith.constant 0 : index
    %c0_55 = arith.constant 0 : index
    %85 = vector.load %arg13[%c0_53, %c0_54, %c0_55] : memref<1x16x8xf32, #tpu.memory_space<vmem>>, vector<1x16x8xf32>
    %86 = vector.shape_cast %85 : vector<1x16x8xf32> to vector<16x8xf32>
    %87 = arith.addf %86, %84 : vector<16x8xf32>
    %c0_56 = arith.constant 0 : index
    %c0_57 = arith.constant 0 : index
    %c0_58 = arith.constant 0 : index
    %88 = vector.load %arg13[%c0_56, %c0_57, %c0_58] : memref<1x16x8xf32, #tpu.memory_space<vmem>>, vector<1x16x8xf32>
    %89 = vector.shape_cast %88 : vector<1x16x8xf32> to vector<16x8xf32>
    %90 = vector.shape_cast %87 : vector<16x8xf32> to vector<1x16x8xf32>
    tpu.vector_store %arg13[%c0_56, %c0_57, %c0_58], %90 {strides = array<i32>} : memref<1x16x8xf32, #tpu.memory_space<vmem>>, vector<1x16x8xf32>,
    %cst_59 = arith.constant dense<0.000000e+00> : vector<16x4xf32>
    %91 = tpu.matmul %84, %74, %cst_59 {dimension_numbers = #tpu.dot_dimension_numbers<[1], [0], [0], [1], [0, 0, 1, 1], [], []>} : vector<16x8xf32>, vector<8x4xf32>, vector<16x4xf32> -> vector<16x4xf32>
    %c0_60 = arith.constant 0 : index
    %c12_61 = arith.constant 12 : index
    %92 = vector.load %arg15[%c0_60, %c12_61] : memref<16x32xf32, #tpu.memory_space<vmem>>, vector<16x4xf32>
    tpu.vector_store %arg15[%c0_60, %c12_61], %91 {strides = array<i32>} : memref<16x32xf32, #tpu.memory_space<vmem>>, vector<16x4xf32>,
    %93 = vector.extract_strided_slice %11 {offsets = [0, 16], sizes = [16, 4], strides = [1, 1]} : vector<16x32xf32> to vector<16x4xf32>
    %c0_62 = arith.constant 0 : index
    %c16 = arith.constant 16 : index
    %94 = vector.load %arg14[%c0_62, %c16] : memref<8x64xf32, #tpu.memory_space<vmem>>, vector<8x4xf32>
    %c0_63 = arith.constant 0 : index
    %c48 = arith.constant 48 : index
    %95 = vector.load %arg14[%c0_63, %c48] : memref<8x64xf32, #tpu.memory_space<vmem>>, vector<8x4xf32>
    %cst_64 = arith.constant dense<0.000000e+00> : vector<16x8xf32>
    %96 = tpu.matmul %93, %94, %cst_64 {dimension_numbers = #tpu.dot_dimension_numbers<[1], [1], [0], [0], [0, 0, 1, 0], [], []>} : vector<16x4xf32>, vector<8x4xf32>, vector<16x8xf32> -> vector<16x8xf32>
    %cst_65 = arith.constant dense<0xFF800000> : vector<16xf32>
    %97 = vector.multi_reduction <maximumf>, %96, %cst_65 [1] : vector<16x8xf32> to vector<16xf32>
    %98 = vector.shape_cast %97 : vector<16xf32> to vector<16x1xf32>
    %99 = vector.broadcast %98 : vector<16x1xf32> to vector<16x8xf32>
    %100 = arith.subf %96, %99 : vector<16x8xf32>
    %101 = math.exp %100 : vector<16x8xf32>
    %cst_66 = arith.constant dense<0.000000e+00> : vector<16xf32>
    %102 = vector.multi_reduction <add>, %101, %cst_66 [1] : vector<16x8xf32> to vector<16xf32>
    %103 = vector.shape_cast %102 : vector<16xf32> to vector<16x1xf32>
    %104 = vector.broadcast %103 : vector<16x1xf32> to vector<16x8xf32>
    %105 = arith.divf %101, %104 : vector<16x8xf32>
    %c0_67 = arith.constant 0 : index
    %c0_68 = arith.constant 0 : index
    %c0_69 = arith.constant 0 : index
    %106 = vector.load %arg13[%c0_67, %c0_68, %c0_69] : memref<1x16x8xf32, #tpu.memory_space<vmem>>, vector<1x16x8xf32>
    %107 = vector.shape_cast %106 : vector<1x16x8xf32> to vector<16x8xf32>
    %108 = arith.addf %107, %105 : vector<16x8xf32>
    %c0_70 = arith.constant 0 : index
    %c0_71 = arith.constant 0 : index
    %c0_72 = arith.constant 0 : index
    %109 = vector.load %arg13[%c0_70, %c0_71, %c0_72] : memref<1x16x8xf32, #tpu.memory_space<vmem>>, vector<1x16x8xf32>
    %110 = vector.shape_cast %109 : vector<1x16x8xf32> to vector<16x8xf32>
    %111 = vector.shape_cast %108 : vector<16x8xf32> to vector<1x16x8xf32>
    tpu.vector_store %arg13[%c0_70, %c0_71, %c0_72], %111 {strides = array<i32>} : memref<1x16x8xf32, #tpu.memory_space<vmem>>, vector<1x16x8xf32>,
    %cst_73 = arith.constant dense<0.000000e+00> : vector<16x4xf32>
    %112 = tpu.matmul %105, %95, %cst_73 {dimension_numbers = #tpu.dot_dimension_numbers<[1], [0], [0], [1], [0, 0, 1, 1], [], []>} : vector<16x8xf32>, vector<8x4xf32>, vector<16x4xf32> -> vector<16x4xf32>
    %c0_74 = arith.constant 0 : index
    %c16_75 = arith.constant 16 : index
    %113 = vector.load %arg15[%c0_74, %c16_75] : memref<16x32xf32, #tpu.memory_space<vmem>>, vector<16x4xf32>
    tpu.vector_store %arg15[%c0_74, %c16_75], %112 {strides = array<i32>} : memref<16x32xf32, #tpu.memory_space<vmem>>, vector<16x4xf32>,
    %114 = vector.extract_strided_slice %11 {offsets = [0, 20], sizes = [16, 4], strides = [1, 1]} : vector<16x32xf32> to vector<16x4xf32>
    %c0_76 = arith.constant 0 : index
    %c20 = arith.constant 20 : index
    %115 = vector.load %arg14[%c0_76, %c20] : memref<8x64xf32, #tpu.memory_space<vmem>>, vector<8x4xf32>
    %c0_77 = arith.constant 0 : index
    %c52 = arith.constant 52 : index
    %116 = vector.load %arg14[%c0_77, %c52] : memref<8x64xf32, #tpu.memory_space<vmem>>, vector<8x4xf32>
    %cst_78 = arith.constant dense<0.000000e+00> : vector<16x8xf32>
    %117 = tpu.matmul %114, %115, %cst_78 {dimension_numbers = #tpu.dot_dimension_numbers<[1], [1], [0], [0], [0, 0, 1, 0], [], []>} : vector<16x4xf32>, vector<8x4xf32>, vector<16x8xf32> -> vector<16x8xf32>
    %cst_79 = arith.constant dense<0xFF800000> : vector<16xf32>
    %118 = vector.multi_reduction <maximumf>, %117, %cst_79 [1] : vector<16x8xf32> to vector<16xf32>
    %119 = vector.shape_cast %118 : vector<16xf32> to vector<16x1xf32>
    %120 = vector.broadcast %119 : vector<16x1xf32> to vector<16x8xf32>
    %121 = arith.subf %117, %120 : vector<16x8xf32>
    %122 = math.exp %121 : vector<16x8xf32>
    %cst_80 = arith.constant dense<0.000000e+00> : vector<16xf32>
    %123 = vector.multi_reduction <add>, %122, %cst_80 [1] : vector<16x8xf32> to vector<16xf32>
    %124 = vector.shape_cast %123 : vector<16xf32> to vector<16x1xf32>
    %125 = vector.broadcast %124 : vector<16x1xf32> to vector<16x8xf32>
    %126 = arith.divf %122, %125 : vector<16x8xf32>
    %c0_81 = arith.constant 0 : index
    %c0_82 = arith.constant 0 : index
    %c0_83 = arith.constant 0 : index
    %127 = vector.load %arg13[%c0_81, %c0_82, %c0_83] : memref<1x16x8xf32, #tpu.memory_space<vmem>>, vector<1x16x8xf32>
    %128 = vector.shape_cast %127 : vector<1x16x8xf32> to vector<16x8xf32>
    %129 = arith.addf %128, %126 : vector<16x8xf32>
    %c0_84 = arith.constant 0 : index
    %c0_85 = arith.constant 0 : index
    %c0_86 = arith.constant 0 : index
    %130 = vector.load %arg13[%c0_84, %c0_85, %c0_86] : memref<1x16x8xf32, #tpu.memory_space<vmem>>, vector<1x16x8xf32>
    %131 = vector.shape_cast %130 : vector<1x16x8xf32> to vector<16x8xf32>
    %132 = vector.shape_cast %129 : vector<16x8xf32> to vector<1x16x8xf32>
    tpu.vector_store %arg13[%c0_84, %c0_85, %c0_86], %132 {strides = array<i32>} : memref<1x16x8xf32, #tpu.memory_space<vmem>>, vector<1x16x8xf32>,
    %cst_87 = arith.constant dense<0.000000e+00> : vector<16x4xf32>
    %133 = tpu.matmul %126, %116, %cst_87 {dimension_numbers = #tpu.dot_dimension_numbers<[1], [0], [0], [1], [0, 0, 1, 1], [], []>} : vector<16x8xf32>, vector<8x4xf32>, vector<16x4xf32> -> vector<16x4xf32>
    %c0_88 = arith.constant 0 : index
    %c20_89 = arith.constant 20 : index
    %134 = vector.load %arg15[%c0_88, %c20_89] : memref<16x32xf32, #tpu.memory_space<vmem>>, vector<16x4xf32>
    tpu.vector_store %arg15[%c0_88, %c20_89], %133 {strides = array<i32>} : memref<16x32xf32, #tpu.memory_space<vmem>>, vector<16x4xf32>,
    %135 = vector.extract_strided_slice %11 {offsets = [0, 24], sizes = [16, 4], strides = [1, 1]} : vector<16x32xf32> to vector<16x4xf32>
    %c0_90 = arith.constant 0 : index
    %c24 = arith.constant 24 : index
    %136 = vector.load %arg14[%c0_90, %c24] : memref<8x64xf32, #tpu.memory_space<vmem>>, vector<8x4xf32>
    %c0_91 = arith.constant 0 : index
    %c56 = arith.constant 56 : index
    %137 = vector.load %arg14[%c0_91, %c56] : memref<8x64xf32, #tpu.memory_space<vmem>>, vector<8x4xf32>
    %cst_92 = arith.constant dense<0.000000e+00> : vector<16x8xf32>
    %138 = tpu.matmul %135, %136, %cst_92 {dimension_numbers = #tpu.dot_dimension_numbers<[1], [1], [0], [0], [0, 0, 1, 0], [], []>} : vector<16x4xf32>, vector<8x4xf32>, vector<16x8xf32> -> vector<16x8xf32>
    %cst_93 = arith.constant dense<0xFF800000> : vector<16xf32>
    %139 = vector.multi_reduction <maximumf>, %138, %cst_93 [1] : vector<16x8xf32> to vector<16xf32>
    %140 = vector.shape_cast %139 : vector<16xf32> to vector<16x1xf32>
    %141 = vector.broadcast %140 : vector<16x1xf32> to vector<16x8xf32>
    %142 = arith.subf %138, %141 : vector<16x8xf32>
    %143 = math.exp %142 : vector<16x8xf32>
    %cst_94 = arith.constant dense<0.000000e+00> : vector<16xf32>
    %144 = vector.multi_reduction <add>, %143, %cst_94 [1] : vector<16x8xf32> to vector<16xf32>
    %145 = vector.shape_cast %144 : vector<16xf32> to vector<16x1xf32>
    %146 = vector.broadcast %145 : vector<16x1xf32> to vector<16x8xf32>
    %147 = arith.divf %143, %146 : vector<16x8xf32>
    %c0_95 = arith.constant 0 : index
    %c0_96 = arith.constant 0 : index
    %c0_97 = arith.constant 0 : index
    %148 = vector.load %arg13[%c0_95, %c0_96, %c0_97] : memref<1x16x8xf32, #tpu.memory_space<vmem>>, vector<1x16x8xf32>
    %149 = vector.shape_cast %148 : vector<1x16x8xf32> to vector<16x8xf32>
    %150 = arith.addf %149, %147 : vector<16x8xf32>
    %c0_98 = arith.constant 0 : index
    %c0_99 = arith.constant 0 : index
    %c0_100 = arith.constant 0 : index
    %151 = vector.load %arg13[%c0_98, %c0_99, %c0_100] : memref<1x16x8xf32, #tpu.memory_space<vmem>>, vector<1x16x8xf32>
    %152 = vector.shape_cast %151 : vector<1x16x8xf32> to vector<16x8xf32>
    %153 = vector.shape_cast %150 : vector<16x8xf32> to vector<1x16x8xf32>
    tpu.vector_store %arg13[%c0_98, %c0_99, %c0_100], %153 {strides = array<i32>} : memref<1x16x8xf32, #tpu.memory_space<vmem>>, vector<1x16x8xf32>,
    %cst_101 = arith.constant dense<0.000000e+00> : vector<16x4xf32>
    %154 = tpu.matmul %147, %137, %cst_101 {dimension_numbers = #tpu.dot_dimension_numbers<[1], [0], [0], [1], [0, 0, 1, 1], [], []>} : vector<16x8xf32>, vector<8x4xf32>, vector<16x4xf32> -> vector<16x4xf32>
    %c0_102 = arith.constant 0 : index
    %c24_103 = arith.constant 24 : index
    %155 = vector.load %arg15[%c0_102, %c24_103] : memref<16x32xf32, #tpu.memory_space<vmem>>, vector<16x4xf32>
    tpu.vector_store %arg15[%c0_102, %c24_103], %154 {strides = array<i32>} : memref<16x32xf32, #tpu.memory_space<vmem>>, vector<16x4xf32>,
    %156 = vector.extract_strided_slice %11 {offsets = [0, 28], sizes = [16, 4], strides = [1, 1]} : vector<16x32xf32> to vector<16x4xf32>
    %c0_104 = arith.constant 0 : index
    %c28 = arith.constant 28 : index
    %157 = vector.load %arg14[%c0_104, %c28] : memref<8x64xf32, #tpu.memory_space<vmem>>, vector<8x4xf32>
    %c0_105 = arith.constant 0 : index
    %c60 = arith.constant 60 : index
    %158 = vector.load %arg14[%c0_105, %c60] : memref<8x64xf32, #tpu.memory_space<vmem>>, vector<8x4xf32>
    %cst_106 = arith.constant dense<0.000000e+00> : vector<16x8xf32>
    %159 = tpu.matmul %156, %157, %cst_106 {dimension_numbers = #tpu.dot_dimension_numbers<[1], [1], [0], [0], [0, 0, 1, 0], [], []>} : vector<16x4xf32>, vector<8x4xf32>, vector<16x8xf32> -> vector<16x8xf32>
    %cst_107 = arith.constant dense<0xFF800000> : vector<16xf32>
    %160 = vector.multi_reduction <maximumf>, %159, %cst_107 [1] : vector<16x8xf32> to vector<16xf32>
    %161 = vector.shape_cast %160 : vector<16xf32> to vector<16x1xf32>
    %162 = vector.broadcast %161 : vector<16x1xf32> to vector<16x8xf32>
    %163 = arith.subf %159, %162 : vector<16x8xf32>
    %164 = math.exp %163 : vector<16x8xf32>
    %cst_108 = arith.constant dense<0.000000e+00> : vector<16xf32>
    %165 = vector.multi_reduction <add>, %164, %cst_108 [1] : vector<16x8xf32> to vector<16xf32>
    %166 = vector.shape_cast %165 : vector<16xf32> to vector<16x1xf32>
    %167 = vector.broadcast %166 : vector<16x1xf32> to vector<16x8xf32>
    %168 = arith.divf %164, %167 : vector<16x8xf32>
    %c0_109 = arith.constant 0 : index
    %c0_110 = arith.constant 0 : index
    %c0_111 = arith.constant 0 : index
    %169 = vector.load %arg13[%c0_109, %c0_110, %c0_111] : memref<1x16x8xf32, #tpu.memory_space<vmem>>, vector<1x16x8xf32>
    %170 = vector.shape_cast %169 : vector<1x16x8xf32> to vector<16x8xf32>
    %171 = arith.addf %170, %168 : vector<16x8xf32>
    %c0_112 = arith.constant 0 : index
    %c0_113 = arith.constant 0 : index
    %c0_114 = arith.constant 0 : index
    %172 = vector.load %arg13[%c0_112, %c0_113, %c0_114] : memref<1x16x8xf32, #tpu.memory_space<vmem>>, vector<1x16x8xf32>
    %173 = vector.shape_cast %172 : vector<1x16x8xf32> to vector<16x8xf32>
    %174 = vector.shape_cast %171 : vector<16x8xf32> to vector<1x16x8xf32>
    tpu.vector_store %arg13[%c0_112, %c0_113, %c0_114], %174 {strides = array<i32>} : memref<1x16x8xf32, #tpu.memory_space<vmem>>, vector<1x16x8xf32>,
    %cst_115 = arith.constant dense<0.000000e+00> : vector<16x4xf32>
    %175 = tpu.matmul %168, %158, %cst_115 {dimension_numbers = #tpu.dot_dimension_numbers<[1], [0], [0], [1], [0, 0, 1, 1], [], []>} : vector<16x8xf32>, vector<8x4xf32>, vector<16x4xf32> -> vector<16x4xf32>
    %c0_116 = arith.constant 0 : index
    %c28_117 = arith.constant 28 : index
    %176 = vector.load %arg15[%c0_116, %c28_117] : memref<16x32xf32, #tpu.memory_space<vmem>>, vector<16x4xf32>
    tpu.vector_store %arg15[%c0_116, %c28_117], %175 {strides = array<i32>} : memref<16x32xf32, #tpu.memory_space<vmem>>, vector<16x4xf32>,
    %c0_118 = arith.constant 0 : index
    %c0_119 = arith.constant 0 : index
    %177 = vector.load %arg15[%c0_118, %c0_119] : memref<16x32xf32, #tpu.memory_space<vmem>>, vector<16x32xf32>
    %c0_120 = arith.constant 0 : index
    %c0_121 = arith.constant 0 : index
    %178 = vector.load %arg8[%c0_120, %c0_121] : memref<32x32xf32, #tpu.memory_space<vmem>>, vector<32x32xf32>
    %cst_122 = arith.constant dense<0.000000e+00> : vector<16x32xf32>
    %179 = tpu.matmul %177, %178, %cst_122 {dimension_numbers = #tpu.dot_dimension_numbers<[1], [0], [0], [1], [0, 0, 1, 1], [], []>} : vector<16x32xf32>, vector<32x32xf32>, vector<16x32xf32> -> vector<16x32xf32>
    %c0_123 = arith.constant 0 : index
    %c0_124 = arith.constant 0 : index
    %180 = vector.load %arg9[%c0_123, %c0_124] : memref<1x32xf32, #tpu.memory_space<vmem>>, vector<1x32xf32>
    %181 = vector.broadcast %180 : vector<1x32xf32> to vector<16x32xf32>
    %182 = arith.addf %179, %181 : vector<16x32xf32>
    %183 = arith.addf %4, %182 : vector<16x32xf32>
    %cst_125 = arith.constant dense<0.000000e+00> : vector<16xf32>
    %184 = vector.multi_reduction <add>, %183, %cst_125 [1] : vector<16x32xf32> to vector<16xf32>
    %185 = vector.shape_cast %184 : vector<16xf32> to vector<16x1xf32>
    %cst_126 = arith.constant 3.200000e+01 : f32
    %186 = vector.broadcast %cst_126 : f32 to vector<16x1xf32>
    %187 = arith.divf %185, %186 : vector<16x1xf32>
    %188 = vector.broadcast %187 : vector<16x1xf32> to vector<16x32xf32>
    %189 = arith.subf %183, %188 : vector<16x32xf32>
    %190 = arith.mulf %189, %189 : vector<16x32xf32>
    %cst_127 = arith.constant dense<0.000000e+00> : vector<16xf32>
    %191 = vector.multi_reduction <add>, %190, %cst_127 [1] : vector<16x32xf32> to vector<16xf32>
    %192 = vector.shape_cast %191 : vector<16xf32> to vector<16x1xf32>
    %cst_128 = arith.constant 3.200000e+01 : f32
    %193 = vector.broadcast %cst_128 : f32 to vector<16x1xf32>
    %194 = arith.divf %192, %193 : vector<16x1xf32>
    %cst_129 = arith.constant 9.99999974E-6 : f32
    %195 = vector.broadcast %cst_129 : f32 to vector<16x1xf32>
    %196 = arith.addf %194, %195 : vector<16x1xf32>
    %197 = math.rsqrt %196 : vector<16x1xf32>
    %198 = vector.broadcast %197 : vector<16x1xf32> to vector<16x32xf32>
    %199 = arith.mulf %189, %198 : vector<16x32xf32>
    %c0_130 = arith.constant 0 : index
    %c0_131 = arith.constant 0 : index
    %200 = vector.load %arg10[%c0_130, %c0_131] : memref<1x32xf32, #tpu.memory_space<vmem>>, vector<1x32xf32>
    %201 = vector.broadcast %200 : vector<1x32xf32> to vector<16x32xf32>
    %202 = arith.mulf %199, %201 : vector<16x32xf32>
    %c0_132 = arith.constant 0 : index
    %c0_133 = arith.constant 0 : index
    %203 = vector.load %arg11[%c0_132, %c0_133] : memref<1x32xf32, #tpu.memory_space<vmem>>, vector<1x32xf32>
    %204 = vector.broadcast %203 : vector<1x32xf32> to vector<16x32xf32>
    %205 = arith.addf %202, %204 : vector<16x32xf32>
    %c0_134 = arith.constant 0 : index
    %c0_135 = arith.constant 0 : index
    %c0_136 = arith.constant 0 : index
    %206 = vector.load %arg12[%c0_134, %c0_135, %c0_136] : memref<1x16x32xf32, #tpu.memory_space<vmem>>, vector<1x16x32xf32>
    %207 = vector.shape_cast %206 : vector<1x16x32xf32> to vector<16x32xf32>
    %208 = vector.shape_cast %205 : vector<16x32xf32> to vector<1x16x32xf32>
    tpu.vector_store %arg12[%c0_134, %c0_135, %c0_136], %208 {strides = array<i32>} : memref<1x16x32xf32, #tpu.memory_space<vmem>>, vector<1x16x32xf32>,
    %c0_137 = arith.constant 0 : index
    %c0_138 = arith.constant 0 : index
    %c0_139 = arith.constant 0 : index
    %209 = vector.load %arg13[%c0_137, %c0_138, %c0_139] : memref<1x16x8xf32, #tpu.memory_space<vmem>>, vector<1x16x8xf32>
    %210 = vector.shape_cast %209 : vector<1x16x8xf32> to vector<16x8xf32>
    %cst_140 = arith.constant 1.250000e-01 : f32
    %211 = vector.broadcast %cst_140 : f32 to vector<16x8xf32>
    %212 = arith.mulf %210, %211 : vector<16x8xf32>
    %c0_141 = arith.constant 0 : index
    %c0_142 = arith.constant 0 : index
    %c0_143 = arith.constant 0 : index
    %213 = vector.load %arg13[%c0_141, %c0_142, %c0_143] : memref<1x16x8xf32, #tpu.memory_space<vmem>>, vector<1x16x8xf32>
    %214 = vector.shape_cast %213 : vector<1x16x8xf32> to vector<16x8xf32>
    %215 = vector.shape_cast %212 : vector<16x8xf32> to vector<1x16x8xf32>
    tpu.vector_store %arg13[%c0_141, %c0_142, %c0_143], %215 {strides = array<i32>} : memref<1x16x8xf32, #tpu.memory_space<vmem>>, vector<1x16x8xf32>,
    return
  }
  func.func @transform_0(%arg0: i32, %arg1: i32) -> (i32, i32, i32) {
    %c0_i32 = arith.constant 0 : i32
    %c0_i32_0 = arith.constant 0 : i32
    return %arg0, %arg1, %c0_i32 : i32, i32, i32
  }
  func.func @transform_1(%arg0: i32, %arg1: i32) -> (i32, i32, i32) {
    %c0_i32 = arith.constant 0 : i32
    %c0_i32_0 = arith.constant 0 : i32
    %c0_i32_1 = arith.constant 0 : i32
    return %arg0, %c0_i32, %c0_i32_0 : i32, i32, i32
  }
  func.func @transform_2(%arg0: i32, %arg1: i32) -> (i32, i32) {
    %c0_i32 = arith.constant 0 : i32
    %c0_i32_0 = arith.constant 0 : i32
    %c0_i32_1 = arith.constant 0 : i32
    return %c0_i32, %c0_i32_0 : i32, i32
  }
  func.func @transform_3(%arg0: i32, %arg1: i32) -> (i32, i32) {
    %c0_i32 = arith.constant 0 : i32
    %c0_i32_0 = arith.constant 0 : i32
    %c0_i32_1 = arith.constant 0 : i32
    return %c0_i32, %c0_i32_0 : i32, i32
  }
  func.func @transform_4(%arg0: i32, %arg1: i32) -> (i32, i32) {
    %c0_i32 = arith.constant 0 : i32
    %c0_i32_0 = arith.constant 0 : i32
    %c0_i32_1 = arith.constant 0 : i32
    return %c0_i32, %c0_i32_0 : i32, i32
  }
  func.func @transform_5(%arg0: i32, %arg1: i32) -> (i32, i32) {
    %c0_i32 = arith.constant 0 : i32
    %c0_i32_0 = arith.constant 0 : i32
    %c0_i32_1 = arith.constant 0 : i32
    return %c0_i32, %c0_i32_0 : i32, i32
  }
  func.func @transform_6(%arg0: i32, %arg1: i32) -> (i32, i32) {
    %c0_i32 = arith.constant 0 : i32
    %c0_i32_0 = arith.constant 0 : i32
    %c0_i32_1 = arith.constant 0 : i32
    return %c0_i32, %c0_i32_0 : i32, i32
  }
  func.func @transform_7(%arg0: i32, %arg1: i32) -> (i32, i32) {
    %c0_i32 = arith.constant 0 : i32
    %c0_i32_0 = arith.constant 0 : i32
    %c0_i32_1 = arith.constant 0 : i32
    return %c0_i32, %c0_i32_0 : i32, i32
  }
  func.func @transform_8(%arg0: i32, %arg1: i32) -> (i32, i32) {
    %c0_i32 = arith.constant 0 : i32
    %c0_i32_0 = arith.constant 0 : i32
    %c0_i32_1 = arith.constant 0 : i32
    return %c0_i32, %c0_i32_0 : i32, i32
  }
  func.func @transform_9(%arg0: i32, %arg1: i32) -> (i32, i32) {
    %c0_i32 = arith.constant 0 : i32
    %c0_i32_0 = arith.constant 0 : i32
    %c0_i32_1 = arith.constant 0 : i32
    return %c0_i32, %c0_i32_0 : i32, i32
  }
  func.func @transform_10(%arg0: i32, %arg1: i32) -> (i32, i32, i32) {
    %c0_i32 = arith.constant 0 : i32
    %c0_i32_0 = arith.constant 0 : i32
    return %arg0, %arg1, %c0_i32 : i32, i32, i32
  }
  func.func @transform_11(%arg0: i32, %arg1: i32) -> (i32, i32, i32) {
    %c0_i32 = arith.constant 0 : i32
    %c0_i32_0 = arith.constant 0 : i32
    return %arg0, %arg1, %c0_i32 : i32, i32, i32
  }
}

</mosaic_0001>

<llo_original>
// kernel: tpu_custom_call.1
$region0: #{tpu_custom_call.1}
  #allocation0 [shape = 'u32[]', space=smem, size = 0x4, offset = 0x4, fixed_abs, tag = 'smem constant byte address 0x4 - core index']
  #allocation1 [shape = 'u32[144,128]{1,0:T(1,128)}', space=vmem, size = 0x12000, scoped, tag = 'internal scratch']
  #allocation2 [shape = 'f32[8,64]{1,0:T(8,128)}', space=vmem, size = 0x1000, scoped, tag = 'scratch operand']
  #allocation3 [shape = 'f32[16,32]{1,0:T(8,128)}', space=vmem, size = 0x2000, scoped, tag = 'scratch operand']
  %s0 = inlined_call_operand.hbm [shape: f32[2,16,32], index: 0, kind: input, shape index: {}]
  %s1 = inlined_call_operand.hbm [shape: f32[2,8,32], index: 1, kind: input, shape index: {}]
  %s2 = inlined_call_operand.hbm [shape: f32[32,32], index: 2, kind: input, shape index: {}]
  %s3 = inlined_call_operand.hbm [shape: f32[32,64], index: 3, kind: input, shape index: {}]
  %s4 = inlined_call_operand.vmem [shape: f32[1,32], index: 4, kind: input, shape index: {}]
  %s5 = inlined_call_operand.vmem [shape: f32[1,64], index: 5, kind: input, shape index: {}]
  %s6 = inlined_call_operand.hbm [shape: f32[32,32], index: 6, kind: input, shape index: {}]
  %s7 = inlined_call_operand.vmem [shape: f32[1,32], index: 7, kind: input, shape index: {}]
  %s8 = inlined_call_operand.vmem [shape: f32[1,32], index: 8, kind: input, shape index: {}]
  %s9 = inlined_call_operand.vmem [shape: f32[1,32], index: 9, kind: input, shape index: {}]
  %s10 = inlined_call_operand.hbm [shape: f32[2,16,32], index: 10, kind: output, shape index: {0}]
  %s11 = inlined_call_operand.vmem [shape: f32[2,16,8], index: 11, kind: output, shape index: {1}]
  %12 = xla_tuple %s10, %s11
  %s13 = sld [smem:[#allocation0]]
  $region105: #{tpu_custom_call.1} parent=0
    _
  %s15 = ssub.s32 1, %s13
  %s16 = scalar_select 0, %s15, %s13
  $region1: #{tpu_custom_call.1} parent=0
    #allocation4 [shape = 'u8[16384]{0}', space=vmem, size = 0x4000, scoped, tag = 'input window, operand 0']
    #allocation5 [shape = 's32[2]{0}', space=sflag, size = 0x8, scoped, tag = 'scoped memory for tpu_custom_call.1']
    #allocation6 [shape = 's32[2]{0}', space=sflag, size = 0x8, scoped, tag = 'scoped memory for tpu_custom_call.1']
    #allocation7 [shape = 'u8[8192]{0}', space=vmem, size = 0x2000, scoped, tag = 'input window, operand 1']
    #allocation8 [shape = 's32[2]{0}', space=sflag, size = 0x8, scoped, tag = 'scoped memory for tpu_custom_call.1']
    #allocation9 [shape = 'u8[16384]{0}', space=vmem, size = 0x4000, scoped, tag = 'input window, operand 2, single buffered']
    #allocation10 [shape = 'u8[16384]{0}', space=vmem, size = 0x4000, scoped, tag = 'input window, operand 3, single buffered']
    #allocation11 [shape = 's32[1]{0}', space=sflag, size = 0x4, scoped, tag = 'scoped memory for tpu_custom_call.1']
    #allocation12 [shape = 'u8[16384]{0}', space=vmem, size = 0x4000, scoped, tag = 'input window, operand 6, single buffered']
    #allocation13 [shape = 'u8[16384]{0}', space=vmem, size = 0x4000, scoped, tag = 'output window, operand 0']
    %17 = vsyncpa [#allocation5], 0
    %s18 = scalar_lea.sflag [#allocation5], 1
    %19 = vsyncpa %s18, 0
    %20 = vsyncpa [#allocation8], 0
    %s21 = scalar_lea.sflag [#allocation8], 1
    %22 = vsyncpa %s21, 0
    %23 = vsyncpa [#allocation11], 0
    %24 = vsyncpa [#allocation6], 0
    %s25 = scalar_lea.sflag [#allocation6], 1
    %26 = vsyncpa %s25, 0
    loop: start=0, step=1, limit=4
    $region2: #{tpu_custom_call.1} parent=1 // loop_pre_header
      _
    $region3: #{tpu_custom_call.1} parent=1 // loop_header
      %s28 = sphi 0, %s32
      %p29 = scmp.ge.s32.totalorder %s28, 4
      %s35 = sphi 0, %s47
      %s36 = sphi 0, %s43
      %s37 = sphi 0, %s35
      %s38 = sphi 0, %s36
      %s39 = sphi 0, %s37
      %s40 = sphi 0, %s38
      %s52 = sphi 0, %s54
      %s55 = sphi 0, %s52
      %s56 = sphi 0, %s55
      %s72 = sphi 0, %s56
      %s78 = sphi 0, %s80
      %s81 = sphi 0, %s78
      %s82 = sphi 0, %s81
      %s98 = sphi 0, %s82
      %s102 = sphi 0, %s102
      %s104 = sphi 0, %s102
      %s105 = sphi 0, %s104
      %s119 = sphi 0, %s105
      %s123 = sphi 0, %s123
      %s125 = sphi 0, %s123
      %s126 = sphi 0, %s125
      %s140 = sphi 0, %s126
      %s144 = sphi 0, %s144
      %s146 = sphi 0, %s144
      %s147 = sphi 0, %s146
      %s161 = sphi 0, %s147
      %s165 = sphi 0, %s165
      %s167 = sphi 0, %s165
      %s168 = sphi 0, %s167
      %s182 = sphi 0, %s168
      %s186 = sphi 0, %s186
      %s188 = sphi 0, %s186
      %s189 = sphi 0, %s188
      %s203 = sphi 0, %s189
      %s207 = sphi 0, %s207
      %s209 = sphi 0, %s207
      %s210 = sphi 0, %s209
      %s224 = sphi 0, %s210
      %s228 = sphi 0, %s228
      %s230 = sphi 0, %s228
      %s231 = sphi 0, %s230
      %s245 = sphi 0, %s231
      %s249 = sphi 0, %s249
      %s251 = sphi 0, %s249
      %s252 = sphi 0, %s251
      %s266 = sphi 0, %s252
      %s274 = sphi 0, %s276
      %s277 = sphi 0, %s274
      %s278 = sphi 0, %s277
      %s294 = sphi 0, %s278
      %s302 = sphi 0, %s304
      %s305 = sphi 0, %s302
      %s306 = sphi 0, %s305
      %s322 = sphi 0, %s306
    $region4: #{tpu_custom_call.1} parent=1 // loop_header_branch
      %31 = sbr.rel (%p29) target = $region8
    $region5: #{tpu_custom_call.1} parent=1 // loop_body
      %s33 = ssub.s32 %s28, 1
      %s34 = ssub.s32 %s28, 2
      %s41 = sadd.s32 1, %s36
      %p42 = scmp.ge.s32.totalorder %s41, 1
      %s43 = scalar_select %p42, 0, %s41
      %s44 = sadd.s32 1, %s35
      %s45 = scalar_select %p42, %s44, %s35
      %p46 = scmp.ge.s32.totalorder %s45, 2
      %s47 = scalar_select %p46, 0, %s45
      %s48 = ssub.s32 %s35, %s47
      %s49 = ssub.s32 %s36, %s43
      %s50 = sor.u32 %s48, %s49
      %p51 = scmp.eq.s32.totalorder %s50, 0
      %s53 = sadd.s32 %s52, 1
      %s54 = scalar_select %p51, %s52, %s53
      %p57 = pneg %p51
      %p58 = scmp.eq.s32.totalorder %s28, 1
      %p59 = por %p57, %p58
      %p60 = scmp.ne.s32.totalorder %s52, %s55
      %p61 = scmp.eq.s32.totalorder %s28, 0
      %p62 = por %p60, %p61
      %p63 = scmp.ne.s32.totalorder %s52, %s55
      %p64 = scmp.eq.s32.totalorder %s33, 1
      %p65 = por %p63, %p64
      %p66 = scmp.ne.s32.totalorder %s55, %s56
      %p67 = scmp.eq.s32.totalorder %s33, 0
      %p68 = por %p66, %p67
      %p69 = scmp.ne.s32.totalorder %s55, %s56
      %p70 = scmp.eq.s32.totalorder %s34, 1
      %p71 = por %p69, %p70
      %p73 = scmp.ne.s32.totalorder %s56, %s72
      %p74 = scmp.eq.s32.totalorder %s34, 0
      %p75 = por %p73, %p74
      %s76 = ssub.s32 %s35, %s47
      %p77 = scmp.eq.s32.totalorder %s76, 0
      %s79 = sadd.s32 %s78, 1
      %s80 = scalar_select %p77, %s78, %s79
      %p83 = pneg %p77
      %p84 = scmp.eq.s32.totalorder %s28, 1
      %p85 = por %p83, %p84
      %p86 = scmp.ne.s32.totalorder %s78, %s81
      %p87 = scmp.eq.s32.totalorder %s28, 0
      %p88 = por %p86, %p87
      %p89 = scmp.ne.s32.totalorder %s78, %s81
      %p90 = scmp.eq.s32.totalorder %s33, 1
      %p91 = por %p89, %p90
      %p92 = scmp.ne.s32.totalorder %s81, %s82
      %p93 = scmp.eq.s32.totalorder %s33, 0
      %p94 = por %p92, %p93
      %p95 = scmp.ne.s32.totalorder %s81, %s82
      %p96 = scmp.eq.s32.totalorder %s34, 1
      %p97 = por %p95, %p96
      %p99 = scmp.ne.s32.totalorder %s82, %s98
      %p100 = scmp.eq.s32.totalorder %s34, 0
      %p101 = por %p99, %p100
      %s103 = sadd.s32 %s102, 1
      %p106 = scmp.eq.s32.totalorder %s28, 1
      %p107 = scmp.ne.s32.totalorder %s102, %s104
      %p108 = scmp.eq.s32.totalorder %s28, 0
      %p109 = por %p107, %p108
      %p110 = scmp.ne.s32.totalorder %s102, %s104
      %p111 = scmp.eq.s32.totalorder %s33, 1
      %p112 = por %p110, %p111
      %p113 = scmp.ne.s32.totalorder %s104, %s105
      %p114 = scmp.eq.s32.totalorder %s33, 0
      %p115 = por %p113, %p114
      %p116 = scmp.ne.s32.totalorder %s104, %s105
      %p117 = scmp.eq.s32.totalorder %s34, 1
      %p118 = por %p116, %p117
      %p120 = scmp.ne.s32.totalorder %s105, %s119
      %p121 = scmp.eq.s32.totalorder %s34, 0
      %p122 = por %p120, %p121
      %s124 = sadd.s32 %s123, 1
      %p127 = scmp.eq.s32.totalorder %s28, 1
      %p128 = scmp.ne.s32.totalorder %s123, %s125
      %p129 = scmp.eq.s32.totalorder %s28, 0
      %p130 = por %p128, %p129
      %p131 = scmp.ne.s32.totalorder %s123, %s125
      %p132 = scmp.eq.s32.totalorder %s33, 1
      %p133 = por %p131, %p132
      %p134 = scmp.ne.s32.totalorder %s125, %s126
      %p135 = scmp.eq.s32.totalorder %s33, 0
      %p136 = por %p134, %p135
      %p137 = scmp.ne.s32.totalorder %s125, %s126
      %p138 = scmp.eq.s32.totalorder %s34, 1
      %p139 = por %p137, %p138
      %p141 = scmp.ne.s32.totalorder %s126, %s140
      %p142 = scmp.eq.s32.totalorder %s34, 0
      %p143 = por %p141, %p142
      %s145 = sadd.s32 %s144, 1
      %p148 = scmp.eq.s32.totalorder %s28, 1
      %p149 = scmp.ne.s32.totalorder %s144, %s146
      %p150 = scmp.eq.s32.totalorder %s28, 0
      %p151 = por %p149, %p150
      %p152 = scmp.ne.s32.totalorder %s144, %s146
      %p153 = scmp.eq.s32.totalorder %s33, 1
      %p154 = por %p152, %p153
      %p155 = scmp.ne.s32.totalorder %s146, %s147
      %p156 = scmp.eq.s32.totalorder %s33, 0
      %p157 = por %p155, %p156
      %p158 = scmp.ne.s32.totalorder %s146, %s147
      %p159 = scmp.eq.s32.totalorder %s34, 1
      %p160 = por %p158, %p159
      %p162 = scmp.ne.s32.totalorder %s147, %s161
      %p163 = scmp.eq.s32.totalorder %s34, 0
      %p164 = por %p162, %p163
      %s166 = sadd.s32 %s165, 1
      %p169 = scmp.eq.s32.totalorder %s28, 1
      %p170 = scmp.ne.s32.totalorder %s165, %s167
      %p171 = scmp.eq.s32.totalorder %s28, 0
      %p172 = por %p170, %p171
      %p173 = scmp.ne.s32.totalorder %s165, %s167
      %p174 = scmp.eq.s32.totalorder %s33, 1
      %p175 = por %p173, %p174
      %p176 = scmp.ne.s32.totalorder %s167, %s168
      %p177 = scmp.eq.s32.totalorder %s33, 0
      %p178 = por %p176, %p177
      %p179 = scmp.ne.s32.totalorder %s167, %s168
      %p180 = scmp.eq.s32.totalorder %s34, 1
      %p181 = por %p179, %p180
      %p183 = scmp.ne.s32.totalorder %s168, %s182
      %p184 = scmp.eq.s32.totalorder %s34, 0
      %p185 = por %p183, %p184
      %s187 = sadd.s32 %s186, 1
      %p190 = scmp.eq.s32.totalorder %s28, 1
      %p191 = scmp.ne.s32.totalorder %s186, %s188
      %p192 = scmp.eq.s32.totalorder %s28, 0
      %p193 = por %p191, %p192
      %p194 = scmp.ne.s32.totalorder %s186, %s188
      %p195 = scmp.eq.s32.totalorder %s33, 1
      %p196 = por %p194, %p195
      %p197 = scmp.ne.s32.totalorder %s188, %s189
      %p198 = scmp.eq.s32.totalorder %s33, 0
      %p199 = por %p197, %p198
      %p200 = scmp.ne.s32.totalorder %s188, %s189
      %p201 = scmp.eq.s32.totalorder %s34, 1
      %p202 = por %p200, %p201
      %p204 = scmp.ne.s32.totalorder %s189, %s203
      %p205 = scmp.eq.s32.totalorder %s34, 0
      %p206 = por %p204, %p205
      %s208 = sadd.s32 %s207, 1
      %p211 = scmp.eq.s32.totalorder %s28, 1
      %p212 = scmp.ne.s32.totalorder %s207, %s209
      %p213 = scmp.eq.s32.totalorder %s28, 0
      %p214 = por %p212, %p213
      %p215 = scmp.ne.s32.totalorder %s207, %s209
      %p216 = scmp.eq.s32.totalorder %s33, 1
      %p217 = por %p215, %p216
      %p218 = scmp.ne.s32.totalorder %s209, %s210
      %p219 = scmp.eq.s32.totalorder %s33, 0
      %p220 = por %p218, %p219
      %p221 = scmp.ne.s32.totalorder %s209, %s210
      %p222 = scmp.eq.s32.totalorder %s34, 1
      %p223 = por %p221, %p222
      %p225 = scmp.ne.s32.totalorder %s210, %s224
      %p226 = scmp.eq.s32.totalorder %s34, 0
      %p227 = por %p225, %p226
      %s229 = sadd.s32 %s228, 1
      %p232 = scmp.eq.s32.totalorder %s28, 1
      %p233 = scmp.ne.s32.totalorder %s228, %s230
      %p234 = scmp.eq.s32.totalorder %s28, 0
      %p235 = por %p233, %p234
      %p236 = scmp.ne.s32.totalorder %s228, %s230
      %p237 = scmp.eq.s32.totalorder %s33, 1
      %p238 = por %p236, %p237
      %p239 = scmp.ne.s32.totalorder %s230, %s231
      %p240 = scmp.eq.s32.totalorder %s33, 0
      %p241 = por %p239, %p240
      %p242 = scmp.ne.s32.totalorder %s230, %s231
      %p243 = scmp.eq.s32.totalorder %s34, 1
      %p244 = por %p242, %p243
      %p246 = scmp.ne.s32.totalorder %s231, %s245
      %p247 = scmp.eq.s32.totalorder %s34, 0
      %p248 = por %p246, %p247
      %s250 = sadd.s32 %s249, 1
      %p253 = scmp.eq.s32.totalorder %s28, 1
      %p254 = scmp.ne.s32.totalorder %s249, %s251
      %p255 = scmp.eq.s32.totalorder %s28, 0
      %p256 = por %p254, %p255
      %p257 = scmp.ne.s32.totalorder %s249, %s251
      %p258 = scmp.eq.s32.totalorder %s33, 1
      %p259 = por %p257, %p258
      %p260 = scmp.ne.s32.totalorder %s251, %s252
      %p261 = scmp.eq.s32.totalorder %s33, 0
      %p262 = por %p260, %p261
      %p263 = scmp.ne.s32.totalorder %s251, %s252
      %p264 = scmp.eq.s32.totalorder %s34, 1
      %p265 = por %p263, %p264
      %p267 = scmp.ne.s32.totalorder %s252, %s266
      %p268 = scmp.eq.s32.totalorder %s34, 0
      %p269 = por %p267, %p268
      %s270 = ssub.s32 %s35, %s47
      %s271 = ssub.s32 %s36, %s43
      %s272 = sor.u32 %s270, %s271
      %p273 = scmp.eq.s32.totalorder %s272, 0
      %s275 = sadd.s32 %s274, 1
      %s276 = scalar_select %p273, %s274, %s275
      %p279 = pneg %p273
      %p280 = scmp.eq.s32.totalorder %s28, 1
      %p281 = por %p279, %p280
      %p282 = scmp.ne.s32.totalorder %s274, %s277
      %p283 = scmp.eq.s32.totalorder %s28, 0
      %p284 = por %p282, %p283
      %p285 = scmp.ne.s32.totalorder %s274, %s277
      %p286 = scmp.eq.s32.totalorder %s33, 1
      %p287 = por %p285, %p286
      %p288 = scmp.ne.s32.totalorder %s277, %s278
      %p289 = scmp.eq.s32.totalorder %s33, 0
      %p290 = por %p288, %p289
      %p291 = scmp.ne.s32.totalorder %s277, %s278
      %p292 = scmp.eq.s32.totalorder %s34, 1
      %p293 = por %p291, %p292
      %p295 = scmp.ne.s32.totalorder %s278, %s294
      %p296 = scmp.eq.s32.totalorder %s34, 0
      %p297 = por %p295, %p296
      %s298 = ssub.s32 %s35, %s47
      %s299 = ssub.s32 %s36, %s43
      %s300 = sor.u32 %s298, %s299
      %p301 = scmp.eq.s32.totalorder %s300, 0
      %s303 = sadd.s32 %s302, 1
      %s304 = scalar_select %p301, %s302, %s303
      %p307 = pneg %p301
      %p308 = scmp.eq.s32.totalorder %s28, 1
      %p309 = por %p307, %p308
      %p310 = scmp.ne.s32.totalorder %s302, %s305
      %p311 = scmp.eq.s32.totalorder %s28, 0
      %p312 = por %p310, %p311
      %p313 = scmp.ne.s32.totalorder %s302, %s305
      %p314 = scmp.eq.s32.totalorder %s33, 1
      %p315 = por %p313, %p314
      %p316 = scmp.ne.s32.totalorder %s305, %s306
      %p317 = scmp.eq.s32.totalorder %s33, 0
      %p318 = por %p316, %p317
      %p319 = scmp.ne.s32.totalorder %s305, %s306
      %p320 = scmp.eq.s32.totalorder %s34, 1
      %p321 = por %p319, %p320
      %p323 = scmp.ne.s32.totalorder %s306, %s322
      %p324 = scmp.eq.s32.totalorder %s34, 0
      %p325 = por %p323, %p324
      %p326 = scmp.le.s32.totalorder 1, %s28
      %p327 = scmp.lt.s32.totalorder %s28, 3
      %p328 = pnand %p326, %p327
      %p329 = pneg %p328
      // Predicated region
      $region9: #{tpu_custom_call.1} parent=5 // pred_check
        _
      $region10: #{tpu_custom_call.1} parent=5 // pred_check_branch
        %331 = sbr.rel (%p328) target = $region12
      $region11: #{tpu_custom_call.1} parent=5 // pred_region
        %s332 = ssub.s32 %s28, 1
        // Predicated region
        $region13: #{tpu_custom_call.1} parent=11 // pred_check
          %p333 = pneg %p115
        $region14: #{tpu_custom_call.1} parent=11 // pred_check_branch
          %335 = sbr.rel (%p333) target = $region16
        $region15: #{tpu_custom_call.1} parent=11 // pred_region
          %s337 = ssub.s32 512, 512
          %338 = vsyncadd [#allocation8], %s337
          %s339 = sshll.u32 [#allocation9], 4
          %s340 = int_to_ptr.vmem [resolvable:$true] %s339
          %345 = dma.hbm_to_vmem [thread:$0]  %s2, 512, %s340, [#allocation8], 128, 128, 8
        $region16: #{tpu_custom_call.1} parent=11 // pred_fallthru
          _
        // Predicated region
        $region17: #{tpu_custom_call.1} parent=11 // pred_check
          %p346 = pneg %p136
        $region18: #{tpu_custom_call.1} parent=11 // pred_check_branch
          %348 = sbr.rel (%p346) target = $region20
        $region19: #{tpu_custom_call.1} parent=11 // pred_region
          %s350 = ssub.s32 512, 512
          %351 = vsyncadd [#allocation11], %s350
          %s352 = sshll.u32 [#allocation10], 4
          %s353 = int_to_ptr.vmem [resolvable:$true] %s352
          %358 = dma.hbm_to_vmem [thread:$0]  %s3, 512, %s353, [#allocation11], 128, 128, 8
        $region20: #{tpu_custom_call.1} parent=11 // pred_fallthru
          _
        // Predicated region
        $region21: #{tpu_custom_call.1} parent=11 // pred_check
          %p359 = pneg %p157
        $region22: #{tpu_custom_call.1} parent=11 // pred_check_branch
          %361 = sbr.rel (%p359) target = $region24
        $region23: #{tpu_custom_call.1} parent=11 // pred_region
          _
        $region24: #{tpu_custom_call.1} parent=11 // pred_fallthru
          _
        // Predicated region
        $region25: #{tpu_custom_call.1} parent=11 // pred_check
          %p362 = pneg %p178
        $region26: #{tpu_custom_call.1} parent=11 // pred_check_branch
          %364 = sbr.rel (%p362) target = $region28
        $region27: #{tpu_custom_call.1} parent=11 // pred_region
          _
        $region28: #{tpu_custom_call.1} parent=11 // pred_fallthru
          _
        // Predicated region
        $region29: #{tpu_custom_call.1} parent=11 // pred_check
          %p365 = pneg %p199
        $region30: #{tpu_custom_call.1} parent=11 // pred_check_branch
          %367 = sbr.rel (%p365) target = $region32
        $region31: #{tpu_custom_call.1} parent=11 // pred_region
          %s369 = ssub.s32 512, 512
          %370 = vsyncadd [#allocation11], %s369
          %s371 = sshll.u32 [#allocation12], 4
          %s372 = int_to_ptr.vmem [resolvable:$true] %s371
          %377 = dma.hbm_to_vmem [thread:$0]  %s6, 512, %s372, [#allocation11], 128, 128, 8
        $region32: #{tpu_custom_call.1} parent=11 // pred_fallthru
          _
        // Predicated region
        $region33: #{tpu_custom_call.1} parent=11 // pred_check
          %p378 = pneg %p220
        $region34: #{tpu_custom_call.1} parent=11 // pred_check_branch
          %380 = sbr.rel (%p378) target = $region36
        $region35: #{tpu_custom_call.1} parent=11 // pred_region
          _
        $region36: #{tpu_custom_call.1} parent=11 // pred_fallthru
          _
        // Predicated region
        $region37: #{tpu_custom_call.1} parent=11 // pred_check
          %p381 = pneg %p241
        $region38: #{tpu_custom_call.1} parent=11 // pred_check_branch
          %383 = sbr.rel (%p381) target = $region40
        $region39: #{tpu_custom_call.1} parent=11 // pred_region
          _
        $region40: #{tpu_custom_call.1} parent=11 // pred_fallthru
          _
        // Predicated region
        $region41: #{tpu_custom_call.1} parent=11 // pred_check
          %p384 = pneg %p262
        $region42: #{tpu_custom_call.1} parent=11 // pred_check_branch
          %386 = sbr.rel (%p384) target = $region44
        $region43: #{tpu_custom_call.1} parent=11 // pred_region
          _
        $region44: #{tpu_custom_call.1} parent=11 // pred_fallthru
          _
      $region12: #{tpu_custom_call.1} parent=5 // pred_fallthru
        _
      %p387 = scmp.lt.s32.totalorder %s28, 2
      // Predicated region
      $region45: #{tpu_custom_call.1} parent=5 // pred_check
        %p388 = pneg %p387
      $region46: #{tpu_custom_call.1} parent=5 // pred_check_branch
        %390 = sbr.rel (%p388) target = $region48
      $region47: #{tpu_custom_call.1} parent=5 // pred_region
        // Predicated region
        $region49: #{tpu_custom_call.1} parent=47 // pred_check
          %p391 = pneg %p62
        $region50: #{tpu_custom_call.1} parent=47 // pred_check_branch
          %393 = sbr.rel (%p391) target = $region52
        $region51: #{tpu_custom_call.1} parent=47 // pred_region
          %s394 = sand.u32 %s52, 1
          %s395 = scalar_lea.sflag [#allocation5], %s394
          %s396 = sand.u32 %s52, 1
          %s397 = smul.addr %s396, 16
          %s398 = scalar_lea.vmem [#allocation4], %s397
          %s399 = smul.u32 2, %s36
          %s401 = ssub.s32 256, 256
          %402 = vsyncadd %s395, %s401
          %s403 = smul.addr %s35, 2
          %s404 = sadd.s32 %s399, %s403
          %s405 = smul.addr %s404, 128
          %s406 = scalar_lea.hbm %s0, %s405
          %s407 = sshll.u32 %s398, 4
          %s408 = int_to_ptr.vmem [resolvable:$true] %s407
          %413 = dma.hbm_to_vmem [thread:$0]  %s406, 256, %s408, %s395, 128, 128, 8
        $region52: #{tpu_custom_call.1} parent=47 // pred_fallthru
          _
        // Predicated region
        $region53: #{tpu_custom_call.1} parent=47 // pred_check
          %p414 = pneg %p88
        $region54: #{tpu_custom_call.1} parent=47 // pred_check_branch
          %416 = sbr.rel (%p414) target = $region56
        $region55: #{tpu_custom_call.1} parent=47 // pred_region
          %s417 = sand.u32 %s28, 1
          %s418 = scalar_lea.sflag [#allocation8], %s417
          %s419 = sand.u32 %s78, 1
          %s420 = smul.addr %s419, 8
          %s421 = scalar_lea.vmem [#allocation7], %s420
          %s423 = ssub.s32 128, 128
          %424 = vsyncadd %s418, %s423
          %s425 = smul.addr %s35, 128
          %s426 = scalar_lea.hbm %s1, %s425
          %s428 = sshll.u32 %s421, 4
          %s429 = int_to_ptr.vmem [resolvable:$true] %s428
          %431 = dma.hbm_to_vmem [thread:$0]  %s426, 128, %s429, %s418
        $region56: #{tpu_custom_call.1} parent=47 // pred_fallthru
          _
      $region48: #{tpu_custom_call.1} parent=5 // pred_fallthru
        _
      %p432 = scmp.le.s32.totalorder 1, %s28
      %p433 = scmp.lt.s32.totalorder %s28, 3
      %p434 = pnand %p432, %p433
      %p435 = pneg %p434
      // Predicated region
      $region57: #{tpu_custom_call.1} parent=5 // pred_check
        _
      $region58: #{tpu_custom_call.1} parent=5 // pred_check_branch
        %437 = sbr.rel (%p434) target = $region60
      $region59: #{tpu_custom_call.1} parent=5 // pred_region
        %s438 = ssub.s32 %s28, 1
        %s439 = sand.u32 %s55, 1
        %s440 = scalar_lea.sflag [#allocation5], %s439
        %s441 = sand.u32 %s55, 1
        %s442 = smul.addr %s441, 16
        %s443 = scalar_lea.vmem [#allocation4], %s442
        // Predicated region
        $region61: #{tpu_custom_call.1} parent=59 // pred_check
          %p444 = pneg %p68
        $region62: #{tpu_custom_call.1} parent=59 // pred_check_branch
          %446 = sbr.rel (%p444) target = $region64
        $region63: #{tpu_custom_call.1} parent=59 // pred_region
          %447 = dma.done %s440, 256
        $region64: #{tpu_custom_call.1} parent=59 // pred_fallthru
          _
        %s448 = sand.u32 %s33, 1
        %s449 = scalar_lea.sflag [#allocation8], %s448
        %s450 = sand.u32 %s81, 1
        %s451 = smul.addr %s450, 8
        %s452 = scalar_lea.vmem [#allocation7], %s451
        // Predicated region
        $region65: #{tpu_custom_call.1} parent=59 // pred_check
          %p453 = pneg %p94
        $region66: #{tpu_custom_call.1} parent=59 // pred_check_branch
          %455 = sbr.rel (%p453) target = $region68
        $region67: #{tpu_custom_call.1} parent=59 // pred_region
          %456 = dma.done %s449, 128
        $region68: #{tpu_custom_call.1} parent=59 // pred_fallthru
          _
        // Predicated region
        $region69: #{tpu_custom_call.1} parent=59 // pred_check
          %p457 = pneg %p115
        $region70: #{tpu_custom_call.1} parent=59 // pred_check_branch
          %459 = sbr.rel (%p457) target = $region72
        $region71: #{tpu_custom_call.1} parent=59 // pred_region
          %460 = dma.done [#allocation8], 512
        $region72: #{tpu_custom_call.1} parent=59 // pred_fallthru
          _
        // Predicated region
        $region73: #{tpu_custom_call.1} parent=59 // pred_check
          %p461 = pneg %p136
        $region74: #{tpu_custom_call.1} parent=59 // pred_check_branch
          %463 = sbr.rel (%p461) target = $region76
        $region75: #{tpu_custom_call.1} parent=59 // pred_region
          %464 = dma.done [#allocation11], 512
        $region76: #{tpu_custom_call.1} parent=59 // pred_fallthru
          _
        // Predicated region
        $region77: #{tpu_custom_call.1} parent=59 // pred_check
          %p465 = pneg %p199
        $region78: #{tpu_custom_call.1} parent=59 // pred_check_branch
          %467 = sbr.rel (%p465) target = $region80
        $region79: #{tpu_custom_call.1} parent=59 // pred_region
          %468 = dma.done [#allocation11], 512
        $region80: #{tpu_custom_call.1} parent=59 // pred_fallthru
          _
        %s469 = sand.u32 %s55, 1
        %s470 = scalar_lea.sflag [#allocation5], %s469
        %s471 = sand.u32 %s55, 1
        %s472 = smul.addr %s471, 16
        %s473 = scalar_lea.vmem [#allocation4], %s472
        %p474 = pneg %p68
        %p475 = pneg %p65
        %s476 = sand.u32 %s33, 1
        %s477 = scalar_lea.sflag [#allocation8], %s476
        %s478 = sand.u32 %s81, 1
        %s479 = smul.addr %s478, 8
        %s480 = scalar_lea.vmem [#allocation7], %s479
        %p481 = pneg %p94
        %p482 = pneg %p91
        %p483 = pneg %p115
        %p484 = pneg %p112
        %p485 = pneg %p136
        %p486 = pneg %p133
        %p487 = pneg %p157
        %p488 = pneg %p154
        %p489 = pneg %p178
        %p490 = pneg %p175
        %p491 = pneg %p199
        %p492 = pneg %p196
        %p493 = pneg %p220
        %p494 = pneg %p217
        %p495 = pneg %p241
        %p496 = pneg %p238
        %p497 = pneg %p262
        %p498 = pneg %p259
        %p499 = pneg %p290
        %p500 = pneg %p287
        %s501 = sand.u32 %s277, 1
        %s502 = scalar_lea.sflag [#allocation6], %s501
        %s503 = sand.u32 %s277, 1
        %s504 = smul.addr %s503, 16
        %s505 = scalar_lea.vmem [#allocation13], %s504
        %p506 = pneg %p318
        %p507 = pneg %p315
        %s508 = smul.u32 2, %s38
        %p509 = scmp.lt.s32.totalorder %s37, 1
        %s510 = scalar_select %p509, %s37, 1
        %p511 = scmp.lt.s32.totalorder %s508, 1
        %s512 = scalar_select %p511, %s508, 1
        %s513 = smul.addr %s510, 2
        %s514 = sadd.s32 %s512, %s513
        %s515 = smul.addr %s514, 8
        %s516 = scalar_lea.vmem %s11, %s515
        %s517 = smul.u32 2, %s38
        %s518 = smul.u32 2, %s38
        %s519 = smul.u32 2, %s38
        %p520 = scmp.lt.s32.totalorder %s37, 1
        %s521 = scalar_select %p520, %s37, 1
        %p522 = scmp.lt.s32.totalorder %s519, 1
        %s523 = scalar_select %p522, %s519, 1
        %s524 = smul.addr %s521, 2
        %s525 = sadd.s32 %s523, %s524
        %s526 = smul.addr %s525, 8
        %s527 = scalar_lea.vmem %s11, %s526
        %s528 = smul.u32 2, %s38
        %p529 = scmp.eq.s32.totalorder %s38, 0
        // Predicated region
        $region81: #{tpu_custom_call.1} parent=59 // pred_check
          %p530 = pneg %p529
        $region82: #{tpu_custom_call.1} parent=59 // pred_check_branch
          %532 = sbr.rel (%p530) target = $region84
        $region83: #{tpu_custom_call.1} parent=59 // pred_region
          %v533 = vld [vmem:[%s452] sm:$0xff]
          %v534 = vld [vmem:[#allocation10] sm:$0xff]
          %v535 = vld [vmem:[#allocation10 + $0x8] sm:$0xff]
          %v536 = vld [vmem:[#allocation10 + $0x10] sm:$0xff]
          %v537 = vld [vmem:[#allocation10 + $0x18] sm:$0xff]
          %v538 = vld [vmem:[%s5] sm:$0x1]
          %v540 = vlaneseq
          %v541 = vshrl.u32 %v540, 7
          %v542 = vsub.s32 0, %v541
          %v543 = vrot.slane %v538, %v542
          %vm545 = vcmask 261120
          %v547 = vsel %vm545, %v533, 0
          %549 = vmatprep.subr.mxu0 0.0
          %550 = vmatpush1.msra.mxu0 %v534
          %551 = vmatprep.subr.mxu0 0.0
          %552 = vmatpush1.msra.mxu0 %v535
          %553 = vmatprep.subr.mxu0 0.0
          %554 = vmatpush1.msra.mxu0 %v536
          %555 = vmatprep.subr.mxu0 0.0
          %556 = vmatpush1.msra.mxu0 %v537
          %557 = vmatprep.subr.mxu0 0.0
          %558 = vmatpush1.msra.mxu0 0.0
          %559 = vmatprep.subr.mxu0 0.0
          %560 = vmatpush1.msra.mxu0 0.0
          %561 = vmatprep.subr.mxu0 0.0
          %562 = vmatpush1.msra.mxu0 0.0
          %563 = vmatprep.subr.mxu0 0.0
          %564 = vmatpush1.msra.mxu0 0.0
          %565 = vmatprep.subr.mxu0 0.0
          %566 = vmatpush1.msra.mxu0 0.0
          %567 = vmatprep.subr.mxu0 0.0
          %568 = vmatpush1.msra.mxu0 0.0
          %569 = vmatprep.subr.mxu0 0.0
          %570 = vmatpush1.msra.mxu0 0.0
          %571 = vmatprep.subr.mxu0 0.0
          %572 = vmatpush1.msra.mxu0 0.0
          %573 = vmatprep.subr.mxu0 0.0
          %574 = vmatpush1.msra.mxu0 0.0
          %575 = vmatprep.subr.mxu0 0.0
          %576 = vmatpush1.msra.mxu0 0.0
          %577 = vmatprep.subr.mxu0 0.0
          %578 = vmatpush1.msra.mxu0 0.0
          %579 = vmatprep.subr.mxu0 0.0
          %580 = vmatpush1.msra.mxu0 0.0
          %581 = vmatprep.subr.mxu0 0.0
          %582 = vmatpush1.msra.mxu0 0.0
          %583 = vmatprep.subr.mxu0 0.0
          %584 = vmatpush1.msra.mxu0 0.0
          %585 = vmatprep.subr.mxu0 0.0
          %586 = vmatpush1.msra.mxu0 0.0
          %587 = vmatprep.subr.mxu0 0.0
          %588 = vmatpush1.msra.mxu0 0.0
          %589 = vmatprep.subr.mxu0 0.0
          %590 = vmatpush1.msra.mxu0 0.0
          %591 = vmatprep.subr.mxu0 0.0
          %592 = vmatpush1.msra.mxu0 0.0
          %593 = vmatprep.subr.mxu0 0.0
          %594 = vmatpush1.msra.mxu0 0.0
          %595 = vmatprep.subr.mxu0 0.0
          %596 = vmatpush1.msra.mxu0 0.0
          %597 = vmatprep.subr.mxu0 0.0
          %598 = vmatpush1.msra.mxu0 0.0
          %599 = vmatprep.subr.mxu0 0.0
          %600 = vmatpush1.msra.mxu0 0.0
          %601 = vmatprep.subr.mxu0 0.0
          %602 = vmatpush1.msra.mxu0 0.0
          %603 = vmatprep.subr.mxu0 0.0
          %604 = vmatpush1.msra.mxu0 0.0
          %605 = vmatprep.subr.mxu0 0.0
          %606 = vmatpush1.msra.mxu0 0.0
          %607 = vmatprep.subr.mxu0 0.0
          %608 = vmatpush1.msra.mxu0 0.0
          %609 = vmatprep.subr.mxu0 0.0
          %610 = vmatpush1.msra.mxu0 0.0
          %611 = vmatprep.subr.mxu0 0.0
          %612 = vmatpush1.msra.mxu0 0.0
          %613 = vmatprep.mubr.f32.mxu0 0.0
          %614 = vmatmul.mubr.f32.gmra.mrb[0].mxu0 %v547
          %v615 = vpop.f32.mrb[0].mxu0
          %v616 = vadd.f32 %v543, %v615
          %v617 = vpop.f32.mrb[0].mxu0
          %618 = vdwg.mxu0
          %vm619 = vcmask 523264
          %620 = vst.msk [vmem:[#allocation2] sm:$0xff] %vm619, %v616
        $region84: #{tpu_custom_call.1} parent=59 // pred_fallthru
          _
        %v621 = vld [vmem:[%s443] sm:$0xff]
        %v622 = vld [vmem:[%s443 + $0x8] sm:$0xff]
        %v623 = vld [vmem:[#allocation9] sm:$0xff]
        %v624 = vld [vmem:[#allocation9 + $0x8] sm:$0xff]
        %v625 = vld [vmem:[#allocation9 + $0x10] sm:$0xff]
        %v626 = vld [vmem:[#allocation9 + $0x18] sm:$0xff]
        %v627 = vld [vmem:[%s4] sm:$0x1]
        %v629 = vlaneseq
        %v630 = vshrl.u32 %v629, 7
        %v631 = vsub.s32 0, %v630
        %v632 = vrot.slane %v627, %v631
        %vm634 = vcmask 261120
        %v636 = vsel %vm634, %v621, 0
        %v639 = vsel %vm634, %v622, 0
        %641 = vmatprep.subr.mxu0 0.0
        %642 = vmatpush1.msra.mxu0 %v623
        %643 = vmatprep.subr.mxu0 0.0
        %644 = vmatpush1.msra.mxu0 %v624
        %645 = vmatprep.subr.mxu0 0.0
        %646 = vmatpush1.msra.mxu0 %v625
        %647 = vmatprep.subr.mxu0 0.0
        %648 = vmatpush1.msra.mxu0 %v626
        %649 = vmatprep.subr.mxu0 0.0
        %650 = vmatpush1.msra.mxu0 0.0
        %651 = vmatprep.subr.mxu0 0.0
        %652 = vmatpush1.msra.mxu0 0.0
        %653 = vmatprep.subr.mxu0 0.0
        %654 = vmatpush1.msra.mxu0 0.0
        %655 = vmatprep.subr.mxu0 0.0
        %656 = vmatpush1.msra.mxu0 0.0
        %657 = vmatprep.subr.mxu0 0.0
        %658 = vmatpush1.msra.mxu0 0.0
        %659 = vmatprep.subr.mxu0 0.0
        %660 = vmatpush1.msra.mxu0 0.0
        %661 = vmatprep.subr.mxu0 0.0
        %662 = vmatpush1.msra.mxu0 0.0
        %663 = vmatprep.subr.mxu0 0.0
        %664 = vmatpush1.msra.mxu0 0.0
        %665 = vmatprep.subr.mxu0 0.0
        %666 = vmatpush1.msra.mxu0 0.0
        %667 = vmatprep.subr.mxu0 0.0
        %668 = vmatpush1.msra.mxu0 0.0
        %669 = vmatprep.subr.mxu0 0.0
        %670 = vmatpush1.msra.mxu0 0.0
        %671 = vmatprep.subr.mxu0 0.0
        %672 = vmatpush1.msra.mxu0 0.0
        %673 = vmatprep.subr.mxu0 0.0
        %674 = vmatpush1.msra.mxu0 0.0
        %675 = vmatprep.subr.mxu0 0.0
        %676 = vmatpush1.msra.mxu0 0.0
        %677 = vmatprep.subr.mxu0 0.0
        %678 = vmatpush1.msra.mxu0 0.0
        %679 = vmatprep.subr.mxu0 0.0
        %680 = vmatpush1.msra.mxu0 0.0
        %681 = vmatprep.subr.mxu0 0.0
        %682 = vmatpush1.msra.mxu0 0.0
        %683 = vmatprep.subr.mxu0 0.0
        %684 = vmatpush1.msra.mxu0 0.0
        %685 = vmatprep.subr.mxu0 0.0
        %686 = vmatpush1.msra.mxu0 0.0
        %687 = vmatprep.subr.mxu0 0.0
        %688 = vmatpush1.msra.mxu0 0.0
        %689 = vmatprep.subr.mxu0 0.0
        %690 = vmatpush1.msra.mxu0 0.0
        %691 = vmatprep.subr.mxu0 0.0
        %692 = vmatpush1.msra.mxu0 0.0
        %693 = vmatprep.subr.mxu0 0.0
        %694 = vmatpush1.msra.mxu0 0.0
        %695 = vmatprep.subr.mxu0 0.0
        %696 = vmatpush1.msra.mxu0 0.0
        %697 = vmatprep.subr.mxu0 0.0
        %698 = vmatpush1.msra.mxu0 0.0
        %699 = vmatprep.subr.mxu0 0.0
        %700 = vmatpush1.msra.mxu0 0.0
        %701 = vmatprep.subr.mxu0 0.0
        %702 = vmatpush1.msra.mxu0 0.0
        %703 = vmatprep.subr.mxu0 0.0
        %704 = vmatpush1.msra.mxu0 0.0
        %705 = vmatprep.mubr.f32.mxu0 0.0
        %706 = vmatmul.mubr.f32.gmra.mrb[0].mxu0 %v636
        %v707 = vpop.f32.mrb[0].mxu0
        %v708 = vadd.f32 %v632, %v707
        %v709 = vpop.f32.mrb[0].mxu0
        %710 = vmatprep.mubr.f32.mxu0 0.0
        %711 = vmatmul.mubr.f32.gmra.mrb[0].mxu0 %v639
        %v712 = vpop.f32.mrb[0].mxu0
        %v713 = vadd.f32 %v632, %v712
        %v714 = vpop.f32.mrb[0].mxu0
        %715 = vdwg.mxu0
        %v716 = vmul.f32 %v708, 0.5
        %v717 = vmul.f32 %v713, 0.5
        %v718 = vld [vmem:[#allocation2] sm:$0xff]
        %vm719 = vcmask 31744
        %v721 = vsel %vm719, %v716, 0
        %v724 = vsel %vm719, %v717, 0
        %v727 = vsel %vm719, %v718, 0
        %729 = vmatprep.subr.mxu0 0.0
        %730 = vmatpush1.xpose.msra.mxu0 %v727
        %731 = vmatprep.subr.mxu0 0.0
        %732 = vmatpush1.xpose.msra.mxu0 0.0
        %733 = vmatprep.subr.mxu0 0.0
        %734 = vmatpush1.xpose.msra.mxu0 0.0
        %735 = vmatprep.subr.mxu0 0.0
        %736 = vmatpush1.xpose.msra.mxu0 0.0
        %737 = vmatprep.subr.mxu0 0.0
        %738 = vmatpush1.xpose.msra.mxu0 0.0
        %739 = vmatprep.subr.mxu0 0.0
        %740 = vmatpush1.xpose.msra.mxu0 0.0
        %741 = vmatprep.subr.mxu0 0.0
        %742 = vmatpush1.xpose.msra.mxu0 0.0
        %743 = vmatprep.subr.mxu0 0.0
        %744 = vmatpush1.xpose.msra.mxu0 0.0
        %745 = vmatprep.subr.mxu0 0.0
        %746 = vmatpush1.xpose.msra.mxu0 0.0
        %747 = vmatprep.subr.mxu0 0.0
        %748 = vmatpush1.xpose.msra.mxu0 0.0
        %749 = vmatprep.subr.mxu0 0.0
        %750 = vmatpush1.xpose.msra.mxu0 0.0
        %751 = vmatprep.subr.mxu0 0.0
        %752 = vmatpush1.xpose.msra.mxu0 0.0
        %753 = vmatprep.subr.mxu0 0.0
        %754 = vmatpush1.xpose.msra.mxu0 0.0
        %755 = vmatprep.subr.mxu0 0.0
        %756 = vmatpush1.xpose.msra.mxu0 0.0
        %757 = vmatprep.subr.mxu0 0.0
        %758 = vmatpush1.xpose.msra.mxu0 0.0
        %759 = vmatprep.subr.mxu0 0.0
        %760 = vmatpush1.xpose.msra.mxu0 0.0
        %761 = vmatprep.subr.mxu0 0.0
        %762 = vmatpush1.xpose.msra.mxu0 0.0
        %763 = vmatprep.subr.mxu0 0.0
        %764 = vmatpush1.xpose.msra.mxu0 0.0
        %765 = vmatprep.subr.mxu0 0.0
        %766 = vmatpush1.xpose.msra.mxu0 0.0
        %767 = vmatprep.subr.mxu0 0.0
        %768 = vmatpush1.xpose.msra.mxu0 0.0
        %769 = vmatprep.subr.mxu0 0.0
        %770 = vmatpush1.xpose.msra.mxu0 0.0
        %771 = vmatprep.subr.mxu0 0.0
        %772 = vmatpush1.xpose.msra.mxu0 0.0
        %773 = vmatprep.subr.mxu0 0.0
        %774 = vmatpush1.xpose.msra.mxu0 0.0
        %775 = vmatprep.subr.mxu0 0.0
        %776 = vmatpush1.xpose.msra.mxu0 0.0
        %777 = vmatprep.subr.mxu0 0.0
        %778 = vmatpush1.xpose.msra.mxu0 0.0
        %779 = vmatprep.subr.mxu0 0.0
        %780 = vmatpush1.xpose.msra.mxu0 0.0
        %781 = vmatprep.subr.mxu0 0.0
        %782 = vmatpush1.xpose.msra.mxu0 0.0
        %783 = vmatprep.subr.mxu0 0.0
        %784 = vmatpush1.xpose.msra.mxu0 0.0
        %785 = vmatprep.subr.mxu0 0.0
        %786 = vmatpush1.xpose.msra.mxu0 0.0
        %787 = vmatprep.subr.mxu0 0.0
        %788 = vmatpush1.xpose.msra.mxu0 0.0
        %789 = vmatprep.subr.mxu0 0.0
        %790 = vmatpush1.xpose.msra.mxu0 0.0
        %791 = vmatprep.subr.mxu0 0.0
        %792 = vmatpush1.xpose.msra.mxu0 0.0
        %793 = vmatprep.mubr.f32.mxu0 0.0
        %794 = vmatmul.mubr.f32.gmra.mrb[0].mxu0 %v721
        %v795 = vpop.f32.mrb[0].mxu0
        %v796 = vadd.f32 0.0, %v795
        %v797 = vpop.f32.mrb[0].mxu0
        %798 = vmatprep.mubr.f32.mxu0 0.0
        %799 = vmatmul.mubr.f32.gmra.mrb[0].mxu0 %v724
        %v800 = vpop.f32.mrb[0].mxu0
        %v801 = vadd.f32 0.0, %v800
        %v802 = vpop.f32.mrb[0].mxu0
        %803 = vdwg.mxu0
        %vm804 = vcmask 64512
        %v805 = vsel %vm804, %v796, -inf
        %806 = vmax.xlane.f32.xlu0 %v805
        %v807 = vpop.xlane.xlu0 %806
        %v808 = vsel %vm804, %v801, -inf
        %809 = vmax.xlane.f32.xlu0 %v808
        %v810 = vpop.xlane.xlu0 %809
        %v811 = vsub.f32 %v796, %v807
        %v812 = vsub.f32 %v801, %v810
        %v813 = vmul.f32 %v811, 1.442695
        %v814 = vpow.pop %v813
        %v815 = vmul.f32 %v812, 1.442695
        %v816 = vpow.pop %v815
        %v817 = vsel %vm804, %v814, 0.0
        %818 = vadd.xlane.f32.xlu0 %v817
        %v819 = vpop.xlane.xlu0 %818
        %v820 = vsel %vm804, %v816, 0.0
        %821 = vadd.xlane.f32.xlu0 %v820
        %v822 = vpop.xlane.xlu0 %821
        %v823 = vrcp.pop %v819
        %v824 = vmul.f32 %v814, %v823
        %v825 = vrcp.pop %v822
        %v826 = vmul.f32 %v816, %v825
        %827 = vst.msk [vmem:[%s527] sm:$0xff] %vm804, %v824
        %828 = vst.msk [vmem:[%s527 + $0x8] sm:$0xff] %vm804, %v826
        %829 = vrot.lane.b32.xlu0 %v718, 96
        %v830 = vpop.permute.xlu0 %829
        %v833 = vsel %vm804, %v824, 0
        %v836 = vsel %vm804, %v826, 0
        %838 = vmatprep.subr.mxu0 0.0
        %839 = vmatpush1.msra.mxu0 %v830
        %840 = vmatprep.subr.mxu0 0.0
        %841 = vmatpush1.msra.mxu0 0.0
        %842 = vmatprep.subr.mxu0 0.0
        %843 = vmatpush1.msra.mxu0 0.0
        %844 = vmatprep.subr.mxu0 0.0
        %845 = vmatpush1.msra.mxu0 0.0
        %846 = vmatprep.subr.mxu0 0.0
        %847 = vmatpush1.msra.mxu0 0.0
        %848 = vmatprep.subr.mxu0 0.0
        %849 = vmatpush1.msra.mxu0 0.0
        %850 = vmatprep.subr.mxu0 0.0
        %851 = vmatpush1.msra.mxu0 0.0
        %852 = vmatprep.subr.mxu0 0.0
        %853 = vmatpush1.msra.mxu0 0.0
        %854 = vmatprep.subr.mxu0 0.0
        %855 = vmatpush1.msra.mxu0 0.0
        %856 = vmatprep.subr.mxu0 0.0
        %857 = vmatpush1.msra.mxu0 0.0
        %858 = vmatprep.subr.mxu0 0.0
        %859 = vmatpush1.msra.mxu0 0.0
        %860 = vmatprep.subr.mxu0 0.0
        %861 = vmatpush1.msra.mxu0 0.0
        %862 = vmatprep.subr.mxu0 0.0
        %863 = vmatpush1.msra.mxu0 0.0
        %864 = vmatprep.subr.mxu0 0.0
        %865 = vmatpush1.msra.mxu0 0.0
        %866 = vmatprep.subr.mxu0 0.0
        %867 = vmatpush1.msra.mxu0 0.0
        %868 = vmatprep.subr.mxu0 0.0
        %869 = vmatpush1.msra.mxu0 0.0
        %870 = vmatprep.subr.mxu0 0.0
        %871 = vmatpush1.msra.mxu0 0.0
        %872 = vmatprep.subr.mxu0 0.0
        %873 = vmatpush1.msra.mxu0 0.0
        %874 = vmatprep.subr.mxu0 0.0
        %875 = vmatpush1.msra.mxu0 0.0
        %876 = vmatprep.subr.mxu0 0.0
        %877 = vmatpush1.msra.mxu0 0.0
        %878 = vmatprep.subr.mxu0 0.0
        %879 = vmatpush1.msra.mxu0 0.0
        %880 = vmatprep.subr.mxu0 0.0
        %881 = vmatpush1.msra.mxu0 0.0
        %882 = vmatprep.subr.mxu0 0.0
        %883 = vmatpush1.msra.mxu0 0.0
        %884 = vmatprep.subr.mxu0 0.0
        %885 = vmatpush1.msra.mxu0 0.0
        %886 = vmatprep.subr.mxu0 0.0
        %887 = vmatpush1.msra.mxu0 0.0
        %888 = vmatprep.subr.mxu0 0.0
        %889 = vmatpush1.msra.mxu0 0.0
        %890 = vmatprep.subr.mxu0 0.0
        %891 = vmatpush1.msra.mxu0 0.0
        %892 = vmatprep.subr.mxu0 0.0
        %893 = vmatpush1.msra.mxu0 0.0
        %894 = vmatprep.subr.mxu0 0.0
        %895 = vmatpush1.msra.mxu0 0.0
        %896 = vmatprep.subr.mxu0 0.0
        %897 = vmatpush1.msra.mxu0 0.0
        %898 = vmatprep.subr.mxu0 0.0
        %899 = vmatpush1.msra.mxu0 0.0
        %900 = vmatprep.subr.mxu0 0.0
        %901 = vmatpush1.msra.mxu0 0.0
        %902 = vmatprep.mubr.f32.mxu0 0.0
        %903 = vmatmul.mubr.f32.gmra.mrb[0].mxu0 %v833
        %v904 = vpop.f32.mrb[0].mxu0
        %v905 = vadd.f32 0.0, %v904
        %v906 = vpop.f32.mrb[0].mxu0
        %907 = vmatprep.mubr.f32.mxu0 0.0
        %908 = vmatmul.mubr.f32.gmra.mrb[0].mxu0 %v836
        %v909 = vpop.f32.mrb[0].mxu0
        %v910 = vadd.f32 0.0, %v909
        %v911 = vpop.f32.mrb[0].mxu0
        %912 = vdwg.mxu0
        %913 = vst.msk [vmem:[#allocation3] sm:$0xff] %vm719, %v905
        %914 = vst.msk [vmem:[#allocation3 + $0x8] sm:$0xff] %vm719, %v910
        %v915 = vld [vmem:[#allocation2] sm:$0xff]
        %916 = vrot.lane.b32.xlu0 %v716, 124
        %v917 = vpop.permute.xlu0 %916
        %918 = vrot.lane.b32.xlu0 %v717, 124
        %v919 = vpop.permute.xlu0 %918
        %921 = vrot.lane.b32.xlu0 %v915, 124
        %v922 = vpop.permute.xlu0 %921
        %v923 = vsel %vm719, %v917, 0
        %v925 = vsel %vm719, %v919, 0
        %v927 = vsel %vm719, %v922, 0
        %929 = vmatprep.subr.mxu0 0.0
        %930 = vmatpush1.xpose.msra.mxu0 %v927
        %931 = vmatprep.subr.mxu0 0.0
        %932 = vmatpush1.xpose.msra.mxu0 0.0
        %933 = vmatprep.subr.mxu0 0.0
        %934 = vmatpush1.xpose.msra.mxu0 0.0
        %935 = vmatprep.subr.mxu0 0.0
        %936 = vmatpush1.xpose.msra.mxu0 0.0
        %937 = vmatprep.subr.mxu0 0.0
        %938 = vmatpush1.xpose.msra.mxu0 0.0
        %939 = vmatprep.subr.mxu0 0.0
        %940 = vmatpush1.xpose.msra.mxu0 0.0
        %941 = vmatprep.subr.mxu0 0.0
        %942 = vmatpush1.xpose.msra.mxu0 0.0
        %943 = vmatprep.subr.mxu0 0.0
        %944 = vmatpush1.xpose.msra.mxu0 0.0
        %945 = vmatprep.subr.mxu0 0.0
        %946 = vmatpush1.xpose.msra.mxu0 0.0
        %947 = vmatprep.subr.mxu0 0.0
        %948 = vmatpush1.xpose.msra.mxu0 0.0
        %949 = vmatprep.subr.mxu0 0.0
        %950 = vmatpush1.xpose.msra.mxu0 0.0
        %951 = vmatprep.subr.mxu0 0.0
        %952 = vmatpush1.xpose.msra.mxu0 0.0
        %953 = vmatprep.subr.mxu0 0.0
        %954 = vmatpush1.xpose.msra.mxu0 0.0
        %955 = vmatprep.subr.mxu0 0.0
        %956 = vmatpush1.xpose.msra.mxu0 0.0
        %957 = vmatprep.subr.mxu0 0.0
        %958 = vmatpush1.xpose.msra.mxu0 0.0
        %959 = vmatprep.subr.mxu0 0.0
        %960 = vmatpush1.xpose.msra.mxu0 0.0
        %961 = vmatprep.subr.mxu0 0.0
        %962 = vmatpush1.xpose.msra.mxu0 0.0
        %963 = vmatprep.subr.mxu0 0.0
        %964 = vmatpush1.xpose.msra.mxu0 0.0
        %965 = vmatprep.subr.mxu0 0.0
        %966 = vmatpush1.xpose.msra.mxu0 0.0
        %967 = vmatprep.subr.mxu0 0.0
        %968 = vmatpush1.xpose.msra.mxu0 0.0
        %969 = vmatprep.subr.mxu0 0.0
        %970 = vmatpush1.xpose.msra.mxu0 0.0
        %971 = vmatprep.subr.mxu0 0.0
        %972 = vmatpush1.xpose.msra.mxu0 0.0
        %973 = vmatprep.subr.mxu0 0.0
        %974 = vmatpush1.xpose.msra.mxu0 0.0
        %975 = vmatprep.subr.mxu0 0.0
        %976 = vmatpush1.xpose.msra.mxu0 0.0
        %977 = vmatprep.subr.mxu0 0.0
        %978 = vmatpush1.xpose.msra.mxu0 0.0
        %979 = vmatprep.subr.mxu0 0.0
        %980 = vmatpush1.xpose.msra.mxu0 0.0
        %981 = vmatprep.subr.mxu0 0.0
        %982 = vmatpush1.xpose.msra.mxu0 0.0
        %983 = vmatprep.subr.mxu0 0.0
        %984 = vmatpush1.xpose.msra.mxu0 0.0
        %985 = vmatprep.subr.mxu0 0.0
        %986 = vmatpush1.xpose.msra.mxu0 0.0
        %987 = vmatprep.subr.mxu0 0.0
        %988 = vmatpush1.xpose.msra.mxu0 0.0
        %989 = vmatprep.subr.mxu0 0.0
        %990 = vmatpush1.xpose.msra.mxu0 0.0
        %991 = vmatprep.subr.mxu0 0.0
        %992 = vmatpush1.xpose.msra.mxu0 0.0
        %993 = vmatprep.mubr.f32.mxu0 0.0
        %994 = vmatmul.mubr.f32.gmra.mrb[0].mxu0 %v923
        %v995 = vpop.f32.mrb[0].mxu0
        %v996 = vadd.f32 0.0, %v995
        %v997 = vpop.f32.mrb[0].mxu0
        %998 = vmatprep.mubr.f32.mxu0 0.0
        %999 = vmatmul.mubr.f32.gmra.mrb[0].mxu0 %v925
        %v1000 = vpop.f32.mrb[0].mxu0
        %v1001 = vadd.f32 0.0, %v1000
        %v1002 = vpop.f32.mrb[0].mxu0
        %1003 = vdwg.mxu0
        %v1004 = vsel %vm804, %v996, -inf
        %1005 = vmax.xlane.f32.xlu0 %v1004
        %v1006 = vpop.xlane.xlu0 %1005
        %v1007 = vsel %vm804, %v1001, -inf
        %1008 = vmax.xlane.f32.xlu0 %v1007
        %v1009 = vpop.xlane.xlu0 %1008
        %v1010 = vsub.f32 %v996, %v1006
        %v1011 = vsub.f32 %v1001, %v1009
        %v1012 = vmul.f32 %v1010, 1.442695
        %v1013 = vpow.pop %v1012
        %v1014 = vmul.f32 %v1011, 1.442695
        %v1015 = vpow.pop %v1014
        %v1016 = vsel %vm804, %v1013, 0.0
        %1017 = vadd.xlane.f32.xlu0 %v1016
        %v1018 = vpop.xlane.xlu0 %1017
        %v1019 = vsel %vm804, %v1015, 0.0
        %1020 = vadd.xlane.f32.xlu0 %v1019
        %v1021 = vpop.xlane.xlu0 %1020
        %v1022 = vrcp.pop %v1018
        %v1023 = vmul.f32 %v1013, %v1022
        %v1024 = vrcp.pop %v1021
        %v1025 = vmul.f32 %v1015, %v1024
        %v1026 = vld [vmem:[%s527] sm:$0xff]
        %v1027 = vld [vmem:[%s527 + $0x8] sm:$0xff]
        %v1028 = vadd.f32 %v1026, %v1023
        %v1029 = vadd.f32 %v1027, %v1025
        %1030 = vst.msk [vmem:[%s527] sm:$0xff] %vm804, %v1028
        %1031 = vst.msk [vmem:[%s527 + $0x8] sm:$0xff] %vm804, %v1029
        %1032 = vrot.lane.b32.xlu0 %v915, 92
        %v1033 = vpop.permute.xlu0 %1032
        %v1036 = vsel %vm804, %v1023, 0
        %v1039 = vsel %vm804, %v1025, 0
        %1041 = vmatprep.subr.mxu0 0.0
        %1042 = vmatpush1.msra.mxu0 %v1033
        %1043 = vmatprep.subr.mxu0 0.0
        %1044 = vmatpush1.msra.mxu0 0.0
        %1045 = vmatprep.subr.mxu0 0.0
        %1046 = vmatpush1.msra.mxu0 0.0
        %1047 = vmatprep.subr.mxu0 0.0
        %1048 = vmatpush1.msra.mxu0 0.0
        %1049 = vmatprep.subr.mxu0 0.0
        %1050 = vmatpush1.msra.mxu0 0.0
        %1051 = vmatprep.subr.mxu0 0.0
        %1052 = vmatpush1.msra.mxu0 0.0
        %1053 = vmatprep.subr.mxu0 0.0
        %1054 = vmatpush1.msra.mxu0 0.0
        %1055 = vmatprep.subr.mxu0 0.0
        %1056 = vmatpush1.msra.mxu0 0.0
        %1057 = vmatprep.subr.mxu0 0.0
        %1058 = vmatpush1.msra.mxu0 0.0
        %1059 = vmatprep.subr.mxu0 0.0
        %1060 = vmatpush1.msra.mxu0 0.0
        %1061 = vmatprep.subr.mxu0 0.0
        %1062 = vmatpush1.msra.mxu0 0.0
        %1063 = vmatprep.subr.mxu0 0.0
        %1064 = vmatpush1.msra.mxu0 0.0
        %1065 = vmatprep.subr.mxu0 0.0
        %1066 = vmatpush1.msra.mxu0 0.0
        %1067 = vmatprep.subr.mxu0 0.0
        %1068 = vmatpush1.msra.mxu0 0.0
        %1069 = vmatprep.subr.mxu0 0.0
        %1070 = vmatpush1.msra.mxu0 0.0
        %1071 = vmatprep.subr.mxu0 0.0
        %1072 = vmatpush1.msra.mxu0 0.0
        %1073 = vmatprep.subr.mxu0 0.0
        %1074 = vmatpush1.msra.mxu0 0.0
        %1075 = vmatprep.subr.mxu0 0.0
        %1076 = vmatpush1.msra.mxu0 0.0
        %1077 = vmatprep.subr.mxu0 0.0
        %1078 = vmatpush1.msra.mxu0 0.0
        %1079 = vmatprep.subr.mxu0 0.0
        %1080 = vmatpush1.msra.mxu0 0.0
        %1081 = vmatprep.subr.mxu0 0.0
        %1082 = vmatpush1.msra.mxu0 0.0
        %1083 = vmatprep.subr.mxu0 0.0
        %1084 = vmatpush1.msra.mxu0 0.0
        %1085 = vmatprep.subr.mxu0 0.0
        %1086 = vmatpush1.msra.mxu0 0.0
        %1087 = vmatprep.subr.mxu0 0.0
        %1088 = vmatpush1.msra.mxu0 0.0
        %1089 = vmatprep.subr.mxu0 0.0
        %1090 = vmatpush1.msra.mxu0 0.0
        %1091 = vmatprep.subr.mxu0 0.0
        %1092 = vmatpush1.msra.mxu0 0.0
        %1093 = vmatprep.subr.mxu0 0.0
        %1094 = vmatpush1.msra.mxu0 0.0
        %1095 = vmatprep.subr.mxu0 0.0
        %1096 = vmatpush1.msra.mxu0 0.0
        %1097 = vmatprep.subr.mxu0 0.0
        %1098 = vmatpush1.msra.mxu0 0.0
        %1099 = vmatprep.subr.mxu0 0.0
        %1100 = vmatpush1.msra.mxu0 0.0
        %1101 = vmatprep.subr.mxu0 0.0
        %1102 = vmatpush1.msra.mxu0 0.0
        %1103 = vmatprep.subr.mxu0 0.0
        %1104 = vmatpush1.msra.mxu0 0.0
        %1105 = vmatprep.mubr.f32.mxu0 0.0
        %1106 = vmatmul.mubr.f32.gmra.mrb[0].mxu0 %v1036
        %v1107 = vpop.f32.mrb[0].mxu0
        %v1108 = vadd.f32 0.0, %v1107
        %v1109 = vpop.f32.mrb[0].mxu0
        %1110 = vmatprep.mubr.f32.mxu0 0.0
        %1111 = vmatmul.mubr.f32.gmra.mrb[0].mxu0 %v1039
        %v1112 = vpop.f32.mrb[0].mxu0
        %v1113 = vadd.f32 0.0, %v1112
        %v1114 = vpop.f32.mrb[0].mxu0
        %1115 = vdwg.mxu0
        %1118 = vrot.lane.b32.xlu0 %v1108, 4
        %v1119 = vpop.permute.xlu0 %1118
        %1120 = vrot.lane.b32.xlu0 %v1113, 4
        %v1121 = vpop.permute.xlu0 %1120
        %vm1124 = vcmask 64544
        %1125 = vst.msk [vmem:[#allocation3] sm:$0xff] %vm1124, %v1119
        %1126 = vst.msk [vmem:[#allocation3 + $0x8] sm:$0xff] %vm1124, %v1121
        %v1127 = vld [vmem:[#allocation2] sm:$0xff]
        %1128 = vrot.lane.b32.xlu0 %v716, 120
        %v1129 = vpop.permute.xlu0 %1128
        %1130 = vrot.lane.b32.xlu0 %v717, 120
        %v1131 = vpop.permute.xlu0 %1130
        %1133 = vrot.lane.b32.xlu0 %v1127, 120
        %v1134 = vpop.permute.xlu0 %1133
        %v1135 = vsel %vm719, %v1129, 0
        %v1137 = vsel %vm719, %v1131, 0
        %v1139 = vsel %vm719, %v1134, 0
        %1141 = vmatprep.subr.mxu0 0.0
        %1142 = vmatpush1.xpose.msra.mxu0 %v1139
        %1143 = vmatprep.subr.mxu0 0.0
        %1144 = vmatpush1.xpose.msra.mxu0 0.0
        %1145 = vmatprep.subr.mxu0 0.0
        %1146 = vmatpush1.xpose.msra.mxu0 0.0
        %1147 = vmatprep.subr.mxu0 0.0
        %1148 = vmatpush1.xpose.msra.mxu0 0.0
        %1149 = vmatprep.subr.mxu0 0.0
        %1150 = vmatpush1.xpose.msra.mxu0 0.0
        %1151 = vmatprep.subr.mxu0 0.0
        %1152 = vmatpush1.xpose.msra.mxu0 0.0
        %1153 = vmatprep.subr.mxu0 0.0
        %1154 = vmatpush1.xpose.msra.mxu0 0.0
        %1155 = vmatprep.subr.mxu0 0.0
        %1156 = vmatpush1.xpose.msra.mxu0 0.0
        %1157 = vmatprep.subr.mxu0 0.0
        %1158 = vmatpush1.xpose.msra.mxu0 0.0
        %1159 = vmatprep.subr.mxu0 0.0
        %1160 = vmatpush1.xpose.msra.mxu0 0.0
        %1161 = vmatprep.subr.mxu0 0.0
        %1162 = vmatpush1.xpose.msra.mxu0 0.0
        %1163 = vmatprep.subr.mxu0 0.0
        %1164 = vmatpush1.xpose.msra.mxu0 0.0
        %1165 = vmatprep.subr.mxu0 0.0
        %1166 = vmatpush1.xpose.msra.mxu0 0.0
        %1167 = vmatprep.subr.mxu0 0.0
        %1168 = vmatpush1.xpose.msra.mxu0 0.0
        %1169 = vmatprep.subr.mxu0 0.0
        %1170 = vmatpush1.xpose.msra.mxu0 0.0
        %1171 = vmatprep.subr.mxu0 0.0
        %1172 = vmatpush1.xpose.msra.mxu0 0.0
        %1173 = vmatprep.subr.mxu0 0.0
        %1174 = vmatpush1.xpose.msra.mxu0 0.0
        %1175 = vmatprep.subr.mxu0 0.0
        %1176 = vmatpush1.xpose.msra.mxu0 0.0
        %1177 = vmatprep.subr.mxu0 0.0
        %1178 = vmatpush1.xpose.msra.mxu0 0.0
        %1179 = vmatprep.subr.mxu0 0.0
        %1180 = vmatpush1.xpose.msra.mxu0 0.0
        %1181 = vmatprep.subr.mxu0 0.0
        %1182 = vmatpush1.xpose.msra.mxu0 0.0
        %1183 = vmatprep.subr.mxu0 0.0
        %1184 = vmatpush1.xpose.msra.mxu0 0.0
        %1185 = vmatprep.subr.mxu0 0.0
        %1186 = vmatpush1.xpose.msra.mxu0 0.0
        %1187 = vmatprep.subr.mxu0 0.0
        %1188 = vmatpush1.xpose.msra.mxu0 0.0
        %1189 = vmatprep.subr.mxu0 0.0
        %1190 = vmatpush1.xpose.msra.mxu0 0.0
        %1191 = vmatprep.subr.mxu0 0.0
        %1192 = vmatpush1.xpose.msra.mxu0 0.0
        %1193 = vmatprep.subr.mxu0 0.0
        %1194 = vmatpush1.xpose.msra.mxu0 0.0
        %1195 = vmatprep.subr.mxu0 0.0
        %1196 = vmatpush1.xpose.msra.mxu0 0.0
        %1197 = vmatprep.subr.mxu0 0.0
        %1198 = vmatpush1.xpose.msra.mxu0 0.0
        %1199 = vmatprep.subr.mxu0 0.0
        %1200 = vmatpush1.xpose.msra.mxu0 0.0
        %1201 = vmatprep.subr.mxu0 0.0
        %1202 = vmatpush1.xpose.msra.mxu0 0.0
        %1203 = vmatprep.subr.mxu0 0.0
        %1204 = vmatpush1.xpose.msra.mxu0 0.0
        %1205 = vmatprep.mubr.f32.mxu0 0.0
        %1206 = vmatmul.mubr.f32.gmra.mrb[0].mxu0 %v1135
        %v1207 = vpop.f32.mrb[0].mxu0
        %v1208 = vadd.f32 0.0, %v1207
        %v1209 = vpop.f32.mrb[0].mxu0
        %1210 = vmatprep.mubr.f32.mxu0 0.0
        %1211 = vmatmul.mubr.f32.gmra.mrb[0].mxu0 %v1137
        %v1212 = vpop.f32.mrb[0].mxu0
        %v1213 = vadd.f32 0.0, %v1212
        %v1214 = vpop.f32.mrb[0].mxu0
        %1215 = vdwg.mxu0
        %v1216 = vsel %vm804, %v1208, -inf
        %1217 = vmax.xlane.f32.xlu0 %v1216
        %v1218 = vpop.xlane.xlu0 %1217
        %v1219 = vsel %vm804, %v1213, -inf
        %1220 = vmax.xlane.f32.xlu0 %v1219
        %v1221 = vpop.xlane.xlu0 %1220
        %v1222 = vsub.f32 %v1208, %v1218
        %v1223 = vsub.f32 %v1213, %v1221
        %v1224 = vmul.f32 %v1222, 1.442695
        %v1225 = vpow.pop %v1224
        %v1226 = vmul.f32 %v1223, 1.442695
        %v1227 = vpow.pop %v1226
        %v1228 = vsel %vm804, %v1225, 0.0
        %1229 = vadd.xlane.f32.xlu0 %v1228
        %v1230 = vpop.xlane.xlu0 %1229
        %v1231 = vsel %vm804, %v1227, 0.0
        %1232 = vadd.xlane.f32.xlu0 %v1231
        %v1233 = vpop.xlane.xlu0 %1232
        %v1234 = vrcp.pop %v1230
        %v1235 = vmul.f32 %v1225, %v1234
        %v1236 = vrcp.pop %v1233
        %v1237 = vmul.f32 %v1227, %v1236
        %v1238 = vld [vmem:[%s527] sm:$0xff]
        %v1239 = vld [vmem:[%s527 + $0x8] sm:$0xff]
        %v1240 = vadd.f32 %v1238, %v1235
        %v1241 = vadd.f32 %v1239, %v1237
        %1242 = vst.msk [vmem:[%s527] sm:$0xff] %vm804, %v1240
        %1243 = vst.msk [vmem:[%s527 + $0x8] sm:$0xff] %vm804, %v1241
        %1244 = vrot.lane.b32.xlu0 %v1127, 88
        %v1245 = vpop.permute.xlu0 %1244
        %v1248 = vsel %vm804, %v1235, 0
        %v1251 = vsel %vm804, %v1237, 0
        %1253 = vmatprep.subr.mxu0 0.0
        %1254 = vmatpush1.msra.mxu0 %v1245
        %1255 = vmatprep.subr.mxu0 0.0
        %1256 = vmatpush1.msra.mxu0 0.0
        %1257 = vmatprep.subr.mxu0 0.0
        %1258 = vmatpush1.msra.mxu0 0.0
        %1259 = vmatprep.subr.mxu0 0.0
        %1260 = vmatpush1.msra.mxu0 0.0
        %1261 = vmatprep.subr.mxu0 0.0
        %1262 = vmatpush1.msra.mxu0 0.0
        %1263 = vmatprep.subr.mxu0 0.0
        %1264 = vmatpush1.msra.mxu0 0.0
        %1265 = vmatprep.subr.mxu0 0.0
        %1266 = vmatpush1.msra.mxu0 0.0
        %1267 = vmatprep.subr.mxu0 0.0
        %1268 = vmatpush1.msra.mxu0 0.0
        %1269 = vmatprep.subr.mxu0 0.0
        %1270 = vmatpush1.msra.mxu0 0.0
        %1271 = vmatprep.subr.mxu0 0.0
        %1272 = vmatpush1.msra.mxu0 0.0
        %1273 = vmatprep.subr.mxu0 0.0
        %1274 = vmatpush1.msra.mxu0 0.0
        %1275 = vmatprep.subr.mxu0 0.0
        %1276 = vmatpush1.msra.mxu0 0.0
        %1277 = vmatprep.subr.mxu0 0.0
        %1278 = vmatpush1.msra.mxu0 0.0
        %1279 = vmatprep.subr.mxu0 0.0
        %1280 = vmatpush1.msra.mxu0 0.0
        %1281 = vmatprep.subr.mxu0 0.0
        %1282 = vmatpush1.msra.mxu0 0.0
        %1283 = vmatprep.subr.mxu0 0.0
        %1284 = vmatpush1.msra.mxu0 0.0
        %1285 = vmatprep.subr.mxu0 0.0
        %1286 = vmatpush1.msra.mxu0 0.0
        %1287 = vmatprep.subr.mxu0 0.0
        %1288 = vmatpush1.msra.mxu0 0.0
        %1289 = vmatprep.subr.mxu0 0.0
        %1290 = vmatpush1.msra.mxu0 0.0
        %1291 = vmatprep.subr.mxu0 0.0
        %1292 = vmatpush1.msra.mxu0 0.0
        %1293 = vmatprep.subr.mxu0 0.0
        %1294 = vmatpush1.msra.mxu0 0.0
        %1295 = vmatprep.subr.mxu0 0.0
        %1296 = vmatpush1.msra.mxu0 0.0
        %1297 = vmatprep.subr.mxu0 0.0
        %1298 = vmatpush1.msra.mxu0 0.0
        %1299 = vmatprep.subr.mxu0 0.0
        %1300 = vmatpush1.msra.mxu0 0.0
        %1301 = vmatprep.subr.mxu0 0.0
        %1302 = vmatpush1.msra.mxu0 0.0
        %1303 = vmatprep.subr.mxu0 0.0
        %1304 = vmatpush1.msra.mxu0 0.0
        %1305 = vmatprep.subr.mxu0 0.0
        %1306 = vmatpush1.msra.mxu0 0.0
        %1307 = vmatprep.subr.mxu0 0.0
        %1308 = vmatpush1.msra.mxu0 0.0
        %1309 = vmatprep.subr.mxu0 0.0
        %1310 = vmatpush1.msra.mxu0 0.0
        %1311 = vmatprep.subr.mxu0 0.0
        %1312 = vmatpush1.msra.mxu0 0.0
        %1313 = vmatprep.subr.mxu0 0.0
        %1314 = vmatpush1.msra.mxu0 0.0
        %1315 = vmatprep.subr.mxu0 0.0
        %1316 = vmatpush1.msra.mxu0 0.0
        %1317 = vmatprep.mubr.f32.mxu0 0.0
        %1318 = vmatmul.mubr.f32.gmra.mrb[0].mxu0 %v1248
        %v1319 = vpop.f32.mrb[0].mxu0
        %v1320 = vadd.f32 0.0, %v1319
        %v1321 = vpop.f32.mrb[0].mxu0
        %1322 = vmatprep.mubr.f32.mxu0 0.0
        %1323 = vmatmul.mubr.f32.gmra.mrb[0].mxu0 %v1251
        %v1324 = vpop.f32.mrb[0].mxu0
        %v1325 = vadd.f32 0.0, %v1324
        %v1326 = vpop.f32.mrb[0].mxu0
        %1327 = vdwg.mxu0
        %1330 = vrot.lane.b32.xlu0 %v1320, 8
        %v1331 = vpop.permute.xlu0 %1330
        %1332 = vrot.lane.b32.xlu0 %v1325, 8
        %v1333 = vpop.permute.xlu0 %1332
        %vm1336 = vcmask 97344
        %1337 = vst.msk [vmem:[#allocation3] sm:$0xff] %vm1336, %v1331
        %1338 = vst.msk [vmem:[#allocation3 + $0x8] sm:$0xff] %vm1336, %v1333
        %v1339 = vld [vmem:[#allocation2] sm:$0xff]
        %1340 = vrot.lane.b32.xlu0 %v716, 116
        %v1341 = vpop.permute.xlu0 %1340
        %1342 = vrot.lane.b32.xlu0 %v717, 116
        %v1343 = vpop.permute.xlu0 %1342
        %1345 = vrot.lane.b32.xlu0 %v1339, 116
        %v1346 = vpop.permute.xlu0 %1345
        %v1347 = vsel %vm719, %v1341, 0
        %v1349 = vsel %vm719, %v1343, 0
        %v1351 = vsel %vm719, %v1346, 0
        %1353 = vmatprep.subr.mxu0 0.0
        %1354 = vmatpush1.xpose.msra.mxu0 %v1351
        %1355 = vmatprep.subr.mxu0 0.0
        %1356 = vmatpush1.xpose.msra.mxu0 0.0
        %1357 = vmatprep.subr.mxu0 0.0
        %1358 = vmatpush1.xpose.msra.mxu0 0.0
        %1359 = vmatprep.subr.mxu0 0.0
        %1360 = vmatpush1.xpose.msra.mxu0 0.0
        %1361 = vmatprep.subr.mxu0 0.0
        %1362 = vmatpush1.xpose.msra.mxu0 0.0
        %1363 = vmatprep.subr.mxu0 0.0
        %1364 = vmatpush1.xpose.msra.mxu0 0.0
        %1365 = vmatprep.subr.mxu0 0.0
        %1366 = vmatpush1.xpose.msra.mxu0 0.0
        %1367 = vmatprep.subr.mxu0 0.0
        %1368 = vmatpush1.xpose.msra.mxu0 0.0
        %1369 = vmatprep.subr.mxu0 0.0
        %1370 = vmatpush1.xpose.msra.mxu0 0.0
        %1371 = vmatprep.subr.mxu0 0.0
        %1372 = vmatpush1.xpose.msra.mxu0 0.0
        %1373 = vmatprep.subr.mxu0 0.0
        %1374 = vmatpush1.xpose.msra.mxu0 0.0
        %1375 = vmatprep.subr.mxu0 0.0
        %1376 = vmatpush1.xpose.msra.mxu0 0.0
        %1377 = vmatprep.subr.mxu0 0.0
        %1378 = vmatpush1.xpose.msra.mxu0 0.0
        %1379 = vmatprep.subr.mxu0 0.0
        %1380 = vmatpush1.xpose.msra.mxu0 0.0
        %1381 = vmatprep.subr.mxu0 0.0
        %1382 = vmatpush1.xpose.msra.mxu0 0.0
        %1383 = vmatprep.subr.mxu0 0.0
        %1384 = vmatpush1.xpose.msra.mxu0 0.0
        %1385 = vmatprep.subr.mxu0 0.0
        %1386 = vmatpush1.xpose.msra.mxu0 0.0
        %1387 = vmatprep.subr.mxu0 0.0
        %1388 = vmatpush1.xpose.msra.mxu0 0.0
        %1389 = vmatprep.subr.mxu0 0.0
        %1390 = vmatpush1.xpose.msra.mxu0 0.0
        %1391 = vmatprep.subr.mxu0 0.0
        %1392 = vmatpush1.xpose.msra.mxu0 0.0
        %1393 = vmatprep.subr.mxu0 0.0
        %1394 = vmatpush1.xpose.msra.mxu0 0.0
        %1395 = vmatprep.subr.mxu0 0.0
        %1396 = vmatpush1.xpose.msra.mxu0 0.0
        %1397 = vmatprep.subr.mxu0 0.0
        %1398 = vmatpush1.xpose.msra.mxu0 0.0
        %1399 = vmatprep.subr.mxu0 0.0
        %1400 = vmatpush1.xpose.msra.mxu0 0.0
        %1401 = vmatprep.subr.mxu0 0.0
        %1402 = vmatpush1.xpose.msra.mxu0 0.0
        %1403 = vmatprep.subr.mxu0 0.0
        %1404 = vmatpush1.xpose.msra.mxu0 0.0
        %1405 = vmatprep.subr.mxu0 0.0
        %1406 = vmatpush1.xpose.msra.mxu0 0.0
        %1407 = vmatprep.subr.mxu0 0.0
        %1408 = vmatpush1.xpose.msra.mxu0 0.0
        %1409 = vmatprep.subr.mxu0 0.0
        %1410 = vmatpush1.xpose.msra.mxu0 0.0
        %1411 = vmatprep.subr.mxu0 0.0
        %1412 = vmatpush1.xpose.msra.mxu0 0.0
        %1413 = vmatprep.subr.mxu0 0.0
        %1414 = vmatpush1.xpose.msra.mxu0 0.0
        %1415 = vmatprep.subr.mxu0 0.0
        %1416 = vmatpush1.xpose.msra.mxu0 0.0
        %1417 = vmatprep.mubr.f32.mxu0 0.0
        %1418 = vmatmul.mubr.f32.gmra.mrb[0].mxu0 %v1347
        %v1419 = vpop.f32.mrb[0].mxu0
        %v1420 = vadd.f32 0.0, %v1419
        %v1421 = vpop.f32.mrb[0].mxu0
        %1422 = vmatprep.mubr.f32.mxu0 0.0
        %1423 = vmatmul.mubr.f32.gmra.mrb[0].mxu0 %v1349
        %v1424 = vpop.f32.mrb[0].mxu0
        %v1425 = vadd.f32 0.0, %v1424
        %v1426 = vpop.f32.mrb[0].mxu0
        %1427 = vdwg.mxu0
        %v1428 = vsel %vm804, %v1420, -inf
        %1429 = vmax.xlane.f32.xlu0 %v1428
        %v1430 = vpop.xlane.xlu0 %1429
        %v1431 = vsel %vm804, %v1425, -inf
        %1432 = vmax.xlane.f32.xlu0 %v1431
        %v1433 = vpop.xlane.xlu0 %1432
        %v1434 = vsub.f32 %v1420, %v1430
        %v1435 = vsub.f32 %v1425, %v1433
        %v1436 = vmul.f32 %v1434, 1.442695
        %v1437 = vpow.pop %v1436
        %v1438 = vmul.f32 %v1435, 1.442695
        %v1439 = vpow.pop %v1438
        %v1440 = vsel %vm804, %v1437, 0.0
        %1441 = vadd.xlane.f32.xlu0 %v1440
        %v1442 = vpop.xlane.xlu0 %1441
        %v1443 = vsel %vm804, %v1439, 0.0
        %1444 = vadd.xlane.f32.xlu0 %v1443
        %v1445 = vpop.xlane.xlu0 %1444
        %v1446 = vrcp.pop %v1442
        %v1447 = vmul.f32 %v1437, %v1446
        %v1448 = vrcp.pop %v1445
        %v1449 = vmul.f32 %v1439, %v1448
        %v1450 = vld [vmem:[%s527] sm:$0xff]
        %v1451 = vld [vmem:[%s527 + $0x8] sm:$0xff]
        %v1452 = vadd.f32 %v1450, %v1447
        %v1453 = vadd.f32 %v1451, %v1449
        %1454 = vst.msk [vmem:[%s527] sm:$0xff] %vm804, %v1452
        %1455 = vst.msk [vmem:[%s527 + $0x8] sm:$0xff] %vm804, %v1453
        %1456 = vrot.lane.b32.xlu0 %v1339, 84
        %v1457 = vpop.permute.xlu0 %1456
        %v1460 = vsel %vm804, %v1447, 0
        %v1463 = vsel %vm804, %v1449, 0
        %1465 = vmatprep.subr.mxu0 0.0
        %1466 = vmatpush1.msra.mxu0 %v1457
        %1467 = vmatprep.subr.mxu0 0.0
        %1468 = vmatpush1.msra.mxu0 0.0
        %1469 = vmatprep.subr.mxu0 0.0
        %1470 = vmatpush1.msra.mxu0 0.0
        %1471 = vmatprep.subr.mxu0 0.0
        %1472 = vmatpush1.msra.mxu0 0.0
        %1473 = vmatprep.subr.mxu0 0.0
        %1474 = vmatpush1.msra.mxu0 0.0
        %1475 = vmatprep.subr.mxu0 0.0
        %1476 = vmatpush1.msra.mxu0 0.0
        %1477 = vmatprep.subr.mxu0 0.0
        %1478 = vmatpush1.msra.mxu0 0.0
        %1479 = vmatprep.subr.mxu0 0.0
        %1480 = vmatpush1.msra.mxu0 0.0
        %1481 = vmatprep.subr.mxu0 0.0
        %1482 = vmatpush1.msra.mxu0 0.0
        %1483 = vmatprep.subr.mxu0 0.0
        %1484 = vmatpush1.msra.mxu0 0.0
        %1485 = vmatprep.subr.mxu0 0.0
        %1486 = vmatpush1.msra.mxu0 0.0
        %1487 = vmatprep.subr.mxu0 0.0
        %1488 = vmatpush1.msra.mxu0 0.0
        %1489 = vmatprep.subr.mxu0 0.0
        %1490 = vmatpush1.msra.mxu0 0.0
        %1491 = vmatprep.subr.mxu0 0.0
        %1492 = vmatpush1.msra.mxu0 0.0
        %1493 = vmatprep.subr.mxu0 0.0
        %1494 = vmatpush1.msra.mxu0 0.0
        %1495 = vmatprep.subr.mxu0 0.0
        %1496 = vmatpush1.msra.mxu0 0.0
        %1497 = vmatprep.subr.mxu0 0.0
        %1498 = vmatpush1.msra.mxu0 0.0
        %1499 = vmatprep.subr.mxu0 0.0
        %1500 = vmatpush1.msra.mxu0 0.0
        %1501 = vmatprep.subr.mxu0 0.0
        %1502 = vmatpush1.msra.mxu0 0.0
        %1503 = vmatprep.subr.mxu0 0.0
        %1504 = vmatpush1.msra.mxu0 0.0
        %1505 = vmatprep.subr.mxu0 0.0
        %1506 = vmatpush1.msra.mxu0 0.0
        %1507 = vmatprep.subr.mxu0 0.0
        %1508 = vmatpush1.msra.mxu0 0.0
        %1509 = vmatprep.subr.mxu0 0.0
        %1510 = vmatpush1.msra.mxu0 0.0
        %1511 = vmatprep.subr.mxu0 0.0
        %1512 = vmatpush1.msra.mxu0 0.0
        %1513 = vmatprep.subr.mxu0 0.0
        %1514 = vmatpush1.msra.mxu0 0.0
        %1515 = vmatprep.subr.mxu0 0.0
        %1516 = vmatpush1.msra.mxu0 0.0
        %1517 = vmatprep.subr.mxu0 0.0
        %1518 = vmatpush1.msra.mxu0 0.0
        %1519 = vmatprep.subr.mxu0 0.0
        %1520 = vmatpush1.msra.mxu0 0.0
        %1521 = vmatprep.subr.mxu0 0.0
        %1522 = vmatpush1.msra.mxu0 0.0
        %1523 = vmatprep.subr.mxu0 0.0
        %1524 = vmatpush1.msra.mxu0 0.0
        %1525 = vmatprep.subr.mxu0 0.0
        %1526 = vmatpush1.msra.mxu0 0.0
        %1527 = vmatprep.subr.mxu0 0.0
        %1528 = vmatpush1.msra.mxu0 0.0
        %1529 = vmatprep.mubr.f32.mxu0 0.0
        %1530 = vmatmul.mubr.f32.gmra.mrb[0].mxu0 %v1460
        %v1531 = vpop.f32.mrb[0].mxu0
        %v1532 = vadd.f32 0.0, %v1531
        %v1533 = vpop.f32.mrb[0].mxu0
        %1534 = vmatprep.mubr.f32.mxu0 0.0
        %1535 = vmatmul.mubr.f32.gmra.mrb[0].mxu0 %v1463
        %v1536 = vpop.f32.mrb[0].mxu0
        %v1537 = vadd.f32 0.0, %v1536
        %v1538 = vpop.f32.mrb[0].mxu0
        %1539 = vdwg.mxu0
        %1542 = vrot.lane.b32.xlu0 %v1532, 12
        %v1543 = vpop.permute.xlu0 %1542
        %1544 = vrot.lane.b32.xlu0 %v1537, 12
        %v1545 = vpop.permute.xlu0 %1544
        %vm1548 = vcmask 130144
        %1549 = vst.msk [vmem:[#allocation3] sm:$0xff] %vm1548, %v1543
        %1550 = vst.msk [vmem:[#allocation3 + $0x8] sm:$0xff] %vm1548, %v1545
        %v1551 = vld [vmem:[#allocation2] sm:$0xff]
        %1552 = vrot.lane.b32.xlu0 %v716, 112
        %v1553 = vpop.permute.xlu0 %1552
        %1554 = vrot.lane.b32.xlu0 %v717, 112
        %v1555 = vpop.permute.xlu0 %1554
        %1557 = vrot.lane.b32.xlu0 %v1551, 112
        %v1558 = vpop.permute.xlu0 %1557
        %v1559 = vsel %vm719, %v1553, 0
        %v1561 = vsel %vm719, %v1555, 0
        %v1563 = vsel %vm719, %v1558, 0
        %1565 = vmatprep.subr.mxu0 0.0
        %1566 = vmatpush1.xpose.msra.mxu0 %v1563
        %1567 = vmatprep.subr.mxu0 0.0
        %1568 = vmatpush1.xpose.msra.mxu0 0.0
        %1569 = vmatprep.subr.mxu0 0.0
        %1570 = vmatpush1.xpose.msra.mxu0 0.0
        %1571 = vmatprep.subr.mxu0 0.0
        %1572 = vmatpush1.xpose.msra.mxu0 0.0
        %1573 = vmatprep.subr.mxu0 0.0
        %1574 = vmatpush1.xpose.msra.mxu0 0.0
        %1575 = vmatprep.subr.mxu0 0.0
        %1576 = vmatpush1.xpose.msra.mxu0 0.0
        %1577 = vmatprep.subr.mxu0 0.0
        %1578 = vmatpush1.xpose.msra.mxu0 0.0
        %1579 = vmatprep.subr.mxu0 0.0
        %1580 = vmatpush1.xpose.msra.mxu0 0.0
        %1581 = vmatprep.subr.mxu0 0.0
        %1582 = vmatpush1.xpose.msra.mxu0 0.0
        %1583 = vmatprep.subr.mxu0 0.0
        %1584 = vmatpush1.xpose.msra.mxu0 0.0
        %1585 = vmatprep.subr.mxu0 0.0
        %1586 = vmatpush1.xpose.msra.mxu0 0.0
        %1587 = vmatprep.subr.mxu0 0.0
        %1588 = vmatpush1.xpose.msra.mxu0 0.0
        %1589 = vmatprep.subr.mxu0 0.0
        %1590 = vmatpush1.xpose.msra.mxu0 0.0
        %1591 = vmatprep.subr.mxu0 0.0
        %1592 = vmatpush1.xpose.msra.mxu0 0.0
        %1593 = vmatprep.subr.mxu0 0.0
        %1594 = vmatpush1.xpose.msra.mxu0 0.0
        %1595 = vmatprep.subr.mxu0 0.0
        %1596 = vmatpush1.xpose.msra.mxu0 0.0
        %1597 = vmatprep.subr.mxu0 0.0
        %1598 = vmatpush1.xpose.msra.mxu0 0.0
        %1599 = vmatprep.subr.mxu0 0.0
        %1600 = vmatpush1.xpose.msra.mxu0 0.0
        %1601 = vmatprep.subr.mxu0 0.0
        %1602 = vmatpush1.xpose.msra.mxu0 0.0
        %1603 = vmatprep.subr.mxu0 0.0
        %1604 = vmatpush1.xpose.msra.mxu0 0.0
        %1605 = vmatprep.subr.mxu0 0.0
        %1606 = vmatpush1.xpose.msra.mxu0 0.0
        %1607 = vmatprep.subr.mxu0 0.0
        %1608 = vmatpush1.xpose.msra.mxu0 0.0
        %1609 = vmatprep.subr.mxu0 0.0
        %1610 = vmatpush1.xpose.msra.mxu0 0.0
        %1611 = vmatprep.subr.mxu0 0.0
        %1612 = vmatpush1.xpose.msra.mxu0 0.0
        %1613 = vmatprep.subr.mxu0 0.0
        %1614 = vmatpush1.xpose.msra.mxu0 0.0
        %1615 = vmatprep.subr.mxu0 0.0
        %1616 = vmatpush1.xpose.msra.mxu0 0.0
        %1617 = vmatprep.subr.mxu0 0.0
        %1618 = vmatpush1.xpose.msra.mxu0 0.0
        %1619 = vmatprep.subr.mxu0 0.0
        %1620 = vmatpush1.xpose.msra.mxu0 0.0
        %1621 = vmatprep.subr.mxu0 0.0
        %1622 = vmatpush1.xpose.msra.mxu0 0.0
        %1623 = vmatprep.subr.mxu0 0.0
        %1624 = vmatpush1.xpose.msra.mxu0 0.0
        %1625 = vmatprep.subr.mxu0 0.0
        %1626 = vmatpush1.xpose.msra.mxu0 0.0
        %1627 = vmatprep.subr.mxu0 0.0
        %1628 = vmatpush1.xpose.msra.mxu0 0.0
        %1629 = vmatprep.mubr.f32.mxu0 0.0
        %1630 = vmatmul.mubr.f32.gmra.mrb[0].mxu0 %v1559
        %v1631 = vpop.f32.mrb[0].mxu0
        %v1632 = vadd.f32 0.0, %v1631
        %v1633 = vpop.f32.mrb[0].mxu0
        %1634 = vmatprep.mubr.f32.mxu0 0.0
        %1635 = vmatmul.mubr.f32.gmra.mrb[0].mxu0 %v1561
        %v1636 = vpop.f32.mrb[0].mxu0
        %v1637 = vadd.f32 0.0, %v1636
        %v1638 = vpop.f32.mrb[0].mxu0
        %1639 = vdwg.mxu0
        %v1640 = vsel %vm804, %v1632, -inf
        %1641 = vmax.xlane.f32.xlu0 %v1640
        %v1642 = vpop.xlane.xlu0 %1641
        %v1643 = vsel %vm804, %v1637, -inf
        %1644 = vmax.xlane.f32.xlu0 %v1643
        %v1645 = vpop.xlane.xlu0 %1644
        %v1646 = vsub.f32 %v1632, %v1642
        %v1647 = vsub.f32 %v1637, %v1645
        %v1648 = vmul.f32 %v1646, 1.442695
        %v1649 = vpow.pop %v1648
        %v1650 = vmul.f32 %v1647, 1.442695
        %v1651 = vpow.pop %v1650
        %v1652 = vsel %vm804, %v1649, 0.0
        %1653 = vadd.xlane.f32.xlu0 %v1652
        %v1654 = vpop.xlane.xlu0 %1653
        %v1655 = vsel %vm804, %v1651, 0.0
        %1656 = vadd.xlane.f32.xlu0 %v1655
        %v1657 = vpop.xlane.xlu0 %1656
        %v1658 = vrcp.pop %v1654
        %v1659 = vmul.f32 %v1649, %v1658
        %v1660 = vrcp.pop %v1657
        %v1661 = vmul.f32 %v1651, %v1660
        %v1662 = vld [vmem:[%s527] sm:$0xff]
        %v1663 = vld [vmem:[%s527 + $0x8] sm:$0xff]
        %v1664 = vadd.f32 %v1662, %v1659
        %v1665 = vadd.f32 %v1663, %v1661
        %1666 = vst.msk [vmem:[%s527] sm:$0xff] %vm804, %v1664
        %1667 = vst.msk [vmem:[%s527 + $0x8] sm:$0xff] %vm804, %v1665
        %1668 = vrot.lane.b32.xlu0 %v1551, 80
        %v1669 = vpop.permute.xlu0 %1668
        %v1672 = vsel %vm804, %v1659, 0
        %v1675 = vsel %vm804, %v1661, 0
        %1677 = vmatprep.subr.mxu0 0.0
        %1678 = vmatpush1.msra.mxu0 %v1669
        %1679 = vmatprep.subr.mxu0 0.0
        %1680 = vmatpush1.msra.mxu0 0.0
        %1681 = vmatprep.subr.mxu0 0.0
        %1682 = vmatpush1.msra.mxu0 0.0
        %1683 = vmatprep.subr.mxu0 0.0
        %1684 = vmatpush1.msra.mxu0 0.0
        %1685 = vmatprep.subr.mxu0 0.0
        %1686 = vmatpush1.msra.mxu0 0.0
        %1687 = vmatprep.subr.mxu0 0.0
        %1688 = vmatpush1.msra.mxu0 0.0
        %1689 = vmatprep.subr.mxu0 0.0
        %1690 = vmatpush1.msra.mxu0 0.0
        %1691 = vmatprep.subr.mxu0 0.0
        %1692 = vmatpush1.msra.mxu0 0.0
        %1693 = vmatprep.subr.mxu0 0.0
        %1694 = vmatpush1.msra.mxu0 0.0
        %1695 = vmatprep.subr.mxu0 0.0
        %1696 = vmatpush1.msra.mxu0 0.0
        %1697 = vmatprep.subr.mxu0 0.0
        %1698 = vmatpush1.msra.mxu0 0.0
        %1699 = vmatprep.subr.mxu0 0.0
        %1700 = vmatpush1.msra.mxu0 0.0
        %1701 = vmatprep.subr.mxu0 0.0
        %1702 = vmatpush1.msra.mxu0 0.0
        %1703 = vmatprep.subr.mxu0 0.0
        %1704 = vmatpush1.msra.mxu0 0.0
        %1705 = vmatprep.subr.mxu0 0.0
        %1706 = vmatpush1.msra.mxu0 0.0
        %1707 = vmatprep.subr.mxu0 0.0
        %1708 = vmatpush1.msra.mxu0 0.0
        %1709 = vmatprep.subr.mxu0 0.0
        %1710 = vmatpush1.msra.mxu0 0.0
        %1711 = vmatprep.subr.mxu0 0.0
        %1712 = vmatpush1.msra.mxu0 0.0
        %1713 = vmatprep.subr.mxu0 0.0
        %1714 = vmatpush1.msra.mxu0 0.0
        %1715 = vmatprep.subr.mxu0 0.0
        %1716 = vmatpush1.msra.mxu0 0.0
        %1717 = vmatprep.subr.mxu0 0.0
        %1718 = vmatpush1.msra.mxu0 0.0
        %1719 = vmatprep.subr.mxu0 0.0
        %1720 = vmatpush1.msra.mxu0 0.0
        %1721 = vmatprep.subr.mxu0 0.0
        %1722 = vmatpush1.msra.mxu0 0.0
        %1723 = vmatprep.subr.mxu0 0.0
        %1724 = vmatpush1.msra.mxu0 0.0
        %1725 = vmatprep.subr.mxu0 0.0
        %1726 = vmatpush1.msra.mxu0 0.0
        %1727 = vmatprep.subr.mxu0 0.0
        %1728 = vmatpush1.msra.mxu0 0.0
        %1729 = vmatprep.subr.mxu0 0.0
        %1730 = vmatpush1.msra.mxu0 0.0
        %1731 = vmatprep.subr.mxu0 0.0
        %1732 = vmatpush1.msra.mxu0 0.0
        %1733 = vmatprep.subr.mxu0 0.0
        %1734 = vmatpush1.msra.mxu0 0.0
        %1735 = vmatprep.subr.mxu0 0.0
        %1736 = vmatpush1.msra.mxu0 0.0
        %1737 = vmatprep.subr.mxu0 0.0
        %1738 = vmatpush1.msra.mxu0 0.0
        %1739 = vmatprep.subr.mxu0 0.0
        %1740 = vmatpush1.msra.mxu0 0.0
        %1741 = vmatprep.mubr.f32.mxu0 0.0
        %1742 = vmatmul.mubr.f32.gmra.mrb[0].mxu0 %v1672
        %v1743 = vpop.f32.mrb[0].mxu0
        %v1744 = vadd.f32 0.0, %v1743
        %v1745 = vpop.f32.mrb[0].mxu0
        %1746 = vmatprep.mubr.f32.mxu0 0.0
        %1747 = vmatmul.mubr.f32.gmra.mrb[0].mxu0 %v1675
        %v1748 = vpop.f32.mrb[0].mxu0
        %v1749 = vadd.f32 0.0, %v1748
        %v1750 = vpop.f32.mrb[0].mxu0
        %1751 = vdwg.mxu0
        %1754 = vrot.lane.b32.xlu0 %v1744, 16
        %v1755 = vpop.permute.xlu0 %1754
        %1756 = vrot.lane.b32.xlu0 %v1749, 16
        %v1757 = vpop.permute.xlu0 %1756
        %vm1760 = vcmask 162944
        %1761 = vst.msk [vmem:[#allocation3] sm:$0xff] %vm1760, %v1755
        %1762 = vst.msk [vmem:[#allocation3 + $0x8] sm:$0xff] %vm1760, %v1757
        %v1763 = vld [vmem:[#allocation2] sm:$0xff]
        %1764 = vrot.lane.b32.xlu0 %v716, 108
        %v1765 = vpop.permute.xlu0 %1764
        %1766 = vrot.lane.b32.xlu0 %v717, 108
        %v1767 = vpop.permute.xlu0 %1766
        %1769 = vrot.lane.b32.xlu0 %v1763, 108
        %v1770 = vpop.permute.xlu0 %1769
        %v1771 = vsel %vm719, %v1765, 0
        %v1773 = vsel %vm719, %v1767, 0
        %v1775 = vsel %vm719, %v1770, 0
        %1777 = vmatprep.subr.mxu0 0.0
        %1778 = vmatpush1.xpose.msra.mxu0 %v1775
        %1779 = vmatprep.subr.mxu0 0.0
        %1780 = vmatpush1.xpose.msra.mxu0 0.0
        %1781 = vmatprep.subr.mxu0 0.0
        %1782 = vmatpush1.xpose.msra.mxu0 0.0
        %1783 = vmatprep.subr.mxu0 0.0
        %1784 = vmatpush1.xpose.msra.mxu0 0.0
        %1785 = vmatprep.subr.mxu0 0.0
        %1786 = vmatpush1.xpose.msra.mxu0 0.0
        %1787 = vmatprep.subr.mxu0 0.0
        %1788 = vmatpush1.xpose.msra.mxu0 0.0
        %1789 = vmatprep.subr.mxu0 0.0
        %1790 = vmatpush1.xpose.msra.mxu0 0.0
        %1791 = vmatprep.subr.mxu0 0.0
        %1792 = vmatpush1.xpose.msra.mxu0 0.0
        %1793 = vmatprep.subr.mxu0 0.0
        %1794 = vmatpush1.xpose.msra.mxu0 0.0
        %1795 = vmatprep.subr.mxu0 0.0
        %1796 = vmatpush1.xpose.msra.mxu0 0.0
        %1797 = vmatprep.subr.mxu0 0.0
        %1798 = vmatpush1.xpose.msra.mxu0 0.0
        %1799 = vmatprep.subr.mxu0 0.0
        %1800 = vmatpush1.xpose.msra.mxu0 0.0
        %1801 = vmatprep.subr.mxu0 0.0
        %1802 = vmatpush1.xpose.msra.mxu0 0.0
        %1803 = vmatprep.subr.mxu0 0.0
        %1804 = vmatpush1.xpose.msra.mxu0 0.0
        %1805 = vmatprep.subr.mxu0 0.0
        %1806 = vmatpush1.xpose.msra.mxu0 0.0
        %1807 = vmatprep.subr.mxu0 0.0
        %1808 = vmatpush1.xpose.msra.mxu0 0.0
        %1809 = vmatprep.subr.mxu0 0.0
        %1810 = vmatpush1.xpose.msra.mxu0 0.0
        %1811 = vmatprep.subr.mxu0 0.0
        %1812 = vmatpush1.xpose.msra.mxu0 0.0
        %1813 = vmatprep.subr.mxu0 0.0
        %1814 = vmatpush1.xpose.msra.mxu0 0.0
        %1815 = vmatprep.subr.mxu0 0.0
        %1816 = vmatpush1.xpose.msra.mxu0 0.0
        %1817 = vmatprep.subr.mxu0 0.0
        %1818 = vmatpush1.xpose.msra.mxu0 0.0
        %1819 = vmatprep.subr.mxu0 0.0
        %1820 = vmatpush1.xpose.msra.mxu0 0.0
        %1821 = vmatprep.subr.mxu0 0.0
        %1822 = vmatpush1.xpose.msra.mxu0 0.0
        %1823 = vmatprep.subr.mxu0 0.0
        %1824 = vmatpush1.xpose.msra.mxu0 0.0
        %1825 = vmatprep.subr.mxu0 0.0
        %1826 = vmatpush1.xpose.msra.mxu0 0.0
        %1827 = vmatprep.subr.mxu0 0.0
        %1828 = vmatpush1.xpose.msra.mxu0 0.0
        %1829 = vmatprep.subr.mxu0 0.0
        %1830 = vmatpush1.xpose.msra.mxu0 0.0
        %1831 = vmatprep.subr.mxu0 0.0
        %1832 = vmatpush1.xpose.msra.mxu0 0.0
        %1833 = vmatprep.subr.mxu0 0.0
        %1834 = vmatpush1.xpose.msra.mxu0 0.0
        %1835 = vmatprep.subr.mxu0 0.0
        %1836 = vmatpush1.xpose.msra.mxu0 0.0
        %1837 = vmatprep.subr.mxu0 0.0
        %1838 = vmatpush1.xpose.msra.mxu0 0.0
        %1839 = vmatprep.subr.mxu0 0.0
        %1840 = vmatpush1.xpose.msra.mxu0 0.0
        %1841 = vmatprep.mubr.f32.mxu0 0.0
        %1842 = vmatmul.mubr.f32.gmra.mrb[0].mxu0 %v1771
        %v1843 = vpop.f32.mrb[0].mxu0
        %v1844 = vadd.f32 0.0, %v1843
        %v1845 = vpop.f32.mrb[0].mxu0
        %1846 = vmatprep.mubr.f32.mxu0 0.0
        %1847 = vmatmul.mubr.f32.gmra.mrb[0].mxu0 %v1773
        %v1848 = vpop.f32.mrb[0].mxu0
        %v1849 = vadd.f32 0.0, %v1848
        %v1850 = vpop.f32.mrb[0].mxu0
        %1851 = vdwg.mxu0
        %v1852 = vsel %vm804, %v1844, -inf
        %1853 = vmax.xlane.f32.xlu0 %v1852
        %v1854 = vpop.xlane.xlu0 %1853
        %v1855 = vsel %vm804, %v1849, -inf
        %1856 = vmax.xlane.f32.xlu0 %v1855
        %v1857 = vpop.xlane.xlu0 %1856
        %v1858 = vsub.f32 %v1844, %v1854
        %v1859 = vsub.f32 %v1849, %v1857
        %v1860 = vmul.f32 %v1858, 1.442695
        %v1861 = vpow.pop %v1860
        %v1862 = vmul.f32 %v1859, 1.442695
        %v1863 = vpow.pop %v1862
        %v1864 = vsel %vm804, %v1861, 0.0
        %1865 = vadd.xlane.f32.xlu0 %v1864
        %v1866 = vpop.xlane.xlu0 %1865
        %v1867 = vsel %vm804, %v1863, 0.0
        %1868 = vadd.xlane.f32.xlu0 %v1867
        %v1869 = vpop.xlane.xlu0 %1868
        %v1870 = vrcp.pop %v1866
        %v1871 = vmul.f32 %v1861, %v1870
        %v1872 = vrcp.pop %v1869
        %v1873 = vmul.f32 %v1863, %v1872
        %v1874 = vld [vmem:[%s527] sm:$0xff]
        %v1875 = vld [vmem:[%s527 + $0x8] sm:$0xff]
        %v1876 = vadd.f32 %v1874, %v1871
        %v1877 = vadd.f32 %v1875, %v1873
        %1878 = vst.msk [vmem:[%s527] sm:$0xff] %vm804, %v1876
        %1879 = vst.msk [vmem:[%s527 + $0x8] sm:$0xff] %vm804, %v1877
        %1880 = vrot.lane.b32.xlu0 %v1763, 76
        %v1881 = vpop.permute.xlu0 %1880
        %v1884 = vsel %vm804, %v1871, 0
        %v1887 = vsel %vm804, %v1873, 0
        %1889 = vmatprep.subr.mxu0 0.0
        %1890 = vmatpush1.msra.mxu0 %v1881
        %1891 = vmatprep.subr.mxu0 0.0
        %1892 = vmatpush1.msra.mxu0 0.0
        %1893 = vmatprep.subr.mxu0 0.0
        %1894 = vmatpush1.msra.mxu0 0.0
        %1895 = vmatprep.subr.mxu0 0.0
        %1896 = vmatpush1.msra.mxu0 0.0
        %1897 = vmatprep.subr.mxu0 0.0
        %1898 = vmatpush1.msra.mxu0 0.0
        %1899 = vmatprep.subr.mxu0 0.0
        %1900 = vmatpush1.msra.mxu0 0.0
        %1901 = vmatprep.subr.mxu0 0.0
        %1902 = vmatpush1.msra.mxu0 0.0
        %1903 = vmatprep.subr.mxu0 0.0
        %1904 = vmatpush1.msra.mxu0 0.0
        %1905 = vmatprep.subr.mxu0 0.0
        %1906 = vmatpush1.msra.mxu0 0.0
        %1907 = vmatprep.subr.mxu0 0.0
        %1908 = vmatpush1.msra.mxu0 0.0
        %1909 = vmatprep.subr.mxu0 0.0
        %1910 = vmatpush1.msra.mxu0 0.0
        %1911 = vmatprep.subr.mxu0 0.0
        %1912 = vmatpush1.msra.mxu0 0.0
        %1913 = vmatprep.subr.mxu0 0.0
        %1914 = vmatpush1.msra.mxu0 0.0
        %1915 = vmatprep.subr.mxu0 0.0
        %1916 = vmatpush1.msra.mxu0 0.0
        %1917 = vmatprep.subr.mxu0 0.0
        %1918 = vmatpush1.msra.mxu0 0.0
        %1919 = vmatprep.subr.mxu0 0.0
        %1920 = vmatpush1.msra.mxu0 0.0
        %1921 = vmatprep.subr.mxu0 0.0
        %1922 = vmatpush1.msra.mxu0 0.0
        %1923 = vmatprep.subr.mxu0 0.0
        %1924 = vmatpush1.msra.mxu0 0.0
        %1925 = vmatprep.subr.mxu0 0.0
        %1926 = vmatpush1.msra.mxu0 0.0
        %1927 = vmatprep.subr.mxu0 0.0
        %1928 = vmatpush1.msra.mxu0 0.0
        %1929 = vmatprep.subr.mxu0 0.0
        %1930 = vmatpush1.msra.mxu0 0.0
        %1931 = vmatprep.subr.mxu0 0.0
        %1932 = vmatpush1.msra.mxu0 0.0
        %1933 = vmatprep.subr.mxu0 0.0
        %1934 = vmatpush1.msra.mxu0 0.0
        %1935 = vmatprep.subr.mxu0 0.0
        %1936 = vmatpush1.msra.mxu0 0.0
        %1937 = vmatprep.subr.mxu0 0.0
        %1938 = vmatpush1.msra.mxu0 0.0
        %1939 = vmatprep.subr.mxu0 0.0
        %1940 = vmatpush1.msra.mxu0 0.0
        %1941 = vmatprep.subr.mxu0 0.0
        %1942 = vmatpush1.msra.mxu0 0.0
        %1943 = vmatprep.subr.mxu0 0.0
        %1944 = vmatpush1.msra.mxu0 0.0
        %1945 = vmatprep.subr.mxu0 0.0
        %1946 = vmatpush1.msra.mxu0 0.0
        %1947 = vmatprep.subr.mxu0 0.0
        %1948 = vmatpush1.msra.mxu0 0.0
        %1949 = vmatprep.subr.mxu0 0.0
        %1950 = vmatpush1.msra.mxu0 0.0
        %1951 = vmatprep.subr.mxu0 0.0
        %1952 = vmatpush1.msra.mxu0 0.0
        %1953 = vmatprep.mubr.f32.mxu0 0.0
        %1954 = vmatmul.mubr.f32.gmra.mrb[0].mxu0 %v1884
        %v1955 = vpop.f32.mrb[0].mxu0
        %v1956 = vadd.f32 0.0, %v1955
        %v1957 = vpop.f32.mrb[0].mxu0
        %1958 = vmatprep.mubr.f32.mxu0 0.0
        %1959 = vmatmul.mubr.f32.gmra.mrb[0].mxu0 %v1887
        %v1960 = vpop.f32.mrb[0].mxu0
        %v1961 = vadd.f32 0.0, %v1960
        %v1962 = vpop.f32.mrb[0].mxu0
        %1963 = vdwg.mxu0
        %1966 = vrot.lane.b32.xlu0 %v1956, 20
        %v1967 = vpop.permute.xlu0 %1966
        %1968 = vrot.lane.b32.xlu0 %v1961, 20
        %v1969 = vpop.permute.xlu0 %1968
        %vm1972 = vcmask 195744
        %1973 = vst.msk [vmem:[#allocation3] sm:$0xff] %vm1972, %v1967
        %1974 = vst.msk [vmem:[#allocation3 + $0x8] sm:$0xff] %vm1972, %v1969
        %v1975 = vld [vmem:[#allocation2] sm:$0xff]
        %1976 = vrot.lane.b32.xlu0 %v716, 104
        %v1977 = vpop.permute.xlu0 %1976
        %1978 = vrot.lane.b32.xlu0 %v717, 104
        %v1979 = vpop.permute.xlu0 %1978
        %1981 = vrot.lane.b32.xlu0 %v1975, 104
        %v1982 = vpop.permute.xlu0 %1981
        %v1983 = vsel %vm719, %v1977, 0
        %v1985 = vsel %vm719, %v1979, 0
        %v1987 = vsel %vm719, %v1982, 0
        %1989 = vmatprep.subr.mxu0 0.0
        %1990 = vmatpush1.xpose.msra.mxu0 %v1987
        %1991 = vmatprep.subr.mxu0 0.0
        %1992 = vmatpush1.xpose.msra.mxu0 0.0
        %1993 = vmatprep.subr.mxu0 0.0
        %1994 = vmatpush1.xpose.msra.mxu0 0.0
        %1995 = vmatprep.subr.mxu0 0.0
        %1996 = vmatpush1.xpose.msra.mxu0 0.0
        %1997 = vmatprep.subr.mxu0 0.0
        %1998 = vmatpush1.xpose.msra.mxu0 0.0
        %1999 = vmatprep.subr.mxu0 0.0
        %2000 = vmatpush1.xpose.msra.mxu0 0.0
        %2001 = vmatprep.subr.mxu0 0.0
        %2002 = vmatpush1.xpose.msra.mxu0 0.0
        %2003 = vmatprep.subr.mxu0 0.0
        %2004 = vmatpush1.xpose.msra.mxu0 0.0
        %2005 = vmatprep.subr.mxu0 0.0
        %2006 = vmatpush1.xpose.msra.mxu0 0.0
        %2007 = vmatprep.subr.mxu0 0.0
        %2008 = vmatpush1.xpose.msra.mxu0 0.0
        %2009 = vmatprep.subr.mxu0 0.0
        %2010 = vmatpush1.xpose.msra.mxu0 0.0
        %2011 = vmatprep.subr.mxu0 0.0
        %2012 = vmatpush1.xpose.msra.mxu0 0.0
        %2013 = vmatprep.subr.mxu0 0.0
        %2014 = vmatpush1.xpose.msra.mxu0 0.0
        %2015 = vmatprep.subr.mxu0 0.0
        %2016 = vmatpush1.xpose.msra.mxu0 0.0
        %2017 = vmatprep.subr.mxu0 0.0
        %2018 = vmatpush1.xpose.msra.mxu0 0.0
        %2019 = vmatprep.subr.mxu0 0.0
        %2020 = vmatpush1.xpose.msra.mxu0 0.0
        %2021 = vmatprep.subr.mxu0 0.0
        %2022 = vmatpush1.xpose.msra.mxu0 0.0
        %2023 = vmatprep.subr.mxu0 0.0
        %2024 = vmatpush1.xpose.msra.mxu0 0.0
        %2025 = vmatprep.subr.mxu0 0.0
        %2026 = vmatpush1.xpose.msra.mxu0 0.0
        %2027 = vmatprep.subr.mxu0 0.0
        %2028 = vmatpush1.xpose.msra.mxu0 0.0
        %2029 = vmatprep.subr.mxu0 0.0
        %2030 = vmatpush1.xpose.msra.mxu0 0.0
        %2031 = vmatprep.subr.mxu0 0.0
        %2032 = vmatpush1.xpose.msra.mxu0 0.0
        %2033 = vmatprep.subr.mxu0 0.0
        %2034 = vmatpush1.xpose.msra.mxu0 0.0
        %2035 = vmatprep.subr.mxu0 0.0
        %2036 = vmatpush1.xpose.msra.mxu0 0.0
        %2037 = vmatprep.subr.mxu0 0.0
        %2038 = vmatpush1.xpose.msra.mxu0 0.0
        %2039 = vmatprep.subr.mxu0 0.0
        %2040 = vmatpush1.xpose.msra.mxu0 0.0
        %2041 = vmatprep.subr.mxu0 0.0
        %2042 = vmatpush1.xpose.msra.mxu0 0.0
        %2043 = vmatprep.subr.mxu0 0.0
        %2044 = vmatpush1.xpose.msra.mxu0 0.0
        %2045 = vmatprep.subr.mxu0 0.0
        %2046 = vmatpush1.xpose.msra.mxu0 0.0
        %2047 = vmatprep.subr.mxu0 0.0
        %2048 = vmatpush1.xpose.msra.mxu0 0.0
        %2049 = vmatprep.subr.mxu0 0.0
        %2050 = vmatpush1.xpose.msra.mxu0 0.0
        %2051 = vmatprep.subr.mxu0 0.0
        %2052 = vmatpush1.xpose.msra.mxu0 0.0
        %2053 = vmatprep.mubr.f32.mxu0 0.0
        %2054 = vmatmul.mubr.f32.gmra.mrb[0].mxu0 %v1983
        %v2055 = vpop.f32.mrb[0].mxu0
        %v2056 = vadd.f32 0.0, %v2055
        %v2057 = vpop.f32.mrb[0].mxu0
        %2058 = vmatprep.mubr.f32.mxu0 0.0
        %2059 = vmatmul.mubr.f32.gmra.mrb[0].mxu0 %v1985
        %v2060 = vpop.f32.mrb[0].mxu0
        %v2061 = vadd.f32 0.0, %v2060
        %v2062 = vpop.f32.mrb[0].mxu0
        %2063 = vdwg.mxu0
        %v2064 = vsel %vm804, %v2056, -inf
        %2065 = vmax.xlane.f32.xlu0 %v2064
        %v2066 = vpop.xlane.xlu0 %2065
        %v2067 = vsel %vm804, %v2061, -inf
        %2068 = vmax.xlane.f32.xlu0 %v2067
        %v2069 = vpop.xlane.xlu0 %2068
        %v2070 = vsub.f32 %v2056, %v2066
        %v2071 = vsub.f32 %v2061, %v2069
        %v2072 = vmul.f32 %v2070, 1.442695
        %v2073 = vpow.pop %v2072
        %v2074 = vmul.f32 %v2071, 1.442695
        %v2075 = vpow.pop %v2074
        %v2076 = vsel %vm804, %v2073, 0.0
        %2077 = vadd.xlane.f32.xlu0 %v2076
        %v2078 = vpop.xlane.xlu0 %2077
        %v2079 = vsel %vm804, %v2075, 0.0
        %2080 = vadd.xlane.f32.xlu0 %v2079
        %v2081 = vpop.xlane.xlu0 %2080
        %v2082 = vrcp.pop %v2078
        %v2083 = vmul.f32 %v2073, %v2082
        %v2084 = vrcp.pop %v2081
        %v2085 = vmul.f32 %v2075, %v2084
        %v2086 = vld [vmem:[%s527] sm:$0xff]
        %v2087 = vld [vmem:[%s527 + $0x8] sm:$0xff]
        %v2088 = vadd.f32 %v2086, %v2083
        %v2089 = vadd.f32 %v2087, %v2085
        %2090 = vst.msk [vmem:[%s527] sm:$0xff] %vm804, %v2088
        %2091 = vst.msk [vmem:[%s527 + $0x8] sm:$0xff] %vm804, %v2089
        %2092 = vrot.lane.b32.xlu0 %v1975, 72
        %v2093 = vpop.permute.xlu0 %2092
        %v2096 = vsel %vm804, %v2083, 0
        %v2099 = vsel %vm804, %v2085, 0
        %2101 = vmatprep.subr.mxu0 0.0
        %2102 = vmatpush1.msra.mxu0 %v2093
        %2103 = vmatprep.subr.mxu0 0.0
        %2104 = vmatpush1.msra.mxu0 0.0
        %2105 = vmatprep.subr.mxu0 0.0
        %2106 = vmatpush1.msra.mxu0 0.0
        %2107 = vmatprep.subr.mxu0 0.0
        %2108 = vmatpush1.msra.mxu0 0.0
        %2109 = vmatprep.subr.mxu0 0.0
        %2110 = vmatpush1.msra.mxu0 0.0
        %2111 = vmatprep.subr.mxu0 0.0
        %2112 = vmatpush1.msra.mxu0 0.0
        %2113 = vmatprep.subr.mxu0 0.0
        %2114 = vmatpush1.msra.mxu0 0.0
        %2115 = vmatprep.subr.mxu0 0.0
        %2116 = vmatpush1.msra.mxu0 0.0
        %2117 = vmatprep.subr.mxu0 0.0
        %2118 = vmatpush1.msra.mxu0 0.0
        %2119 = vmatprep.subr.mxu0 0.0
        %2120 = vmatpush1.msra.mxu0 0.0
        %2121 = vmatprep.subr.mxu0 0.0
        %2122 = vmatpush1.msra.mxu0 0.0
        %2123 = vmatprep.subr.mxu0 0.0
        %2124 = vmatpush1.msra.mxu0 0.0
        %2125 = vmatprep.subr.mxu0 0.0
        %2126 = vmatpush1.msra.mxu0 0.0
        %2127 = vmatprep.subr.mxu0 0.0
        %2128 = vmatpush1.msra.mxu0 0.0
        %2129 = vmatprep.subr.mxu0 0.0
        %2130 = vmatpush1.msra.mxu0 0.0
        %2131 = vmatprep.subr.mxu0 0.0
        %2132 = vmatpush1.msra.mxu0 0.0
        %2133 = vmatprep.subr.mxu0 0.0
        %2134 = vmatpush1.msra.mxu0 0.0
        %2135 = vmatprep.subr.mxu0 0.0
        %2136 = vmatpush1.msra.mxu0 0.0
        %2137 = vmatprep.subr.mxu0 0.0
        %2138 = vmatpush1.msra.mxu0 0.0
        %2139 = vmatprep.subr.mxu0 0.0
        %2140 = vmatpush1.msra.mxu0 0.0
        %2141 = vmatprep.subr.mxu0 0.0
        %2142 = vmatpush1.msra.mxu0 0.0
        %2143 = vmatprep.subr.mxu0 0.0
        %2144 = vmatpush1.msra.mxu0 0.0
        %2145 = vmatprep.subr.mxu0 0.0
        %2146 = vmatpush1.msra.mxu0 0.0
        %2147 = vmatprep.subr.mxu0 0.0
        %2148 = vmatpush1.msra.mxu0 0.0
        %2149 = vmatprep.subr.mxu0 0.0
        %2150 = vmatpush1.msra.mxu0 0.0
        %2151 = vmatprep.subr.mxu0 0.0
        %2152 = vmatpush1.msra.mxu0 0.0
        %2153 = vmatprep.subr.mxu0 0.0
        %2154 = vmatpush1.msra.mxu0 0.0
        %2155 = vmatprep.subr.mxu0 0.0
        %2156 = vmatpush1.msra.mxu0 0.0
        %2157 = vmatprep.subr.mxu0 0.0
        %2158 = vmatpush1.msra.mxu0 0.0
        %2159 = vmatprep.subr.mxu0 0.0
        %2160 = vmatpush1.msra.mxu0 0.0
        %2161 = vmatprep.subr.mxu0 0.0
        %2162 = vmatpush1.msra.mxu0 0.0
        %2163 = vmatprep.subr.mxu0 0.0
        %2164 = vmatpush1.msra.mxu0 0.0
        %2165 = vmatprep.mubr.f32.mxu0 0.0
        %2166 = vmatmul.mubr.f32.gmra.mrb[0].mxu0 %v2096
        %v2167 = vpop.f32.mrb[0].mxu0
        %v2168 = vadd.f32 0.0, %v2167
        %v2169 = vpop.f32.mrb[0].mxu0
        %2170 = vmatprep.mubr.f32.mxu0 0.0
        %2171 = vmatmul.mubr.f32.gmra.mrb[0].mxu0 %v2099
        %v2172 = vpop.f32.mrb[0].mxu0
        %v2173 = vadd.f32 0.0, %v2172
        %v2174 = vpop.f32.mrb[0].mxu0
        %2175 = vdwg.mxu0
        %2178 = vrot.lane.b32.xlu0 %v2168, 24
        %v2179 = vpop.permute.xlu0 %2178
        %2180 = vrot.lane.b32.xlu0 %v2173, 24
        %v2181 = vpop.permute.xlu0 %2180
        %vm2184 = vcmask 228544
        %2185 = vst.msk [vmem:[#allocation3] sm:$0xff] %vm2184, %v2179
        %2186 = vst.msk [vmem:[#allocation3 + $0x8] sm:$0xff] %vm2184, %v2181
        %v2187 = vld [vmem:[#allocation2] sm:$0xff]
        %2188 = vrot.lane.b32.xlu0 %v716, 100
        %v2189 = vpop.permute.xlu0 %2188
        %2190 = vrot.lane.b32.xlu0 %v717, 100
        %v2191 = vpop.permute.xlu0 %2190
        %2193 = vrot.lane.b32.xlu0 %v2187, 100
        %v2194 = vpop.permute.xlu0 %2193
        %v2195 = vsel %vm719, %v2189, 0
        %v2197 = vsel %vm719, %v2191, 0
        %v2199 = vsel %vm719, %v2194, 0
        %2201 = vmatprep.subr.mxu0 0.0
        %2202 = vmatpush1.xpose.msra.mxu0 %v2199
        %2203 = vmatprep.subr.mxu0 0.0
        %2204 = vmatpush1.xpose.msra.mxu0 0.0
        %2205 = vmatprep.subr.mxu0 0.0
        %2206 = vmatpush1.xpose.msra.mxu0 0.0
        %2207 = vmatprep.subr.mxu0 0.0
        %2208 = vmatpush1.xpose.msra.mxu0 0.0
        %2209 = vmatprep.subr.mxu0 0.0
        %2210 = vmatpush1.xpose.msra.mxu0 0.0
        %2211 = vmatprep.subr.mxu0 0.0
        %2212 = vmatpush1.xpose.msra.mxu0 0.0
        %2213 = vmatprep.subr.mxu0 0.0
        %2214 = vmatpush1.xpose.msra.mxu0 0.0
        %2215 = vmatprep.subr.mxu0 0.0
        %2216 = vmatpush1.xpose.msra.mxu0 0.0
        %2217 = vmatprep.subr.mxu0 0.0
        %2218 = vmatpush1.xpose.msra.mxu0 0.0
        %2219 = vmatprep.subr.mxu0 0.0
        %2220 = vmatpush1.xpose.msra.mxu0 0.0
        %2221 = vmatprep.subr.mxu0 0.0
        %2222 = vmatpush1.xpose.msra.mxu0 0.0
        %2223 = vmatprep.subr.mxu0 0.0
        %2224 = vmatpush1.xpose.msra.mxu0 0.0
        %2225 = vmatprep.subr.mxu0 0.0
        %2226 = vmatpush1.xpose.msra.mxu0 0.0
        %2227 = vmatprep.subr.mxu0 0.0
        %2228 = vmatpush1.xpose.msra.mxu0 0.0
        %2229 = vmatprep.subr.mxu0 0.0
        %2230 = vmatpush1.xpose.msra.mxu0 0.0
        %2231 = vmatprep.subr.mxu0 0.0
        %2232 = vmatpush1.xpose.msra.mxu0 0.0
        %2233 = vmatprep.subr.mxu0 0.0
        %2234 = vmatpush1.xpose.msra.mxu0 0.0
        %2235 = vmatprep.subr.mxu0 0.0
        %2236 = vmatpush1.xpose.msra.mxu0 0.0
        %2237 = vmatprep.subr.mxu0 0.0
        %2238 = vmatpush1.xpose.msra.mxu0 0.0
        %2239 = vmatprep.subr.mxu0 0.0
        %2240 = vmatpush1.xpose.msra.mxu0 0.0
        %2241 = vmatprep.subr.mxu0 0.0
        %2242 = vmatpush1.xpose.msra.mxu0 0.0
        %2243 = vmatprep.subr.mxu0 0.0
        %2244 = vmatpush1.xpose.msra.mxu0 0.0
        %2245 = vmatprep.subr.mxu0 0.0
        %2246 = vmatpush1.xpose.msra.mxu0 0.0
        %2247 = vmatprep.subr.mxu0 0.0
        %2248 = vmatpush1.xpose.msra.mxu0 0.0
        %2249 = vmatprep.subr.mxu0 0.0
        %2250 = vmatpush1.xpose.msra.mxu0 0.0
        %2251 = vmatprep.subr.mxu0 0.0
        %2252 = vmatpush1.xpose.msra.mxu0 0.0
        %2253 = vmatprep.subr.mxu0 0.0
        %2254 = vmatpush1.xpose.msra.mxu0 0.0
        %2255 = vmatprep.subr.mxu0 0.0
        %2256 = vmatpush1.xpose.msra.mxu0 0.0
        %2257 = vmatprep.subr.mxu0 0.0
        %2258 = vmatpush1.xpose.msra.mxu0 0.0
        %2259 = vmatprep.subr.mxu0 0.0
        %2260 = vmatpush1.xpose.msra.mxu0 0.0
        %2261 = vmatprep.subr.mxu0 0.0
        %2262 = vmatpush1.xpose.msra.mxu0 0.0
        %2263 = vmatprep.subr.mxu0 0.0
        %2264 = vmatpush1.xpose.msra.mxu0 0.0
        %2265 = vmatprep.mubr.f32.mxu0 0.0
        %2266 = vmatmul.mubr.f32.gmra.mrb[0].mxu0 %v2195
        %v2267 = vpop.f32.mrb[0].mxu0
        %v2268 = vadd.f32 0.0, %v2267
        %v2269 = vpop.f32.mrb[0].mxu0
        %2270 = vmatprep.mubr.f32.mxu0 0.0
        %2271 = vmatmul.mubr.f32.gmra.mrb[0].mxu0 %v2197
        %v2272 = vpop.f32.mrb[0].mxu0
        %v2273 = vadd.f32 0.0, %v2272
        %v2274 = vpop.f32.mrb[0].mxu0
        %2275 = vdwg.mxu0
        %v2276 = vsel %vm804, %v2268, -inf
        %2277 = vmax.xlane.f32.xlu0 %v2276
        %v2278 = vpop.xlane.xlu0 %2277
        %v2279 = vsel %vm804, %v2273, -inf
        %2280 = vmax.xlane.f32.xlu0 %v2279
        %v2281 = vpop.xlane.xlu0 %2280
        %v2282 = vsub.f32 %v2268, %v2278
        %v2283 = vsub.f32 %v2273, %v2281
        %v2284 = vmul.f32 %v2282, 1.442695
        %v2285 = vpow.pop %v2284
        %v2286 = vmul.f32 %v2283, 1.442695
        %v2287 = vpow.pop %v2286
        %v2288 = vsel %vm804, %v2285, 0.0
        %2289 = vadd.xlane.f32.xlu0 %v2288
        %v2290 = vpop.xlane.xlu0 %2289
        %v2291 = vsel %vm804, %v2287, 0.0
        %2292 = vadd.xlane.f32.xlu0 %v2291
        %v2293 = vpop.xlane.xlu0 %2292
        %v2294 = vrcp.pop %v2290
        %v2295 = vmul.f32 %v2285, %v2294
        %v2296 = vrcp.pop %v2293
        %v2297 = vmul.f32 %v2287, %v2296
        %v2298 = vld [vmem:[%s527] sm:$0xff]
        %v2299 = vld [vmem:[%s527 + $0x8] sm:$0xff]
        %v2300 = vadd.f32 %v2298, %v2295
        %v2301 = vadd.f32 %v2299, %v2297
        %2302 = vst.msk [vmem:[%s527] sm:$0xff] %vm804, %v2300
        %2303 = vst.msk [vmem:[%s527 + $0x8] sm:$0xff] %vm804, %v2301
        %2304 = vrot.lane.b32.xlu0 %v2187, 68
        %v2305 = vpop.permute.xlu0 %2304
        %v2308 = vsel %vm804, %v2295, 0
        %v2311 = vsel %vm804, %v2297, 0
        %2313 = vmatprep.subr.mxu0 0.0
        %2314 = vmatpush1.msra.mxu0 %v2305
        %2315 = vmatprep.subr.mxu0 0.0
        %2316 = vmatpush1.msra.mxu0 0.0
        %2317 = vmatprep.subr.mxu0 0.0
        %2318 = vmatpush1.msra.mxu0 0.0
        %2319 = vmatprep.subr.mxu0 0.0
        %2320 = vmatpush1.msra.mxu0 0.0
        %2321 = vmatprep.subr.mxu0 0.0
        %2322 = vmatpush1.msra.mxu0 0.0
        %2323 = vmatprep.subr.mxu0 0.0
        %2324 = vmatpush1.msra.mxu0 0.0
        %2325 = vmatprep.subr.mxu0 0.0
        %2326 = vmatpush1.msra.mxu0 0.0
        %2327 = vmatprep.subr.mxu0 0.0
        %2328 = vmatpush1.msra.mxu0 0.0
        %2329 = vmatprep.subr.mxu0 0.0
        %2330 = vmatpush1.msra.mxu0 0.0
        %2331 = vmatprep.subr.mxu0 0.0
        %2332 = vmatpush1.msra.mxu0 0.0
        %2333 = vmatprep.subr.mxu0 0.0
        %2334 = vmatpush1.msra.mxu0 0.0
        %2335 = vmatprep.subr.mxu0 0.0
        %2336 = vmatpush1.msra.mxu0 0.0
        %2337 = vmatprep.subr.mxu0 0.0
        %2338 = vmatpush1.msra.mxu0 0.0
        %2339 = vmatprep.subr.mxu0 0.0
        %2340 = vmatpush1.msra.mxu0 0.0
        %2341 = vmatprep.subr.mxu0 0.0
        %2342 = vmatpush1.msra.mxu0 0.0
        %2343 = vmatprep.subr.mxu0 0.0
        %2344 = vmatpush1.msra.mxu0 0.0
        %2345 = vmatprep.subr.mxu0 0.0
        %2346 = vmatpush1.msra.mxu0 0.0
        %2347 = vmatprep.subr.mxu0 0.0
        %2348 = vmatpush1.msra.mxu0 0.0
        %2349 = vmatprep.subr.mxu0 0.0
        %2350 = vmatpush1.msra.mxu0 0.0
        %2351 = vmatprep.subr.mxu0 0.0
        %2352 = vmatpush1.msra.mxu0 0.0
        %2353 = vmatprep.subr.mxu0 0.0
        %2354 = vmatpush1.msra.mxu0 0.0
        %2355 = vmatprep.subr.mxu0 0.0
        %2356 = vmatpush1.msra.mxu0 0.0
        %2357 = vmatprep.subr.mxu0 0.0
        %2358 = vmatpush1.msra.mxu0 0.0
        %2359 = vmatprep.subr.mxu0 0.0
        %2360 = vmatpush1.msra.mxu0 0.0
        %2361 = vmatprep.subr.mxu0 0.0
        %2362 = vmatpush1.msra.mxu0 0.0
        %2363 = vmatprep.subr.mxu0 0.0
        %2364 = vmatpush1.msra.mxu0 0.0
        %2365 = vmatprep.subr.mxu0 0.0
        %2366 = vmatpush1.msra.mxu0 0.0
        %2367 = vmatprep.subr.mxu0 0.0
        %2368 = vmatpush1.msra.mxu0 0.0
        %2369 = vmatprep.subr.mxu0 0.0
        %2370 = vmatpush1.msra.mxu0 0.0
        %2371 = vmatprep.subr.mxu0 0.0
        %2372 = vmatpush1.msra.mxu0 0.0
        %2373 = vmatprep.subr.mxu0 0.0
        %2374 = vmatpush1.msra.mxu0 0.0
        %2375 = vmatprep.subr.mxu0 0.0
        %2376 = vmatpush1.msra.mxu0 0.0
        %2377 = vmatprep.mubr.f32.mxu0 0.0
        %2378 = vmatmul.mubr.f32.gmra.mrb[0].mxu0 %v2308
        %v2379 = vpop.f32.mrb[0].mxu0
        %v2380 = vadd.f32 0.0, %v2379
        %v2381 = vpop.f32.mrb[0].mxu0
        %2382 = vmatprep.mubr.f32.mxu0 0.0
        %2383 = vmatmul.mubr.f32.gmra.mrb[0].mxu0 %v2311
        %v2384 = vpop.f32.mrb[0].mxu0
        %v2385 = vadd.f32 0.0, %v2384
        %v2386 = vpop.f32.mrb[0].mxu0
        %2387 = vdwg.mxu0
        %2390 = vrot.lane.b32.xlu0 %v2380, 28
        %v2391 = vpop.permute.xlu0 %2390
        %2392 = vrot.lane.b32.xlu0 %v2385, 28
        %v2393 = vpop.permute.xlu0 %2392
        %vm2396 = vcmask 261344
        %2397 = vst.msk [vmem:[#allocation3] sm:$0xff] %vm2396, %v2391
        %2398 = vst.msk [vmem:[#allocation3 + $0x8] sm:$0xff] %vm2396, %v2393
        %v2399 = vld [vmem:[#allocation3] sm:$0xff]
        %v2400 = vld [vmem:[#allocation3 + $0x8] sm:$0xff]
        %v2401 = vld [vmem:[#allocation12] sm:$0xff]
        %v2402 = vld [vmem:[#allocation12 + $0x8] sm:$0xff]
        %v2403 = vld [vmem:[#allocation12 + $0x10] sm:$0xff]
        %v2404 = vld [vmem:[#allocation12 + $0x18] sm:$0xff]
        %v2405 = vld [vmem:[%s7] sm:$0x1]
        %v2407 = vlaneseq
        %v2408 = vshrl.u32 %v2407, 7
        %v2409 = vsub.s32 0, %v2408
        %v2410 = vrot.slane %v2405, %v2409
        %v2413 = vsel %vm634, %v2399, 0
        %v2416 = vsel %vm634, %v2400, 0
        %2418 = vmatprep.subr.mxu0 0.0
        %2419 = vmatpush1.msra.mxu0 %v2401
        %2420 = vmatprep.subr.mxu0 0.0
        %2421 = vmatpush1.msra.mxu0 %v2402
        %2422 = vmatprep.subr.mxu0 0.0
        %2423 = vmatpush1.msra.mxu0 %v2403
        %2424 = vmatprep.subr.mxu0 0.0
        %2425 = vmatpush1.msra.mxu0 %v2404
        %2426 = vmatprep.subr.mxu0 0.0
        %2427 = vmatpush1.msra.mxu0 0.0
        %2428 = vmatprep.subr.mxu0 0.0
        %2429 = vmatpush1.msra.mxu0 0.0
        %2430 = vmatprep.subr.mxu0 0.0
        %2431 = vmatpush1.msra.mxu0 0.0
        %2432 = vmatprep.subr.mxu0 0.0
        %2433 = vmatpush1.msra.mxu0 0.0
        %2434 = vmatprep.subr.mxu0 0.0
        %2435 = vmatpush1.msra.mxu0 0.0
        %2436 = vmatprep.subr.mxu0 0.0
        %2437 = vmatpush1.msra.mxu0 0.0
        %2438 = vmatprep.subr.mxu0 0.0
        %2439 = vmatpush1.msra.mxu0 0.0
        %2440 = vmatprep.subr.mxu0 0.0
        %2441 = vmatpush1.msra.mxu0 0.0
        %2442 = vmatprep.subr.mxu0 0.0
        %2443 = vmatpush1.msra.mxu0 0.0
        %2444 = vmatprep.subr.mxu0 0.0
        %2445 = vmatpush1.msra.mxu0 0.0
        %2446 = vmatprep.subr.mxu0 0.0
        %2447 = vmatpush1.msra.mxu0 0.0
        %2448 = vmatprep.subr.mxu0 0.0
        %2449 = vmatpush1.msra.mxu0 0.0
        %2450 = vmatprep.subr.mxu0 0.0
        %2451 = vmatpush1.msra.mxu0 0.0
        %2452 = vmatprep.subr.mxu0 0.0
        %2453 = vmatpush1.msra.mxu0 0.0
        %2454 = vmatprep.subr.mxu0 0.0
        %2455 = vmatpush1.msra.mxu0 0.0
        %2456 = vmatprep.subr.mxu0 0.0
        %2457 = vmatpush1.msra.mxu0 0.0
        %2458 = vmatprep.subr.mxu0 0.0
        %2459 = vmatpush1.msra.mxu0 0.0
        %2460 = vmatprep.subr.mxu0 0.0
        %2461 = vmatpush1.msra.mxu0 0.0
        %2462 = vmatprep.subr.mxu0 0.0
        %2463 = vmatpush1.msra.mxu0 0.0
        %2464 = vmatprep.subr.mxu0 0.0
        %2465 = vmatpush1.msra.mxu0 0.0
        %2466 = vmatprep.subr.mxu0 0.0
        %2467 = vmatpush1.msra.mxu0 0.0
        %2468 = vmatprep.subr.mxu0 0.0
        %2469 = vmatpush1.msra.mxu0 0.0
        %2470 = vmatprep.subr.mxu0 0.0
        %2471 = vmatpush1.msra.mxu0 0.0
        %2472 = vmatprep.subr.mxu0 0.0
        %2473 = vmatpush1.msra.mxu0 0.0
        %2474 = vmatprep.subr.mxu0 0.0
        %2475 = vmatpush1.msra.mxu0 0.0
        %2476 = vmatprep.subr.mxu0 0.0
        %2477 = vmatpush1.msra.mxu0 0.0
        %2478 = vmatprep.subr.mxu0 0.0
        %2479 = vmatpush1.msra.mxu0 0.0
        %2480 = vmatprep.subr.mxu0 0.0
        %2481 = vmatpush1.msra.mxu0 0.0
        %2482 = vmatprep.mubr.f32.mxu0 0.0
        %2483 = vmatmul.mubr.f32.gmra.mrb[0].mxu0 %v2413
        %v2484 = vpop.f32.mrb[0].mxu0
        %v2485 = vadd.f32 %v2410, %v2484
        %v2486 = vpop.f32.mrb[0].mxu0
        %2487 = vmatprep.mubr.f32.mxu0 0.0
        %2488 = vmatmul.mubr.f32.gmra.mrb[0].mxu0 %v2416
        %v2489 = vpop.f32.mrb[0].mxu0
        %v2490 = vadd.f32 %v2410, %v2489
        %v2491 = vpop.f32.mrb[0].mxu0
        %2492 = vdwg.mxu0
        %v2493 = vadd.f32 %v621, %v2485
        %v2494 = vadd.f32 %v622, %v2490
        %v2495 = vsel %vm634, %v2493, 0.0
        %2496 = vadd.xlane.f32.xlu0 %v2495
        %v2497 = vpop.xlane.xlu0 %2496
        %v2498 = vsel %vm634, %v2494, 0.0
        %2499 = vadd.xlane.f32.xlu0 %v2498
        %v2500 = vpop.xlane.xlu0 %2499
        %v2501 = vrcp.pop 32.0
        %v2502 = vmul.f32 %v2497, %v2501
        %v2503 = vmul.f32 %v2500, %v2501
        %v2504 = vsub.f32 %v2493, %v2502
        %v2505 = vsub.f32 %v2494, %v2503
        %v2506 = vmul.f32 %v2504, %v2504
        %v2507 = vmul.f32 %v2505, %v2505
        %v2508 = vsel %vm634, %v2506, 0.0
        %2509 = vadd.xlane.f32.xlu0 %v2508
        %v2510 = vpop.xlane.xlu0 %2509
        %v2511 = vsel %vm634, %v2507, 0.0
        %2512 = vadd.xlane.f32.xlu0 %v2511
        %v2513 = vpop.xlane.xlu0 %2512
        %v2514 = vmul.f32 %v2510, %v2501
        %v2515 = vmul.f32 %v2513, %v2501
        %v2516 = vadd.f32 %v2514, 1e-05
        %v2517 = vadd.f32 %v2515, 1e-05
        %v2518 = vrsqrt.pop %v2516
        %v2519 = vrsqrt.pop %v2517
        %v2520 = vmul.f32 %v2504, %v2518
        %v2521 = vmul.f32 %v2505, %v2519
        %v2522 = vld [vmem:[%s8] sm:$0x1]
        %v2524 = vlaneseq
        %v2525 = vshrl.u32 %v2524, 7
        %v2526 = vsub.s32 0, %v2525
        %v2527 = vrot.slane %v2522, %v2526
        %v2529 = vmul.f32 %v2520, %v2527
        %v2530 = vmul.f32 %v2521, %v2527
        %v2531 = vld [vmem:[%s9] sm:$0x1]
        %v2533 = vlaneseq
        %v2534 = vshrl.u32 %v2533, 7
        %v2535 = vsub.s32 0, %v2534
        %v2536 = vrot.slane %v2531, %v2535
        %v2538 = vadd.f32 %v2529, %v2536
        %v2539 = vadd.f32 %v2530, %v2536
        %2540 = vst.msk [vmem:[%s505] sm:$0xff] %vm634, %v2538
        %2541 = vst.msk [vmem:[%s505 + $0x8] sm:$0xff] %vm634, %v2539
        %v2542 = vld [vmem:[%s527] sm:$0xff]
        %v2543 = vld [vmem:[%s527 + $0x8] sm:$0xff]
        %v2544 = vmul.f32 %v2542, 0.125
        %v2545 = vmul.f32 %v2543, 0.125
        %2546 = vst.msk [vmem:[%s527] sm:$0xff] %vm804, %v2544
        %2547 = vst.msk [vmem:[%s527 + $0x8] sm:$0xff] %vm804, %v2545
        %s2548 = sand.u32 %s277, 1
        %s2549 = scalar_lea.sflag [#allocation6], %s2548
        %s2550 = sand.u32 %s277, 1
        %s2551 = smul.addr %s2550, 16
        %s2552 = scalar_lea.vmem [#allocation13], %s2551
        %s2553 = smul.u32 2, %s38
        %p2554 = scmp.lt.s32.totalorder %s37, 1
        %s2555 = scalar_select %p2554, %s37, 1
        %p2556 = scmp.lt.s32.totalorder %s2553, 1
        %s2557 = scalar_select %p2556, %s2553, 1
        %s2558 = smul.addr %s2555, 2
        %s2559 = sadd.s32 %s2557, %s2558
        %s2560 = smul.addr %s2559, 8
        %s2561 = scalar_lea.vmem %s11, %s2560
        // Predicated region
        $region85: #{tpu_custom_call.1} parent=59 // pred_check
          %p2562 = pneg %p287
        $region86: #{tpu_custom_call.1} parent=59 // pred_check_branch
          %2564 = sbr.rel (%p2562) target = $region88
        $region87: #{tpu_custom_call.1} parent=59 // pred_region
          %s2565 = smul.u32 2, %s38
          %s2567 = ssub.s32 256, 256
          %2568 = vsyncadd %s2549, %s2567
          %s2569 = smul.addr %s37, 2
          %s2570 = sadd.s32 %s2565, %s2569
          %s2571 = smul.addr %s2570, 128
          %s2572 = scalar_lea.hbm %s10, %s2571
          %s2573 = sshll.u32 %s2552, 4
          %s2574 = int_to_ptr.vmem [resolvable:$true] %s2573
          %2579 = dma.vmem_to_hbm [thread:$0]  %s2574, 256, %s2572, %s2549, 128, 128, 8
        $region88: #{tpu_custom_call.1} parent=59 // pred_fallthru
          _
        // Predicated region
        $region89: #{tpu_custom_call.1} parent=59 // pred_check
          %p2580 = pneg %p315
        $region90: #{tpu_custom_call.1} parent=59 // pred_check_branch
          %2582 = sbr.rel (%p2580) target = $region92
        $region91: #{tpu_custom_call.1} parent=59 // pred_region
          %s2583 = smul.u32 2, %s38
        $region92: #{tpu_custom_call.1} parent=59 // pred_fallthru
          _
      $region60: #{tpu_custom_call.1} parent=5 // pred_fallthru
        _
      %p2584 = scmp.le.s32.totalorder 2, %s28
      // Predicated region
      $region93: #{tpu_custom_call.1} parent=5 // pred_check
        %p2585 = pneg %p2584
      $region94: #{tpu_custom_call.1} parent=5 // pred_check_branch
        %2587 = sbr.rel (%p2585) target = $region96
      $region95: #{tpu_custom_call.1} parent=5 // pred_region
        %s2588 = ssub.s32 %s28, 2
        // Predicated region
        $region97: #{tpu_custom_call.1} parent=95 // pred_check
          %p2589 = pneg %p293
        $region98: #{tpu_custom_call.1} parent=95 // pred_check_branch
          %2591 = sbr.rel (%p2589) target = $region100
        $region99: #{tpu_custom_call.1} parent=95 // pred_region
          %s2592 = sand.u32 %s278, 1
          %s2593 = scalar_lea.sflag [#allocation6], %s2592
          %s2594 = sand.u32 %s278, 1
          %s2595 = smul.addr %s2594, 16
          %s2596 = scalar_lea.vmem [#allocation13], %s2595
          %2597 = dma.done %s2593, 256
        $region100: #{tpu_custom_call.1} parent=95 // pred_fallthru
          _
        // Predicated region
        $region101: #{tpu_custom_call.1} parent=95 // pred_check
          %p2598 = pneg %p321
        $region102: #{tpu_custom_call.1} parent=95 // pred_check_branch
          %2600 = sbr.rel (%p2598) target = $region104
        $region103: #{tpu_custom_call.1} parent=95 // pred_region
          %s2601 = smul.u32 2, %s40
          %p2602 = scmp.lt.s32.totalorder %s39, 1
          %s2603 = scalar_select %p2602, %s39, 1
          %p2604 = scmp.lt.s32.totalorder %s2601, 1
          %s2605 = scalar_select %p2604, %s2601, 1
          %s2606 = smul.addr %s2603, 2
          %s2607 = sadd.s32 %s2605, %s2606
          %s2608 = smul.addr %s2607, 8
          %s2609 = scalar_lea.vmem %s11, %s2608
        $region104: #{tpu_custom_call.1} parent=95 // pred_fallthru
          _
      $region96: #{tpu_custom_call.1} parent=5 // pred_fallthru
        _
    $region6: #{tpu_custom_call.1} parent=1 // loop_footer
      %s32 = sadd.s32 1, %s28
    $region7: #{tpu_custom_call.1} parent=1 // loop_footer_branch
      %27 = sbr.rel target = $region3
    $region8: #{tpu_custom_call.1} parent=1 // loop_exit
      _
    %2610 = vsyncpa [#allocation5], 1
    %s2611 = scalar_lea.sflag [#allocation5], 1
    %2612 = vsyncpa %s2611, 1
    %2613 = vsyncpa [#allocation8], 1
    %s2614 = scalar_lea.sflag [#allocation8], 1
    %2615 = vsyncpa %s2614, 1
    %2616 = vsyncpa [#allocation11], 1
    %2617 = vsyncpa [#allocation6], 1
    %s2618 = scalar_lea.sflag [#allocation6], 1
    %2619 = vsyncpa %s2618, 1

</llo_original>
